<compile_context>
chip_gen: v7x
topology: tpu7x:2x2x1
jax: 0.10.0
libtpu: 0.0.40
codegen_flags: <defaults>
</compile_context>

<pallas_src>
import math
import functools

import jax
import jax.numpy as jnp
from jax.experimental import pallas as pl
from jax.experimental.pallas import tpu as pltpu


def make_mha_rope_kernel(seq_len, model_dim, attn_dim, num_heads, block_q,
                         use_roll):
    """Per-batch-element fused MHA+RoPE kernel (all heads, all query tiles)."""
    half = attn_dim // 2
    num_q_tiles = seq_len // block_q

    def rotate_half(u):
        # Partner element for rotate-half RoPE: out[i] = u[(i + dh/2) mod dh].
        if use_roll:
            # XLU lane rotate; a shift of dh/2 on a period-dh axis is direction
            # agnostic, so this is bit-exact regardless of roll convention.
            return pltpu.roll(u, shift=half, axis=1)
        # Fallback for head dims that are not lane-aligned.
        return jnp.concatenate([u[:, half:], u[:, :half]], axis=1)

    def kernel(x_ref, wqkv_ref, bqkv_ref, wo_ref, bo_ref, cos_ref, sin_ref,
               o_ref, ho_ref):
        # x_ref:   (T, D)    bf16   (batch dim squeezed by BlockSpec)
        # wqkv_ref:(D, 3D)   bf16   resident; columns per head: [q_h | k_h | v_h]
        # wo_ref:  (D, D)    bf16   resident; rows h*dh:(h+1)*dh belong to head h
        # ho_ref:  (T, D)    bf16   scratch holding all head outputs (concat layout)
        for h in range(num_heads):              # static loop -> static offsets
            qc = h * 3 * attn_dim
            kc = qc + attn_dim
            vc = qc + 2 * attn_dim

            # K / V projections for the full sequence (MXU, f32 accumulate).
            k = (jnp.dot(x_ref[...], wqkv_ref[:, kc:kc + attn_dim],
                         preferred_element_type=jnp.float32)
                 + bqkv_ref[:, kc:kc + attn_dim])
            v = (jnp.dot(x_ref[...], wqkv_ref[:, vc:vc + attn_dim],
                         preferred_element_type=jnp.float32)
                 + bqkv_ref[:, vc:vc + attn_dim])
            # RoPE on keys; the +-1 sign mask is pre-folded into the sin table.
            k_bf = (cos_ref[...] * k
                    + sin_ref[...] * rotate_half(k)).astype(jnp.bfloat16)
            v_bf = v.astype(jnp.bfloat16)

            def q_tile_body(qt, carry, _h=h, _qc=qc, _k_bf=k_bf, _v_bf=v_bf):
                i0 = pl.multiple_of(qt * block_q, block_q)

                # Q projection for this query tile (scale already folded in).
                xq = x_ref[pl.ds(i0, block_q), :]
                q = (jnp.dot(xq, wqkv_ref[:, _qc:_qc + attn_dim],
                             preferred_element_type=jnp.float32)
                     + bqkv_ref[:, _qc:_qc + attn_dim])
                cos_t = cos_ref[pl.ds(i0, block_q), :]
                sin_t = sin_ref[pl.ds(i0, block_q), :]
                q_bf = (cos_t * q + sin_t * rotate_half(q)).astype(jnp.bfloat16)

                # Scores: contraction on the head dim, no explicit transpose.
                s = jax.lax.dot_general(
                    q_bf, _k_bf, (((1,), (1,)), ((), ())),
                    preferred_element_type=jnp.float32)      # (block_q, T) f32

                # Causal mask built in-kernel, finite sentinel (s stays f32).
                row = (jax.lax.broadcasted_iota(
                    jnp.int32, (block_q, seq_len), 0) + i0)
                col = jax.lax.broadcasted_iota(
                    jnp.int32, (block_q, seq_len), 1)
                s = jnp.where(col > row, -1e30, s)

                # Full-row softmax for this tile; normalise AFTER P@V so the
                # reciprocal multiply is (block_q, dh) instead of (block_q, T).
                m = jnp.max(s, axis=-1, keepdims=True)
                e = jnp.exp(s - m)
                denom = jnp.sum(e, axis=-1, keepdims=True)
                pv = jnp.dot(e.astype(jnp.bfloat16), _v_bf,
                             preferred_element_type=jnp.float32)
                tile = pv * pl.reciprocal(denom, approx=True)  # (block_q, dh)

                ho_ref[pl.ds(i0, block_q),
                       _h * attn_dim:(_h + 1) * attn_dim] = tile.astype(
                           jnp.bfloat16)
                return carry

            jax.lax.fori_loop(0, num_q_tiles, q_tile_body, 0,
                              unroll=(num_q_tiles <= 4))

        # Deferred output projection: one full-K matmul, one output write.
        out = (jnp.dot(ho_ref[...], wo_ref[...],
                       preferred_element_type=jnp.float32) + bo_ref[...])
        o_ref[...] = out.astype(o_ref.dtype)

    return kernel


def mha_rope_pallas(x, wqkv, bqkv, wo, bo, cosines, sines, perm_mask, neg_mask,
                    attn_mask, *, num_heads, block_q=256,
                    vmem_limit_bytes=None):
    """Fused MHA+RoPE forward.

    Parameter layouts follow the torch module:
      wqkv: (3D, D), bqkv: (3D,), wo: (D, D), bo: (D,),
      cosines/sines: (T, dh), perm_mask: (dh,) rotate-half permutation,
      neg_mask: (dh,) of +-1, attn_mask: (T, T) bool causal mask.
    perm_mask / attn_mask are assumed to follow the standard rotate-half /
    causal convention (see TODOs at top): the mask is rebuilt in-kernel and the
    permutation is realised as an XLU roll.
    """
    del perm_mask, attn_mask  # assumed rotate-half / causal; built in-kernel.

    B, T, D = x.shape
    H = num_heads
    dh = D // H
    assert dh * H == D

    block_q = min(block_q, T)
    if T % block_q != 0:
        block_q = T
    assert block_q % 8 == 0

    inv_scale = 1.0 / math.sqrt(dh)

    # torch Linear computes x @ W.T; pre-transpose so the kernel does x @ W.
    # Columns of wqkv_t are grouped per head as [q_h | k_h | v_h]; fold the
    # 1/sqrt(dh) score scale into the q columns / q bias (zero in-kernel cost).
    wqkv_t = wqkv.T.reshape(D, H, 3, dh)
    wqkv_t = wqkv_t.at[:, :, 0, :].multiply(inv_scale)
    wqkv_t = wqkv_t.reshape(D, 3 * D).astype(jnp.bfloat16)       # (D, 3D)
    bqkv_s = bqkv.reshape(H, 3, dh).astype(jnp.float32)
    bqkv_s = bqkv_s.at[:, 0, :].multiply(inv_scale)
    bqkv_s = bqkv_s.reshape(1, 3 * D)

    wo_t = wo.T.astype(jnp.bfloat16)                             # (D, D)
    bo2 = bo.reshape(1, D).astype(jnp.float32)

    # Two RoPE tables only; the +-1 sign mask is folded into the sin table.
    cos = cosines.astype(jnp.float32)
    sin_signed = (sines * neg_mask.reshape(1, dh)).astype(jnp.float32)

    x_bf16 = x.astype(jnp.bfloat16)

    kernel = make_mha_rope_kernel(T, D, dh, H, block_q,
                                  use_roll=(dh % 128 == 0))

    if vmem_limit_bytes is None:
        est = (2 * T * D * 2 + 2 * T * D * 4        # x / out double-buffered
               + 3 * D * D * 2 + D * D * 2          # resident weights (bf16)
               + 4 * D * 4 + 2 * T * dh * 4         # biases + RoPE tables
               + T * D * 2                          # head-output scratch
               + 6 * T * dh * 4                     # per-head k/v temporaries
               + 5 * block_q * T * 4)               # score/exp/mask working set
        vmem_limit_bytes = int(min(max(32 * 1024 * 1024, 1.5 * est),
                                   100 * 1024 * 1024))

    # Grid-invariant (resident) inputs: constant block index + single buffer.
    invariant = dict(pipeline_mode=pl.Buffered(buffer_count=1))

    return pl.pallas_call(
        kernel,
        out_shape=jax.ShapeDtypeStruct((B, T, D), jnp.float32),
        grid=(B,),
        in_specs=[
            pl.BlockSpec((None, T, D), lambda b: (b, 0, 0)),            # x (bf16)
            pl.BlockSpec((D, 3 * D), lambda b: (0, 0), **invariant),    # W_qkv^T resident
            pl.BlockSpec((1, 3 * D), lambda b: (0, 0), **invariant),    # b_qkv (q scaled)
            pl.BlockSpec((D, D), lambda b: (0, 0), **invariant),        # W_o^T resident
            pl.BlockSpec((1, D), lambda b: (0, 0), **invariant),        # b_o
            pl.BlockSpec((T, dh), lambda b: (0, 0), **invariant),       # cos
            pl.BlockSpec((T, dh), lambda b: (0, 0), **invariant),       # sin (signed)
        ],
        out_specs=pl.BlockSpec((None, T, D), lambda b: (b, 0, 0)),
        scratch_shapes=[pltpu.VMEM((T, D), jnp.bfloat16)],              # head outputs
        compiler_params=pltpu.CompilerParams(
            dimension_semantics=("parallel",),
            vmem_limit_bytes=vmem_limit_bytes),
    )(x_bf16, wqkv_t, bqkv_s, wo_t, bo2, cos, sin_signed)


def reference(x, wqkv, bqkv, wo, bo, cosines, sines, perm_idx, neg_vec,
              attn_mask, *, num_heads):
    """Pure f32 JAX mirror of the torch module's forward (for checking)."""
    B, T, D = x.shape
    H = num_heads
    dh = D // H
    qkv = x @ wqkv.T + bqkv
    qkv = qkv.reshape(B, T, H, 3, dh)
    q = jnp.transpose(qkv[:, :, :, 0, :], (0, 2, 1, 3))    # (B,H,T,dh)
    k = jnp.transpose(qkv[:, :, :, 1, :], (0, 2, 1, 3))
    v = jnp.transpose(qkv[:, :, :, 2, :], (0, 2, 1, 3))
    q_perm = q[..., perm_idx] * neg_vec
    k_perm = k[..., perm_idx] * neg_vec
    rq = cosines * q + q_perm * sines
    rk = cosines * k + k_perm * sines
    s = rq @ jnp.swapaxes(rk, 2, 3) / math.sqrt(dh)
    s = jnp.where(attn_mask, -jnp.inf, s)
    p = jax.nn.softmax(s, axis=-1)
    o = p @ v
    o = jnp.transpose(o, (0, 2, 1, 3)).reshape(B, T, D)
    return o @ wo.T + bo


if __name__ == "__main__":
    # Small but TPU-aligned shapes (dh = 128 lanes, T multiple of 8).
    # block_q=64 < T exercises the query-tile loop (2 tiles per head).
    B, T, D, H = 2, 128, 256, 2
    dh = D // H
    block_q = 64

    key = jax.random.PRNGKey(0)
    kx, kw1, kb1, kw2, kb2 = jax.random.split(key, 5)

    x = jax.random.normal(kx, (B, T, D), dtype=jnp.float32)

    lim = 1.0 / math.sqrt(D)
    wqkv = jax.random.uniform(kw1, (3 * D, D), jnp.float32, -lim, lim)
    bqkv = jax.random.uniform(kb1, (3 * D,), jnp.float32, -lim, lim)
    wo = jax.random.uniform(kw2, (D, D), jnp.float32, -lim, lim)
    bo = jax.random.uniform(kb2, (D,), jnp.float32, -lim, lim)

    # RoPE tables (rotate-half convention for perm_mask / neg_mask).
    pos = jnp.arange(T, dtype=jnp.float32)[:, None]
    inv_freq = 1.0 / (10000.0 ** (jnp.arange(0, dh // 2, dtype=jnp.float32)
                                  / (dh // 2)))
    ang = pos * inv_freq[None, :]                                     # (T, dh/2)
    cosines = jnp.concatenate([jnp.cos(ang), jnp.cos(ang)], axis=-1)  # (T, dh)
    sines = jnp.concatenate([jnp.sin(ang), jnp.sin(ang)], axis=-1)    # (T, dh)
    perm_mask = jnp.concatenate(
        [jnp.arange(dh // 2, dh), jnp.arange(0, dh // 2)]).astype(jnp.int32)
    neg_mask = jnp.concatenate(
        [-jnp.ones(dh // 2), jnp.ones(dh // 2)]).astype(jnp.float32)

    # Causal mask (True == masked out).
    attn_mask = jnp.triu(jnp.ones((T, T), dtype=bool), k=1)

    run = functools.partial(mha_rope_pallas, num_heads=H, block_q=block_q)
    out = run(x, wqkv, bqkv, wo, bo, cosines, sines, perm_mask, neg_mask,
              attn_mask)
    out = jax.block_until_ready(out)

    ref = reference(x, wqkv, bqkv, wo, bo, cosines, sines, perm_mask, neg_mask,
                    attn_mask, num_heads=H)
    assert out.shape == (B, T, D)
    # bf16 MXU operands -> looser tolerance vs. the pure-f32 reference.
    assert jnp.allclose(out, ref, atol=2e-2, rtol=2e-2), (
        "mismatch vs reference; max abs err = "
        f"{float(jnp.max(jnp.abs(out - ref)))}")

    print("KERNEL_OK")
</pallas_src>

<mosaic_0001>
module attributes {stable_mosaic.version = 11 : i64} {
  func.func @kernel(%arg0: i32, %arg1: memref<1x128x256xbf16, #tpu.memory_space<vmem>>, %arg2: memref<256x768xbf16, #tpu.memory_space<vmem>>, %arg3: memref<1x768xf32, #tpu.memory_space<vmem>>, %arg4: memref<256x256xbf16, #tpu.memory_space<vmem>>, %arg5: memref<1x256xf32, #tpu.memory_space<vmem>>, %arg6: memref<128x128xf32, #tpu.memory_space<vmem>>, %arg7: memref<128x128xf32, #tpu.memory_space<vmem>>, %arg8: memref<1x128x256xf32, #tpu.memory_space<vmem>>, %arg9: memref<128x256xbf16, #tpu.memory_space<vmem>>) attributes {dimension_semantics = [#tpu.dimension_semantics<parallel>], iteration_bounds = array<i64: 2>, scalar_prefetch = 0 : i64, scratch_operands = 1 : i64, tpu.core_type = #tpu.core_type<tc>, window_params = [{transform_indices = @transform_0, window_bounds = array<i64: 1, 128, 256>}, {pipeline_mode = #tpu.pipeline_mode<synchronous>, transform_indices = @transform_1, window_bounds = array<i64: 256, 768>}, {pipeline_mode = #tpu.pipeline_mode<synchronous>, transform_indices = @transform_2, window_bounds = array<i64: 1, 768>}, {pipeline_mode = #tpu.pipeline_mode<synchronous>, transform_indices = @transform_3, window_bounds = array<i64: 256, 256>}, {pipeline_mode = #tpu.pipeline_mode<synchronous>, transform_indices = @transform_4, window_bounds = array<i64: 1, 256>}, {pipeline_mode = #tpu.pipeline_mode<synchronous>, transform_indices = @transform_5, window_bounds = array<i64: 128, 128>}, {pipeline_mode = #tpu.pipeline_mode<synchronous>, transform_indices = @transform_6, window_bounds = array<i64: 128, 128>}, {transform_indices = @transform_7, window_bounds = array<i64: 1, 128, 256>}]} {
    %c0 = arith.constant 0 : index
    %c0_0 = arith.constant 0 : index
    %c0_1 = arith.constant 0 : index
    %0 = vector.load %arg1[%c0, %c0_0, %c0_1] : memref<1x128x256xbf16, #tpu.memory_space<vmem>>, vector<1x128x256xbf16>
    %1 = vector.shape_cast %0 : vector<1x128x256xbf16> to vector<128x256xbf16>
    %c0_2 = arith.constant 0 : index
    %c128 = arith.constant 128 : index
    %2 = vector.load %arg2[%c0_2, %c128] : memref<256x768xbf16, #tpu.memory_space<vmem>>, vector<256x128xbf16>
    %cst = arith.constant dense<0.000000e+00> : vector<128x128xf32>
    %3 = tpu.matmul %1, %2, %cst {dimension_numbers = #tpu.dot_dimension_numbers<[1], [0], [0], [1], [0, 0, 1, 1], [], []>} : vector<128x256xbf16>, vector<256x128xbf16>, vector<128x128xf32> -> vector<128x128xf32>
    %c0_3 = arith.constant 0 : index
    %c128_4 = arith.constant 128 : index
    %4 = vector.load %arg3[%c0_3, %c128_4] : memref<1x768xf32, #tpu.memory_space<vmem>>, vector<1x128xf32>
    %5 = vector.broadcast %4 : vector<1x128xf32> to vector<128x128xf32>
    %6 = arith.addf %3, %5 : vector<128x128xf32>
    %c0_5 = arith.constant 0 : index
    %c0_6 = arith.constant 0 : index
    %c0_7 = arith.constant 0 : index
    %7 = vector.load %arg1[%c0_5, %c0_6, %c0_7] : memref<1x128x256xbf16, #tpu.memory_space<vmem>>, vector<1x128x256xbf16>
    %8 = vector.shape_cast %7 : vector<1x128x256xbf16> to vector<128x256xbf16>
    %c0_8 = arith.constant 0 : index
    %c256 = arith.constant 256 : index
    %9 = vector.load %arg2[%c0_8, %c256] : memref<256x768xbf16, #tpu.memory_space<vmem>>, vector<256x128xbf16>
    %cst_9 = arith.constant dense<0.000000e+00> : vector<128x128xf32>
    %10 = tpu.matmul %8, %9, %cst_9 {dimension_numbers = #tpu.dot_dimension_numbers<[1], [0], [0], [1], [0, 0, 1, 1], [], []>} : vector<128x256xbf16>, vector<256x128xbf16>, vector<128x128xf32> -> vector<128x128xf32>
    %c0_10 = arith.constant 0 : index
    %c256_11 = arith.constant 256 : index
    %11 = vector.load %arg3[%c0_10, %c256_11] : memref<1x768xf32, #tpu.memory_space<vmem>>, vector<1x128xf32>
    %12 = vector.broadcast %11 : vector<1x128xf32> to vector<128x128xf32>
    %13 = arith.addf %10, %12 : vector<128x128xf32>
    %c0_12 = arith.constant 0 : index
    %c0_13 = arith.constant 0 : index
    %14 = vector.load %arg6[%c0_12, %c0_13] : memref<128x128xf32, #tpu.memory_space<vmem>>, vector<128x128xf32>
    %15 = arith.mulf %14, %6 : vector<128x128xf32>
    %c0_14 = arith.constant 0 : index
    %c0_15 = arith.constant 0 : index
    %16 = vector.load %arg7[%c0_14, %c0_15] : memref<128x128xf32, #tpu.memory_space<vmem>>, vector<128x128xf32>
    %c64_i32 = arith.constant 64 : i32
    %17 = tpu.dynamic_rotate %6 by %c64_i32 dim 1 : vector<128x128xf32>, i32 -> vector<128x128xf32>
    %18 = arith.mulf %16, %17 : vector<128x128xf32>
    %19 = arith.addf %15, %18 : vector<128x128xf32>
    %20 = arith.truncf %19 : vector<128x128xf32> to vector<128x128xbf16>
    %21 = arith.truncf %13 : vector<128x128xf32> to vector<128x128xbf16>
    %c0_i32 = arith.constant 0 : i32
    %c64_i32_16 = arith.constant 64 : i32
    %22 = arith.muli %c0_i32, %c64_i32_16 : i32
    %23 = tpu.assume_multiple %22, 64 : i32
    %c0_17 = arith.constant 0 : index
    %24 = arith.index_cast %23 : i32 to index
    %c0_18 = arith.constant 0 : index
    %25 = vector.load %arg1[%c0_17, %24, %c0_18] : memref<1x128x256xbf16, #tpu.memory_space<vmem>>, vector<1x64x256xbf16>
    %26 = vector.shape_cast %25 : vector<1x64x256xbf16> to vector<64x256xbf16>
    %c0_19 = arith.constant 0 : index
    %c0_20 = arith.constant 0 : index
    %27 = vector.load %arg2[%c0_19, %c0_20] : memref<256x768xbf16, #tpu.memory_space<vmem>>, vector<256x128xbf16>
    %cst_21 = arith.constant dense<0.000000e+00> : vector<64x128xf32>
    %28 = tpu.matmul %26, %27, %cst_21 {dimension_numbers = #tpu.dot_dimension_numbers<[1], [0], [0], [1], [0, 0, 1, 1], [], []>} : vector<64x256xbf16>, vector<256x128xbf16>, vector<64x128xf32> -> vector<64x128xf32>
    %c0_22 = arith.constant 0 : index
    %c0_23 = arith.constant 0 : index
    %29 = vector.load %arg3[%c0_22, %c0_23] : memref<1x768xf32, #tpu.memory_space<vmem>>, vector<1x128xf32>
    %30 = vector.broadcast %29 : vector<1x128xf32> to vector<64x128xf32>
    %31 = arith.addf %28, %30 : vector<64x128xf32>
    %32 = arith.index_cast %23 : i32 to index
    %c0_24 = arith.constant 0 : index
    %33 = vector.load %arg6[%32, %c0_24] : memref<128x128xf32, #tpu.memory_space<vmem>>, vector<64x128xf32>
    %34 = arith.index_cast %23 : i32 to index
    %c0_25 = arith.constant 0 : index
    %35 = vector.load %arg7[%34, %c0_25] : memref<128x128xf32, #tpu.memory_space<vmem>>, vector<64x128xf32>
    %36 = arith.mulf %33, %31 : vector<64x128xf32>
    %c64_i32_26 = arith.constant 64 : i32
    %37 = tpu.dynamic_rotate %31 by %c64_i32_26 dim 1 : vector<64x128xf32>, i32 -> vector<64x128xf32>
    %38 = arith.mulf %35, %37 : vector<64x128xf32>
    %39 = arith.addf %36, %38 : vector<64x128xf32>
    %40 = arith.truncf %39 : vector<64x128xf32> to vector<64x128xbf16>
    %cst_27 = arith.constant dense<0.000000e+00> : vector<64x128xf32>
    %41 = tpu.matmul %40, %20, %cst_27 {dimension_numbers = #tpu.dot_dimension_numbers<[1], [1], [0], [0], [0, 0, 1, 0], [], []>} : vector<64x128xbf16>, vector<128x128xbf16>, vector<64x128xf32> -> vector<64x128xf32>
    %42 = tpu.iota {dimensions = array<i32: 0>} : vector<64x128xi32>
    %43 = vector.broadcast %23 : i32 to vector<64x128xi32>
    %44 = arith.addi %42, %43 : vector<64x128xi32>
    %45 = tpu.iota {dimensions = array<i32: 1>} : vector<64x128xi32>
    %46 = arith.cmpi sgt, %45, %44 : vector<64x128xi32>
    %cst_28 = arith.constant -1.000000e+30 : f32
    %47 = vector.broadcast %cst_28 : f32 to vector<64x128xf32>
    %48 = arith.select %46, %47, %41 : vector<64x128xi1>, vector<64x128xf32>
    %cst_29 = arith.constant dense<0xFF800000> : vector<64xf32>
    %49 = vector.multi_reduction <maximumf>, %48, %cst_29 [1] : vector<64x128xf32> to vector<64xf32>
    %50 = vector.shape_cast %49 : vector<64xf32> to vector<64x1xf32>
    %51 = vector.broadcast %50 : vector<64x1xf32> to vector<64x128xf32>
    %52 = arith.subf %48, %51 : vector<64x128xf32>
    %53 = math.exp %52 : vector<64x128xf32>
    %cst_30 = arith.constant dense<0.000000e+00> : vector<64xf32>
    %54 = vector.multi_reduction <add>, %53, %cst_30 [1] : vector<64x128xf32> to vector<64xf32>
    %55 = vector.shape_cast %54 : vector<64xf32> to vector<64x1xf32>
    %56 = arith.truncf %53 : vector<64x128xf32> to vector<64x128xbf16>
    %cst_31 = arith.constant dense<0.000000e+00> : vector<64x128xf32>
    %57 = tpu.matmul %56, %21, %cst_31 {dimension_numbers = #tpu.dot_dimension_numbers<[1], [0], [0], [1], [0, 0, 1, 1], [], []>} : vector<64x128xbf16>, vector<128x128xbf16>, vector<64x128xf32> -> vector<64x128xf32>
    %58 = tpu.reciprocal %55 {approx = true} : vector<64x1xf32> -> vector<64x1xf32>
    %59 = vector.broadcast %58 : vector<64x1xf32> to vector<64x128xf32>
    %60 = arith.mulf %57, %59 : vector<64x128xf32>
    %61 = arith.truncf %60 : vector<64x128xf32> to vector<64x128xbf16>
    %62 = arith.index_cast %23 : i32 to index
    %c0_32 = arith.constant 0 : index
    %63 = vector.load %arg9[%62, %c0_32] : memref<128x256xbf16, #tpu.memory_space<vmem>>, vector<64x128xbf16>
    tpu.vector_store %arg9[%62, %c0_32], %61 {strides = array<i32>} : memref<128x256xbf16, #tpu.memory_space<vmem>>, vector<64x128xbf16>,
    %c1_i32 = arith.constant 1 : i32
    %c64_i32_33 = arith.constant 64 : i32
    %64 = arith.muli %c1_i32, %c64_i32_33 : i32
    %65 = tpu.assume_multiple %64, 64 : i32
    %c0_34 = arith.constant 0 : index
    %66 = arith.index_cast %65 : i32 to index
    %c0_35 = arith.constant 0 : index
    %67 = vector.load %arg1[%c0_34, %66, %c0_35] : memref<1x128x256xbf16, #tpu.memory_space<vmem>>, vector<1x64x256xbf16>
    %68 = vector.shape_cast %67 : vector<1x64x256xbf16> to vector<64x256xbf16>
    %c0_36 = arith.constant 0 : index
    %c0_37 = arith.constant 0 : index
    %69 = vector.load %arg2[%c0_36, %c0_37] : memref<256x768xbf16, #tpu.memory_space<vmem>>, vector<256x128xbf16>
    %cst_38 = arith.constant dense<0.000000e+00> : vector<64x128xf32>
    %70 = tpu.matmul %68, %69, %cst_38 {dimension_numbers = #tpu.dot_dimension_numbers<[1], [0], [0], [1], [0, 0, 1, 1], [], []>} : vector<64x256xbf16>, vector<256x128xbf16>, vector<64x128xf32> -> vector<64x128xf32>
    %c0_39 = arith.constant 0 : index
    %c0_40 = arith.constant 0 : index
    %71 = vector.load %arg3[%c0_39, %c0_40] : memref<1x768xf32, #tpu.memory_space<vmem>>, vector<1x128xf32>
    %72 = vector.broadcast %71 : vector<1x128xf32> to vector<64x128xf32>
    %73 = arith.addf %70, %72 : vector<64x128xf32>
    %74 = arith.index_cast %65 : i32 to index
    %c0_41 = arith.constant 0 : index
    %75 = vector.load %arg6[%74, %c0_41] : memref<128x128xf32, #tpu.memory_space<vmem>>, vector<64x128xf32>
    %76 = arith.index_cast %65 : i32 to index
    %c0_42 = arith.constant 0 : index
    %77 = vector.load %arg7[%76, %c0_42] : memref<128x128xf32, #tpu.memory_space<vmem>>, vector<64x128xf32>
    %78 = arith.mulf %75, %73 : vector<64x128xf32>
    %c64_i32_43 = arith.constant 64 : i32
    %79 = tpu.dynamic_rotate %73 by %c64_i32_43 dim 1 : vector<64x128xf32>, i32 -> vector<64x128xf32>
    %80 = arith.mulf %77, %79 : vector<64x128xf32>
    %81 = arith.addf %78, %80 : vector<64x128xf32>
    %82 = arith.truncf %81 : vector<64x128xf32> to vector<64x128xbf16>
    %cst_44 = arith.constant dense<0.000000e+00> : vector<64x128xf32>
    %83 = tpu.matmul %82, %20, %cst_44 {dimension_numbers = #tpu.dot_dimension_numbers<[1], [1], [0], [0], [0, 0, 1, 0], [], []>} : vector<64x128xbf16>, vector<128x128xbf16>, vector<64x128xf32> -> vector<64x128xf32>
    %84 = tpu.iota {dimensions = array<i32: 0>} : vector<64x128xi32>
    %85 = vector.broadcast %65 : i32 to vector<64x128xi32>
    %86 = arith.addi %84, %85 : vector<64x128xi32>
    %87 = tpu.iota {dimensions = array<i32: 1>} : vector<64x128xi32>
    %88 = arith.cmpi sgt, %87, %86 : vector<64x128xi32>
    %cst_45 = arith.constant -1.000000e+30 : f32
    %89 = vector.broadcast %cst_45 : f32 to vector<64x128xf32>
    %90 = arith.select %88, %89, %83 : vector<64x128xi1>, vector<64x128xf32>
    %cst_46 = arith.constant dense<0xFF800000> : vector<64xf32>
    %91 = vector.multi_reduction <maximumf>, %90, %cst_46 [1] : vector<64x128xf32> to vector<64xf32>
    %92 = vector.shape_cast %91 : vector<64xf32> to vector<64x1xf32>
    %93 = vector.broadcast %92 : vector<64x1xf32> to vector<64x128xf32>
    %94 = arith.subf %90, %93 : vector<64x128xf32>
    %95 = math.exp %94 : vector<64x128xf32>
    %cst_47 = arith.constant dense<0.000000e+00> : vector<64xf32>
    %96 = vector.multi_reduction <add>, %95, %cst_47 [1] : vector<64x128xf32> to vector<64xf32>
    %97 = vector.shape_cast %96 : vector<64xf32> to vector<64x1xf32>
    %98 = arith.truncf %95 : vector<64x128xf32> to vector<64x128xbf16>
    %cst_48 = arith.constant dense<0.000000e+00> : vector<64x128xf32>
    %99 = tpu.matmul %98, %21, %cst_48 {dimension_numbers = #tpu.dot_dimension_numbers<[1], [0], [0], [1], [0, 0, 1, 1], [], []>} : vector<64x128xbf16>, vector<128x128xbf16>, vector<64x128xf32> -> vector<64x128xf32>
    %100 = tpu.reciprocal %97 {approx = true} : vector<64x1xf32> -> vector<64x1xf32>
    %101 = vector.broadcast %100 : vector<64x1xf32> to vector<64x128xf32>
    %102 = arith.mulf %99, %101 : vector<64x128xf32>
    %103 = arith.truncf %102 : vector<64x128xf32> to vector<64x128xbf16>
    %104 = arith.index_cast %65 : i32 to index
    %c0_49 = arith.constant 0 : index
    %105 = vector.load %arg9[%104, %c0_49] : memref<128x256xbf16, #tpu.memory_space<vmem>>, vector<64x128xbf16>
    tpu.vector_store %arg9[%104, %c0_49], %103 {strides = array<i32>} : memref<128x256xbf16, #tpu.memory_space<vmem>>, vector<64x128xbf16>,
    %c2_i32 = arith.constant 2 : i32
    %c0_50 = arith.constant 0 : index
    %c0_51 = arith.constant 0 : index
    %c0_52 = arith.constant 0 : index
    %106 = vector.load %arg1[%c0_50, %c0_51, %c0_52] : memref<1x128x256xbf16, #tpu.memory_space<vmem>>, vector<1x128x256xbf16>
    %107 = vector.shape_cast %106 : vector<1x128x256xbf16> to vector<128x256xbf16>
    %c0_53 = arith.constant 0 : index
    %c512 = arith.constant 512 : index
    %108 = vector.load %arg2[%c0_53, %c512] : memref<256x768xbf16, #tpu.memory_space<vmem>>, vector<256x128xbf16>
    %cst_54 = arith.constant dense<0.000000e+00> : vector<128x128xf32>
    %109 = tpu.matmul %107, %108, %cst_54 {dimension_numbers = #tpu.dot_dimension_numbers<[1], [0], [0], [1], [0, 0, 1, 1], [], []>} : vector<128x256xbf16>, vector<256x128xbf16>, vector<128x128xf32> -> vector<128x128xf32>
    %c0_55 = arith.constant 0 : index
    %c512_56 = arith.constant 512 : index
    %110 = vector.load %arg3[%c0_55, %c512_56] : memref<1x768xf32, #tpu.memory_space<vmem>>, vector<1x128xf32>
    %111 = vector.broadcast %110 : vector<1x128xf32> to vector<128x128xf32>
    %112 = arith.addf %109, %111 : vector<128x128xf32>
    %c0_57 = arith.constant 0 : index
    %c0_58 = arith.constant 0 : index
    %c0_59 = arith.constant 0 : index
    %113 = vector.load %arg1[%c0_57, %c0_58, %c0_59] : memref<1x128x256xbf16, #tpu.memory_space<vmem>>, vector<1x128x256xbf16>
    %114 = vector.shape_cast %113 : vector<1x128x256xbf16> to vector<128x256xbf16>
    %c0_60 = arith.constant 0 : index
    %c640 = arith.constant 640 : index
    %115 = vector.load %arg2[%c0_60, %c640] : memref<256x768xbf16, #tpu.memory_space<vmem>>, vector<256x128xbf16>
    %cst_61 = arith.constant dense<0.000000e+00> : vector<128x128xf32>
    %116 = tpu.matmul %114, %115, %cst_61 {dimension_numbers = #tpu.dot_dimension_numbers<[1], [0], [0], [1], [0, 0, 1, 1], [], []>} : vector<128x256xbf16>, vector<256x128xbf16>, vector<128x128xf32> -> vector<128x128xf32>
    %c0_62 = arith.constant 0 : index
    %c640_63 = arith.constant 640 : index
    %117 = vector.load %arg3[%c0_62, %c640_63] : memref<1x768xf32, #tpu.memory_space<vmem>>, vector<1x128xf32>
    %118 = vector.broadcast %117 : vector<1x128xf32> to vector<128x128xf32>
    %119 = arith.addf %116, %118 : vector<128x128xf32>
    %c0_64 = arith.constant 0 : index
    %c0_65 = arith.constant 0 : index
    %120 = vector.load %arg6[%c0_64, %c0_65] : memref<128x128xf32, #tpu.memory_space<vmem>>, vector<128x128xf32>
    %121 = arith.mulf %120, %112 : vector<128x128xf32>
    %c0_66 = arith.constant 0 : index
    %c0_67 = arith.constant 0 : index
    %122 = vector.load %arg7[%c0_66, %c0_67] : memref<128x128xf32, #tpu.memory_space<vmem>>, vector<128x128xf32>
    %c64_i32_68 = arith.constant 64 : i32
    %123 = tpu.dynamic_rotate %112 by %c64_i32_68 dim 1 : vector<128x128xf32>, i32 -> vector<128x128xf32>
    %124 = arith.mulf %122, %123 : vector<128x128xf32>
    %125 = arith.addf %121, %124 : vector<128x128xf32>
    %126 = arith.truncf %125 : vector<128x128xf32> to vector<128x128xbf16>
    %127 = arith.truncf %119 : vector<128x128xf32> to vector<128x128xbf16>
    %c0_i32_69 = arith.constant 0 : i32
    %c64_i32_70 = arith.constant 64 : i32
    %128 = arith.muli %c0_i32_69, %c64_i32_70 : i32
    %129 = tpu.assume_multiple %128, 64 : i32
    %c0_71 = arith.constant 0 : index
    %130 = arith.index_cast %129 : i32 to index
    %c0_72 = arith.constant 0 : index
    %131 = vector.load %arg1[%c0_71, %130, %c0_72] : memref<1x128x256xbf16, #tpu.memory_space<vmem>>, vector<1x64x256xbf16>
    %132 = vector.shape_cast %131 : vector<1x64x256xbf16> to vector<64x256xbf16>
    %c0_73 = arith.constant 0 : index
    %c384 = arith.constant 384 : index
    %133 = vector.load %arg2[%c0_73, %c384] : memref<256x768xbf16, #tpu.memory_space<vmem>>, vector<256x128xbf16>
    %cst_74 = arith.constant dense<0.000000e+00> : vector<64x128xf32>
    %134 = tpu.matmul %132, %133, %cst_74 {dimension_numbers = #tpu.dot_dimension_numbers<[1], [0], [0], [1], [0, 0, 1, 1], [], []>} : vector<64x256xbf16>, vector<256x128xbf16>, vector<64x128xf32> -> vector<64x128xf32>
    %c0_75 = arith.constant 0 : index
    %c384_76 = arith.constant 384 : index
    %135 = vector.load %arg3[%c0_75, %c384_76] : memref<1x768xf32, #tpu.memory_space<vmem>>, vector<1x128xf32>
    %136 = vector.broadcast %135 : vector<1x128xf32> to vector<64x128xf32>
    %137 = arith.addf %134, %136 : vector<64x128xf32>
    %138 = arith.index_cast %129 : i32 to index
    %c0_77 = arith.constant 0 : index
    %139 = vector.load %arg6[%138, %c0_77] : memref<128x128xf32, #tpu.memory_space<vmem>>, vector<64x128xf32>
    %140 = arith.index_cast %129 : i32 to index
    %c0_78 = arith.constant 0 : index
    %141 = vector.load %arg7[%140, %c0_78] : memref<128x128xf32, #tpu.memory_space<vmem>>, vector<64x128xf32>
    %142 = arith.mulf %139, %137 : vector<64x128xf32>
    %c64_i32_79 = arith.constant 64 : i32
    %143 = tpu.dynamic_rotate %137 by %c64_i32_79 dim 1 : vector<64x128xf32>, i32 -> vector<64x128xf32>
    %144 = arith.mulf %141, %143 : vector<64x128xf32>
    %145 = arith.addf %142, %144 : vector<64x128xf32>
    %146 = arith.truncf %145 : vector<64x128xf32> to vector<64x128xbf16>
    %cst_80 = arith.constant dense<0.000000e+00> : vector<64x128xf32>
    %147 = tpu.matmul %146, %126, %cst_80 {dimension_numbers = #tpu.dot_dimension_numbers<[1], [1], [0], [0], [0, 0, 1, 0], [], []>} : vector<64x128xbf16>, vector<128x128xbf16>, vector<64x128xf32> -> vector<64x128xf32>
    %148 = tpu.iota {dimensions = array<i32: 0>} : vector<64x128xi32>
    %149 = vector.broadcast %129 : i32 to vector<64x128xi32>
    %150 = arith.addi %148, %149 : vector<64x128xi32>
    %151 = tpu.iota {dimensions = array<i32: 1>} : vector<64x128xi32>
    %152 = arith.cmpi sgt, %151, %150 : vector<64x128xi32>
    %cst_81 = arith.constant -1.000000e+30 : f32
    %153 = vector.broadcast %cst_81 : f32 to vector<64x128xf32>
    %154 = arith.select %152, %153, %147 : vector<64x128xi1>, vector<64x128xf32>
    %cst_82 = arith.constant dense<0xFF800000> : vector<64xf32>
    %155 = vector.multi_reduction <maximumf>, %154, %cst_82 [1] : vector<64x128xf32> to vector<64xf32>
    %156 = vector.shape_cast %155 : vector<64xf32> to vector<64x1xf32>
    %157 = vector.broadcast %156 : vector<64x1xf32> to vector<64x128xf32>
    %158 = arith.subf %154, %157 : vector<64x128xf32>
    %159 = math.exp %158 : vector<64x128xf32>
    %cst_83 = arith.constant dense<0.000000e+00> : vector<64xf32>
    %160 = vector.multi_reduction <add>, %159, %cst_83 [1] : vector<64x128xf32> to vector<64xf32>
    %161 = vector.shape_cast %160 : vector<64xf32> to vector<64x1xf32>
    %162 = arith.truncf %159 : vector<64x128xf32> to vector<64x128xbf16>
    %cst_84 = arith.constant dense<0.000000e+00> : vector<64x128xf32>
    %163 = tpu.matmul %162, %127, %cst_84 {dimension_numbers = #tpu.dot_dimension_numbers<[1], [0], [0], [1], [0, 0, 1, 1], [], []>} : vector<64x128xbf16>, vector<128x128xbf16>, vector<64x128xf32> -> vector<64x128xf32>
    %164 = tpu.reciprocal %161 {approx = true} : vector<64x1xf32> -> vector<64x1xf32>
    %165 = vector.broadcast %164 : vector<64x1xf32> to vector<64x128xf32>
    %166 = arith.mulf %163, %165 : vector<64x128xf32>
    %167 = arith.truncf %166 : vector<64x128xf32> to vector<64x128xbf16>
    %168 = arith.index_cast %129 : i32 to index
    %c128_85 = arith.constant 128 : index
    %169 = vector.load %arg9[%168, %c128_85] : memref<128x256xbf16, #tpu.memory_space<vmem>>, vector<64x128xbf16>
    tpu.vector_store %arg9[%168, %c128_85], %167 {strides = array<i32>} : memref<128x256xbf16, #tpu.memory_space<vmem>>, vector<64x128xbf16>,
    %c1_i32_86 = arith.constant 1 : i32
    %c64_i32_87 = arith.constant 64 : i32
    %170 = arith.muli %c1_i32_86, %c64_i32_87 : i32
    %171 = tpu.assume_multiple %170, 64 : i32
    %c0_88 = arith.constant 0 : index
    %172 = arith.index_cast %171 : i32 to index
    %c0_89 = arith.constant 0 : index
    %173 = vector.load %arg1[%c0_88, %172, %c0_89] : memref<1x128x256xbf16, #tpu.memory_space<vmem>>, vector<1x64x256xbf16>
    %174 = vector.shape_cast %173 : vector<1x64x256xbf16> to vector<64x256xbf16>
    %c0_90 = arith.constant 0 : index
    %c384_91 = arith.constant 384 : index
    %175 = vector.load %arg2[%c0_90, %c384_91] : memref<256x768xbf16, #tpu.memory_space<vmem>>, vector<256x128xbf16>
    %cst_92 = arith.constant dense<0.000000e+00> : vector<64x128xf32>
    %176 = tpu.matmul %174, %175, %cst_92 {dimension_numbers = #tpu.dot_dimension_numbers<[1], [0], [0], [1], [0, 0, 1, 1], [], []>} : vector<64x256xbf16>, vector<256x128xbf16>, vector<64x128xf32> -> vector<64x128xf32>
    %c0_93 = arith.constant 0 : index
    %c384_94 = arith.constant 384 : index
    %177 = vector.load %arg3[%c0_93, %c384_94] : memref<1x768xf32, #tpu.memory_space<vmem>>, vector<1x128xf32>
    %178 = vector.broadcast %177 : vector<1x128xf32> to vector<64x128xf32>
    %179 = arith.addf %176, %178 : vector<64x128xf32>
    %180 = arith.index_cast %171 : i32 to index
    %c0_95 = arith.constant 0 : index
    %181 = vector.load %arg6[%180, %c0_95] : memref<128x128xf32, #tpu.memory_space<vmem>>, vector<64x128xf32>
    %182 = arith.index_cast %171 : i32 to index
    %c0_96 = arith.constant 0 : index
    %183 = vector.load %arg7[%182, %c0_96] : memref<128x128xf32, #tpu.memory_space<vmem>>, vector<64x128xf32>
    %184 = arith.mulf %181, %179 : vector<64x128xf32>
    %c64_i32_97 = arith.constant 64 : i32
    %185 = tpu.dynamic_rotate %179 by %c64_i32_97 dim 1 : vector<64x128xf32>, i32 -> vector<64x128xf32>
    %186 = arith.mulf %183, %185 : vector<64x128xf32>
    %187 = arith.addf %184, %186 : vector<64x128xf32>
    %188 = arith.truncf %187 : vector<64x128xf32> to vector<64x128xbf16>
    %cst_98 = arith.constant dense<0.000000e+00> : vector<64x128xf32>
    %189 = tpu.matmul %188, %126, %cst_98 {dimension_numbers = #tpu.dot_dimension_numbers<[1], [1], [0], [0], [0, 0, 1, 0], [], []>} : vector<64x128xbf16>, vector<128x128xbf16>, vector<64x128xf32> -> vector<64x128xf32>
    %190 = tpu.iota {dimensions = array<i32: 0>} : vector<64x128xi32>
    %191 = vector.broadcast %171 : i32 to vector<64x128xi32>
    %192 = arith.addi %190, %191 : vector<64x128xi32>
    %193 = tpu.iota {dimensions = array<i32: 1>} : vector<64x128xi32>
    %194 = arith.cmpi sgt, %193, %192 : vector<64x128xi32>
    %cst_99 = arith.constant -1.000000e+30 : f32
    %195 = vector.broadcast %cst_99 : f32 to vector<64x128xf32>
    %196 = arith.select %194, %195, %189 : vector<64x128xi1>, vector<64x128xf32>
    %cst_100 = arith.constant dense<0xFF800000> : vector<64xf32>
    %197 = vector.multi_reduction <maximumf>, %196, %cst_100 [1] : vector<64x128xf32> to vector<64xf32>
    %198 = vector.shape_cast %197 : vector<64xf32> to vector<64x1xf32>
    %199 = vector.broadcast %198 : vector<64x1xf32> to vector<64x128xf32>
    %200 = arith.subf %196, %199 : vector<64x128xf32>
    %201 = math.exp %200 : vector<64x128xf32>
    %cst_101 = arith.constant dense<0.000000e+00> : vector<64xf32>
    %202 = vector.multi_reduction <add>, %201, %cst_101 [1] : vector<64x128xf32> to vector<64xf32>
    %203 = vector.shape_cast %202 : vector<64xf32> to vector<64x1xf32>
    %204 = arith.truncf %201 : vector<64x128xf32> to vector<64x128xbf16>
    %cst_102 = arith.constant dense<0.000000e+00> : vector<64x128xf32>
    %205 = tpu.matmul %204, %127, %cst_102 {dimension_numbers = #tpu.dot_dimension_numbers<[1], [0], [0], [1], [0, 0, 1, 1], [], []>} : vector<64x128xbf16>, vector<128x128xbf16>, vector<64x128xf32> -> vector<64x128xf32>
    %206 = tpu.reciprocal %203 {approx = true} : vector<64x1xf32> -> vector<64x1xf32>
    %207 = vector.broadcast %206 : vector<64x1xf32> to vector<64x128xf32>
    %208 = arith.mulf %205, %207 : vector<64x128xf32>
    %209 = arith.truncf %208 : vector<64x128xf32> to vector<64x128xbf16>
    %210 = arith.index_cast %171 : i32 to index
    %c128_103 = arith.constant 128 : index
    %211 = vector.load %arg9[%210, %c128_103] : memref<128x256xbf16, #tpu.memory_space<vmem>>, vector<64x128xbf16>
    tpu.vector_store %arg9[%210, %c128_103], %209 {strides = array<i32>} : memref<128x256xbf16, #tpu.memory_space<vmem>>, vector<64x128xbf16>,
    %c2_i32_104 = arith.constant 2 : i32
    %c0_105 = arith.constant 0 : index
    %c0_106 = arith.constant 0 : index
    %212 = vector.load %arg9[%c0_105, %c0_106] : memref<128x256xbf16, #tpu.memory_space<vmem>>, vector<128x256xbf16>
    %c0_107 = arith.constant 0 : index
    %c0_108 = arith.constant 0 : index
    %213 = vector.load %arg4[%c0_107, %c0_108] : memref<256x256xbf16, #tpu.memory_space<vmem>>, vector<256x256xbf16>
    %cst_109 = arith.constant dense<0.000000e+00> : vector<128x256xf32>
    %214 = tpu.matmul %212, %213, %cst_109 {dimension_numbers = #tpu.dot_dimension_numbers<[1], [0], [0], [1], [0, 0, 1, 1], [], []>} : vector<128x256xbf16>, vector<256x256xbf16>, vector<128x256xf32> -> vector<128x256xf32>
    %c0_110 = arith.constant 0 : index
    %c0_111 = arith.constant 0 : index
    %215 = vector.load %arg5[%c0_110, %c0_111] : memref<1x256xf32, #tpu.memory_space<vmem>>, vector<1x256xf32>
    %216 = vector.broadcast %215 : vector<1x256xf32> to vector<128x256xf32>
    %217 = arith.addf %214, %216 : vector<128x256xf32>
    %c0_112 = arith.constant 0 : index
    %c0_113 = arith.constant 0 : index
    %c0_114 = arith.constant 0 : index
    %218 = vector.load %arg8[%c0_112, %c0_113, %c0_114] : memref<1x128x256xf32, #tpu.memory_space<vmem>>, vector<1x128x256xf32>
    %219 = vector.shape_cast %218 : vector<1x128x256xf32> to vector<128x256xf32>
    %220 = vector.shape_cast %217 : vector<128x256xf32> to vector<1x128x256xf32>
    tpu.vector_store %arg8[%c0_112, %c0_113, %c0_114], %220 {strides = array<i32>} : memref<1x128x256xf32, #tpu.memory_space<vmem>>, vector<1x128x256xf32>,
    return
  }
  func.func @transform_0(%arg0: i32) -> (i32, i32, i32) {
    %c0_i32 = arith.constant 0 : i32
    %c0_i32_0 = arith.constant 0 : i32
    %c0_i32_1 = arith.constant 0 : i32
    return %arg0, %c0_i32, %c0_i32_0 : i32, i32, i32
  }
  func.func @transform_1(%arg0: i32) -> (i32, i32) {
    %c0_i32 = arith.constant 0 : i32
    %c0_i32_0 = arith.constant 0 : i32
    %c0_i32_1 = arith.constant 0 : i32
    return %c0_i32, %c0_i32_0 : i32, i32
  }
  func.func @transform_2(%arg0: i32) -> (i32, i32) {
    %c0_i32 = arith.constant 0 : i32
    %c0_i32_0 = arith.constant 0 : i32
    %c0_i32_1 = arith.constant 0 : i32
    return %c0_i32, %c0_i32_0 : i32, i32
  }
  func.func @transform_3(%arg0: i32) -> (i32, i32) {
    %c0_i32 = arith.constant 0 : i32
    %c0_i32_0 = arith.constant 0 : i32
    %c0_i32_1 = arith.constant 0 : i32
    return %c0_i32, %c0_i32_0 : i32, i32
  }
  func.func @transform_4(%arg0: i32) -> (i32, i32) {
    %c0_i32 = arith.constant 0 : i32
    %c0_i32_0 = arith.constant 0 : i32
    %c0_i32_1 = arith.constant 0 : i32
    return %c0_i32, %c0_i32_0 : i32, i32
  }
  func.func @transform_5(%arg0: i32) -> (i32, i32) {
    %c0_i32 = arith.constant 0 : i32
    %c0_i32_0 = arith.constant 0 : i32
    %c0_i32_1 = arith.constant 0 : i32
    return %c0_i32, %c0_i32_0 : i32, i32
  }
  func.func @transform_6(%arg0: i32) -> (i32, i32) {
    %c0_i32 = arith.constant 0 : i32
    %c0_i32_0 = arith.constant 0 : i32
    %c0_i32_1 = arith.constant 0 : i32
    return %c0_i32, %c0_i32_0 : i32, i32
  }
  func.func @transform_7(%arg0: i32) -> (i32, i32, i32) {
    %c0_i32 = arith.constant 0 : i32
    %c0_i32_0 = arith.constant 0 : i32
    %c0_i32_1 = arith.constant 0 : i32
    return %arg0, %c0_i32, %c0_i32_0 : i32, i32, i32
  }
}

</mosaic_0001>

<llo_original>
// kernel: tpu_custom_call.1
$region0: #{tpu_custom_call.1}
  #allocation0 [shape = 'u32[]', space=smem, size = 0x4, offset = 0x4, fixed_abs, tag = 'smem constant byte address 0x4 - core index']
  #allocation1 [shape = 'u32[144,128]{1,0:T(1,128)}', space=vmem, size = 0x12000, scoped, tag = 'internal scratch']
  #allocation2 [shape = 'bf16[128,256]{1,0:T(16,128)(2,1)}', space=vmem, size = 0x10000, scoped, tag = 'scratch operand']
  %s0 = inlined_call_operand.hbm [shape: bf16[2,128,256], index: 0, kind: input, shape index: {}]
  %s1 = inlined_call_operand.hbm [shape: bf16[256,768], index: 1, kind: input, shape index: {}]
  %s2 = inlined_call_operand.vmem [shape: f32[1,768], index: 2, kind: input, shape index: {}]
  %s3 = inlined_call_operand.hbm [shape: bf16[256,256], index: 3, kind: input, shape index: {}]
  %s4 = inlined_call_operand.vmem [shape: f32[1,256], index: 4, kind: input, shape index: {}]
  %s5 = inlined_call_operand.hbm [shape: f32[128,128], index: 5, kind: input, shape index: {}]
  %s6 = inlined_call_operand.hbm [shape: f32[128,128], index: 6, kind: input, shape index: {}]
  %s7 = inlined_call_operand.hbm [shape: f32[2,128,256], index: 7, kind: output, shape index: {}]
  %s8 = sld [smem:[#allocation0]]
  $region81: #{tpu_custom_call.1} parent=0
    _
  %s10 = ssub.s32 1, %s8
  %s11 = scalar_select 0, %s10, %s8
  $region1: #{tpu_custom_call.1} parent=0
    #allocation3 [shape = 'u8[131072]{0}', space=vmem, size = 0x20000, scoped, tag = 'input window, operand 0']
    #allocation4 [shape = 's32[2]{0}', space=sflag, size = 0x8, scoped, tag = 'scoped memory for tpu_custom_call.1']
    #allocation5 [shape = 's32[2]{0}', space=sflag, size = 0x8, scoped, tag = 'scoped memory for tpu_custom_call.1']
    #allocation6 [shape = 'u8[393216]{0}', space=vmem, size = 0x60000, scoped, tag = 'input window, operand 1, single buffered']
    #allocation7 [shape = 's32[1]{0}', space=sflag, size = 0x4, scoped, tag = 'scoped memory for tpu_custom_call.1']
    #allocation8 [shape = 'u8[131072]{0}', space=vmem, size = 0x20000, scoped, tag = 'input window, operand 3, single buffered']
    #allocation9 [shape = 'u8[65536]{0}', space=vmem, size = 0x10000, scoped, tag = 'input window, operand 5, single buffered']
    #allocation10 [shape = 's32[1]{0}', space=sflag, size = 0x4, scoped, tag = 'scoped memory for tpu_custom_call.1']
    #allocation11 [shape = 'u8[65536]{0}', space=vmem, size = 0x10000, scoped, tag = 'input window, operand 6, single buffered']
    #allocation12 [shape = 'u8[262144]{0}', space=vmem, size = 0x40000, scoped, tag = 'output window, operand 0']
    %12 = vsyncpa [#allocation4], 0
    %s13 = scalar_lea.sflag [#allocation4], 1
    %14 = vsyncpa %s13, 0
    %15 = vsyncpa [#allocation7], 0
    %16 = vsyncpa [#allocation10], 0
    %17 = vsyncpa [#allocation5], 0
    %s18 = scalar_lea.sflag [#allocation5], 1
    %19 = vsyncpa %s18, 0
    loop: start=0, step=1, limit=4
    $region2: #{tpu_custom_call.1} parent=1 // loop_pre_header
      _
    $region3: #{tpu_custom_call.1} parent=1 // loop_header
      %s21 = sphi 0, %s25
      %p22 = scmp.ge.s32.totalorder %s21, 4
      %s31 = sphi 0, %s33
      %s34 = sphi 0, %s31
      %s35 = sphi 0, %s34
      %s51 = sphi 0, %s35
      %s55 = sphi 0, %s55
      %s57 = sphi 0, %s55
      %s58 = sphi 0, %s57
      %s72 = sphi 0, %s58
      %s76 = sphi 0, %s76
      %s78 = sphi 0, %s76
      %s79 = sphi 0, %s78
      %s93 = sphi 0, %s79
      %s97 = sphi 0, %s97
      %s99 = sphi 0, %s97
      %s100 = sphi 0, %s99
      %s114 = sphi 0, %s100
      %s118 = sphi 0, %s118
      %s120 = sphi 0, %s118
      %s121 = sphi 0, %s120
      %s135 = sphi 0, %s121
      %s139 = sphi 0, %s139
      %s141 = sphi 0, %s139
      %s142 = sphi 0, %s141
      %s156 = sphi 0, %s142
      %s160 = sphi 0, %s160
      %s162 = sphi 0, %s160
      %s163 = sphi 0, %s162
      %s177 = sphi 0, %s163
      %s183 = sphi 0, %s185
      %s186 = sphi 0, %s183
      %s187 = sphi 0, %s186
      %s203 = sphi 0, %s187
    $region4: #{tpu_custom_call.1} parent=1 // loop_header_branch
      %24 = sbr.rel (%p22) target = $region8
    $region5: #{tpu_custom_call.1} parent=1 // loop_body
      %s26 = ssub.s32 %s21, 1
      %s27 = ssub.s32 %s21, 2
      %s28 = sadd.s32 %s21, 1
      %s29 = ssub.s32 %s21, %s28
      %p30 = scmp.eq.s32.totalorder %s29, 0
      %s32 = sadd.s32 %s31, 1
      %s33 = scalar_select %p30, %s31, %s32
      %p36 = pneg %p30
      %p37 = scmp.eq.s32.totalorder %s21, 1
      %p38 = por %p36, %p37
      %p39 = scmp.ne.s32.totalorder %s31, %s34
      %p40 = scmp.eq.s32.totalorder %s21, 0
      %p41 = por %p39, %p40
      %p42 = scmp.ne.s32.totalorder %s31, %s34
      %p43 = scmp.eq.s32.totalorder %s26, 1
      %p44 = por %p42, %p43
      %p45 = scmp.ne.s32.totalorder %s34, %s35
      %p46 = scmp.eq.s32.totalorder %s26, 0
      %p47 = por %p45, %p46
      %p48 = scmp.ne.s32.totalorder %s34, %s35
      %p49 = scmp.eq.s32.totalorder %s27, 1
      %p50 = por %p48, %p49
      %p52 = scmp.ne.s32.totalorder %s35, %s51
      %p53 = scmp.eq.s32.totalorder %s27, 0
      %p54 = por %p52, %p53
      %s56 = sadd.s32 %s55, 1
      %p59 = scmp.eq.s32.totalorder %s21, 1
      %p60 = scmp.ne.s32.totalorder %s55, %s57
      %p61 = scmp.eq.s32.totalorder %s21, 0
      %p62 = por %p60, %p61
      %p63 = scmp.ne.s32.totalorder %s55, %s57
      %p64 = scmp.eq.s32.totalorder %s26, 1
      %p65 = por %p63, %p64
      %p66 = scmp.ne.s32.totalorder %s57, %s58
      %p67 = scmp.eq.s32.totalorder %s26, 0
      %p68 = por %p66, %p67
      %p69 = scmp.ne.s32.totalorder %s57, %s58
      %p70 = scmp.eq.s32.totalorder %s27, 1
      %p71 = por %p69, %p70
      %p73 = scmp.ne.s32.totalorder %s58, %s72
      %p74 = scmp.eq.s32.totalorder %s27, 0
      %p75 = por %p73, %p74
      %s77 = sadd.s32 %s76, 1
      %p80 = scmp.eq.s32.totalorder %s21, 1
      %p81 = scmp.ne.s32.totalorder %s76, %s78
      %p82 = scmp.eq.s32.totalorder %s21, 0
      %p83 = por %p81, %p82
      %p84 = scmp.ne.s32.totalorder %s76, %s78
      %p85 = scmp.eq.s32.totalorder %s26, 1
      %p86 = por %p84, %p85
      %p87 = scmp.ne.s32.totalorder %s78, %s79
      %p88 = scmp.eq.s32.totalorder %s26, 0
      %p89 = por %p87, %p88
      %p90 = scmp.ne.s32.totalorder %s78, %s79
      %p91 = scmp.eq.s32.totalorder %s27, 1
      %p92 = por %p90, %p91
      %p94 = scmp.ne.s32.totalorder %s79, %s93
      %p95 = scmp.eq.s32.totalorder %s27, 0
      %p96 = por %p94, %p95
      %s98 = sadd.s32 %s97, 1
      %p101 = scmp.eq.s32.totalorder %s21, 1
      %p102 = scmp.ne.s32.totalorder %s97, %s99
      %p103 = scmp.eq.s32.totalorder %s21, 0
      %p104 = por %p102, %p103
      %p105 = scmp.ne.s32.totalorder %s97, %s99
      %p106 = scmp.eq.s32.totalorder %s26, 1
      %p107 = por %p105, %p106
      %p108 = scmp.ne.s32.totalorder %s99, %s100
      %p109 = scmp.eq.s32.totalorder %s26, 0
      %p110 = por %p108, %p109
      %p111 = scmp.ne.s32.totalorder %s99, %s100
      %p112 = scmp.eq.s32.totalorder %s27, 1
      %p113 = por %p111, %p112
      %p115 = scmp.ne.s32.totalorder %s100, %s114
      %p116 = scmp.eq.s32.totalorder %s27, 0
      %p117 = por %p115, %p116
      %s119 = sadd.s32 %s118, 1
      %p122 = scmp.eq.s32.totalorder %s21, 1
      %p123 = scmp.ne.s32.totalorder %s118, %s120
      %p124 = scmp.eq.s32.totalorder %s21, 0
      %p125 = por %p123, %p124
      %p126 = scmp.ne.s32.totalorder %s118, %s120
      %p127 = scmp.eq.s32.totalorder %s26, 1
      %p128 = por %p126, %p127
      %p129 = scmp.ne.s32.totalorder %s120, %s121
      %p130 = scmp.eq.s32.totalorder %s26, 0
      %p131 = por %p129, %p130
      %p132 = scmp.ne.s32.totalorder %s120, %s121
      %p133 = scmp.eq.s32.totalorder %s27, 1
      %p134 = por %p132, %p133
      %p136 = scmp.ne.s32.totalorder %s121, %s135
      %p137 = scmp.eq.s32.totalorder %s27, 0
      %p138 = por %p136, %p137
      %s140 = sadd.s32 %s139, 1
      %p143 = scmp.eq.s32.totalorder %s21, 1
      %p144 = scmp.ne.s32.totalorder %s139, %s141
      %p145 = scmp.eq.s32.totalorder %s21, 0
      %p146 = por %p144, %p145
      %p147 = scmp.ne.s32.totalorder %s139, %s141
      %p148 = scmp.eq.s32.totalorder %s26, 1
      %p149 = por %p147, %p148
      %p150 = scmp.ne.s32.totalorder %s141, %s142
      %p151 = scmp.eq.s32.totalorder %s26, 0
      %p152 = por %p150, %p151
      %p153 = scmp.ne.s32.totalorder %s141, %s142
      %p154 = scmp.eq.s32.totalorder %s27, 1
      %p155 = por %p153, %p154
      %p157 = scmp.ne.s32.totalorder %s142, %s156
      %p158 = scmp.eq.s32.totalorder %s27, 0
      %p159 = por %p157, %p158
      %s161 = sadd.s32 %s160, 1
      %p164 = scmp.eq.s32.totalorder %s21, 1
      %p165 = scmp.ne.s32.totalorder %s160, %s162
      %p166 = scmp.eq.s32.totalorder %s21, 0
      %p167 = por %p165, %p166
      %p168 = scmp.ne.s32.totalorder %s160, %s162
      %p169 = scmp.eq.s32.totalorder %s26, 1
      %p170 = por %p168, %p169
      %p171 = scmp.ne.s32.totalorder %s162, %s163
      %p172 = scmp.eq.s32.totalorder %s26, 0
      %p173 = por %p171, %p172
      %p174 = scmp.ne.s32.totalorder %s162, %s163
      %p175 = scmp.eq.s32.totalorder %s27, 1
      %p176 = por %p174, %p175
      %p178 = scmp.ne.s32.totalorder %s163, %s177
      %p179 = scmp.eq.s32.totalorder %s27, 0
      %p180 = por %p178, %p179
      %s181 = ssub.s32 %s21, %s28
      %p182 = scmp.eq.s32.totalorder %s181, 0
      %s184 = sadd.s32 %s183, 1
      %s185 = scalar_select %p182, %s183, %s184
      %p188 = pneg %p182
      %p189 = scmp.eq.s32.totalorder %s21, 1
      %p190 = por %p188, %p189
      %p191 = scmp.ne.s32.totalorder %s183, %s186
      %p192 = scmp.eq.s32.totalorder %s21, 0
      %p193 = por %p191, %p192
      %p194 = scmp.ne.s32.totalorder %s183, %s186
      %p195 = scmp.eq.s32.totalorder %s26, 1
      %p196 = por %p194, %p195
      %p197 = scmp.ne.s32.totalorder %s186, %s187
      %p198 = scmp.eq.s32.totalorder %s26, 0
      %p199 = por %p197, %p198
      %p200 = scmp.ne.s32.totalorder %s186, %s187
      %p201 = scmp.eq.s32.totalorder %s27, 1
      %p202 = por %p200, %p201
      %p204 = scmp.ne.s32.totalorder %s187, %s203
      %p205 = scmp.eq.s32.totalorder %s27, 0
      %p206 = por %p204, %p205
      %p207 = scmp.le.s32.totalorder 1, %s21
      %p208 = scmp.lt.s32.totalorder %s21, 3
      %p209 = pnand %p207, %p208
      %p210 = pneg %p209
      // Predicated region
      $region9: #{tpu_custom_call.1} parent=5 // pred_check
        _
      $region10: #{tpu_custom_call.1} parent=5 // pred_check_branch
        %212 = sbr.rel (%p209) target = $region12
      $region11: #{tpu_custom_call.1} parent=5 // pred_region
        %s213 = ssub.s32 %s21, 1
        // Predicated region
        $region13: #{tpu_custom_call.1} parent=11 // pred_check
          %p214 = pneg %p68
        $region14: #{tpu_custom_call.1} parent=11 // pred_check_branch
          %216 = sbr.rel (%p214) target = $region16
        $region15: #{tpu_custom_call.1} parent=11 // pred_region
          %s218 = ssub.s32 12288, 12288
          %219 = vsyncadd [#allocation7], %s218
          %s220 = sshll.u32 [#allocation6], 4
          %s221 = int_to_ptr.vmem [resolvable:$true] %s220
          %226 = dma.hbm_to_vmem [thread:$0]  %s1, 12288, %s221, [#allocation7], 384, 384, 24
        $region16: #{tpu_custom_call.1} parent=11 // pred_fallthru
          _
        // Predicated region
        $region17: #{tpu_custom_call.1} parent=11 // pred_check
          %p227 = pneg %p89
        $region18: #{tpu_custom_call.1} parent=11 // pred_check_branch
          %229 = sbr.rel (%p227) target = $region20
        $region19: #{tpu_custom_call.1} parent=11 // pred_region
          _
        $region20: #{tpu_custom_call.1} parent=11 // pred_fallthru
          _
        // Predicated region
        $region21: #{tpu_custom_call.1} parent=11 // pred_check
          %p230 = pneg %p110
        $region22: #{tpu_custom_call.1} parent=11 // pred_check_branch
          %232 = sbr.rel (%p230) target = $region24
        $region23: #{tpu_custom_call.1} parent=11 // pred_region
          %s234 = ssub.s32 4096, 4096
          %235 = vsyncadd [#allocation7], %s234
          %s236 = sshll.u32 [#allocation8], 4
          %s237 = int_to_ptr.vmem [resolvable:$true] %s236
          %242 = dma.hbm_to_vmem [thread:$0]  %s3, 4096, %s237, [#allocation7], 128, 128, 8
        $region24: #{tpu_custom_call.1} parent=11 // pred_fallthru
          _
        // Predicated region
        $region25: #{tpu_custom_call.1} parent=11 // pred_check
          %p243 = pneg %p131
        $region26: #{tpu_custom_call.1} parent=11 // pred_check_branch
          %245 = sbr.rel (%p243) target = $region28
        $region27: #{tpu_custom_call.1} parent=11 // pred_region
          _
        $region28: #{tpu_custom_call.1} parent=11 // pred_fallthru
          _
        // Predicated region
        $region29: #{tpu_custom_call.1} parent=11 // pred_check
          %p246 = pneg %p152
        $region30: #{tpu_custom_call.1} parent=11 // pred_check_branch
          %248 = sbr.rel (%p246) target = $region32
        $region31: #{tpu_custom_call.1} parent=11 // pred_region
          %s250 = ssub.s32 2048, 2048
          %251 = vsyncadd [#allocation10], %s250
          %s252 = sshll.u32 [#allocation9], 4
          %s253 = int_to_ptr.vmem [resolvable:$true] %s252
          %258 = dma.hbm_to_vmem [thread:$0]  %s5, 2048, %s253, [#allocation10], 128, 128, 8
        $region32: #{tpu_custom_call.1} parent=11 // pred_fallthru
          _
        // Predicated region
        $region33: #{tpu_custom_call.1} parent=11 // pred_check
          %p259 = pneg %p173
        $region34: #{tpu_custom_call.1} parent=11 // pred_check_branch
          %261 = sbr.rel (%p259) target = $region36
        $region35: #{tpu_custom_call.1} parent=11 // pred_region
          %s263 = ssub.s32 2048, 2048
          %264 = vsyncadd [#allocation10], %s263
          %s265 = sshll.u32 [#allocation11], 4
          %s266 = int_to_ptr.vmem [resolvable:$true] %s265
          %271 = dma.hbm_to_vmem [thread:$0]  %s6, 2048, %s266, [#allocation10], 128, 128, 8
        $region36: #{tpu_custom_call.1} parent=11 // pred_fallthru
          _
      $region12: #{tpu_custom_call.1} parent=5 // pred_fallthru
        _
      %p272 = scmp.lt.s32.totalorder %s21, 2
      // Predicated region
      $region37: #{tpu_custom_call.1} parent=5 // pred_check
        %p273 = pneg %p272
      $region38: #{tpu_custom_call.1} parent=5 // pred_check_branch
        %275 = sbr.rel (%p273) target = $region40
      $region39: #{tpu_custom_call.1} parent=5 // pred_region
        // Predicated region
        $region41: #{tpu_custom_call.1} parent=39 // pred_check
          %p276 = pneg %p41
        $region42: #{tpu_custom_call.1} parent=39 // pred_check_branch
          %278 = sbr.rel (%p276) target = $region44
        $region43: #{tpu_custom_call.1} parent=39 // pred_region
          %s279 = sand.u32 %s31, 1
          %s280 = scalar_lea.sflag [#allocation4], %s279
          %s281 = sand.u32 %s31, 1
          %s282 = smul.addr %s281, 128
          %s283 = scalar_lea.vmem [#allocation3], %s282
          %s285 = ssub.s32 2048, 2048
          %286 = vsyncadd %s280, %s285
          %s287 = smul.addr %s21, 32
          %s288 = smul.addr %s287, 64
          %s289 = scalar_lea.hbm %s0, %s288
          %s290 = sshll.u32 %s283, 4
          %s291 = int_to_ptr.vmem [resolvable:$true] %s290
          %296 = dma.hbm_to_vmem [thread:$0]  %s289, 2048, %s291, %s280, 128, 128, 8
        $region44: #{tpu_custom_call.1} parent=39 // pred_fallthru
          _
      $region40: #{tpu_custom_call.1} parent=5 // pred_fallthru
        _
      %p297 = scmp.le.s32.totalorder 1, %s21
      %p298 = scmp.lt.s32.totalorder %s21, 3
      %p299 = pnand %p297, %p298
      %p300 = pneg %p299
      // Predicated region
      $region45: #{tpu_custom_call.1} parent=5 // pred_check
        _
      $region46: #{tpu_custom_call.1} parent=5 // pred_check_branch
        %302 = sbr.rel (%p299) target = $region48
      $region47: #{tpu_custom_call.1} parent=5 // pred_region
        %s303 = ssub.s32 %s21, 1
        %s304 = sand.u32 %s34, 1
        %s305 = scalar_lea.sflag [#allocation4], %s304
        %s306 = sand.u32 %s34, 1
        %s307 = smul.addr %s306, 128
        %s308 = scalar_lea.vmem [#allocation3], %s307
        // Predicated region
        $region49: #{tpu_custom_call.1} parent=47 // pred_check
          %p309 = pneg %p47
        $region50: #{tpu_custom_call.1} parent=47 // pred_check_branch
          %311 = sbr.rel (%p309) target = $region52
        $region51: #{tpu_custom_call.1} parent=47 // pred_region
          %312 = dma.done %s305, 2048
        $region52: #{tpu_custom_call.1} parent=47 // pred_fallthru
          _
        // Predicated region
        $region53: #{tpu_custom_call.1} parent=47 // pred_check
          %p313 = pneg %p68
        $region54: #{tpu_custom_call.1} parent=47 // pred_check_branch
          %315 = sbr.rel (%p313) target = $region56
        $region55: #{tpu_custom_call.1} parent=47 // pred_region
          %316 = dma.done [#allocation7], 12288
        $region56: #{tpu_custom_call.1} parent=47 // pred_fallthru
          _
        // Predicated region
        $region57: #{tpu_custom_call.1} parent=47 // pred_check
          %p317 = pneg %p110
        $region58: #{tpu_custom_call.1} parent=47 // pred_check_branch
          %319 = sbr.rel (%p317) target = $region60
        $region59: #{tpu_custom_call.1} parent=47 // pred_region
          %320 = dma.done [#allocation7], 4096
        $region60: #{tpu_custom_call.1} parent=47 // pred_fallthru
          _
        // Predicated region
        $region61: #{tpu_custom_call.1} parent=47 // pred_check
          %p321 = pneg %p152
        $region62: #{tpu_custom_call.1} parent=47 // pred_check_branch
          %323 = sbr.rel (%p321) target = $region64
        $region63: #{tpu_custom_call.1} parent=47 // pred_region
          %324 = dma.done [#allocation10], 2048
        $region64: #{tpu_custom_call.1} parent=47 // pred_fallthru
          _
        // Predicated region
        $region65: #{tpu_custom_call.1} parent=47 // pred_check
          %p325 = pneg %p173
        $region66: #{tpu_custom_call.1} parent=47 // pred_check_branch
          %327 = sbr.rel (%p325) target = $region68
        $region67: #{tpu_custom_call.1} parent=47 // pred_region
          %328 = dma.done [#allocation10], 2048
        $region68: #{tpu_custom_call.1} parent=47 // pred_fallthru
          _
        %s329 = sand.u32 %s34, 1
        %s330 = scalar_lea.sflag [#allocation4], %s329
        %s331 = sand.u32 %s34, 1
        %s332 = smul.addr %s331, 128
        %s333 = scalar_lea.vmem [#allocation3], %s332
        %p334 = pneg %p47
        %p335 = pneg %p44
        %p336 = pneg %p68
        %p337 = pneg %p65
        %p338 = pneg %p89
        %p339 = pneg %p86
        %p340 = pneg %p110
        %p341 = pneg %p107
        %p342 = pneg %p131
        %p343 = pneg %p128
        %p344 = pneg %p152
        %p345 = pneg %p149
        %p346 = pneg %p173
        %p347 = pneg %p170
        %p348 = pneg %p199
        %p349 = pneg %p196
        %s350 = sand.u32 %s186, 1
        %s351 = scalar_lea.sflag [#allocation5], %s350
        %s352 = sand.u32 %s186, 1
        %s353 = smul.addr %s352, 256
        %s354 = scalar_lea.vmem [#allocation12], %s353
        %v356 = vld [vmem:[%s308] sm:$0xff]
        %v357 = vld [vmem:[%s308 + $0x8] sm:$0xff]
        %v358 = vld [vmem:[%s308 + $0x10] sm:$0xff]
        %v359 = vld [vmem:[%s308 + $0x18] sm:$0xff]
        %v360 = vld [vmem:[%s308 + $0x20] sm:$0xff]
        %v361 = vld [vmem:[%s308 + $0x28] sm:$0xff]
        %v362 = vld [vmem:[%s308 + $0x30] sm:$0xff]
        %v363 = vld [vmem:[%s308 + $0x38] sm:$0xff]
        %v364 = vld [vmem:[%s308 + $0x40] sm:$0xff]
        %v365 = vld [vmem:[%s308 + $0x48] sm:$0xff]
        %v366 = vld [vmem:[%s308 + $0x50] sm:$0xff]
        %v367 = vld [vmem:[%s308 + $0x58] sm:$0xff]
        %v368 = vld [vmem:[%s308 + $0x60] sm:$0xff]
        %v369 = vld [vmem:[%s308 + $0x68] sm:$0xff]
        %v370 = vld [vmem:[%s308 + $0x70] sm:$0xff]
        %v371 = vld [vmem:[%s308 + $0x78] sm:$0xff]
        %v372 = vld [vmem:[#allocation6 + $0x4] sm:$0xf]
        %v373 = vld [vmem:[#allocation6 + $0x1c] sm:$0xf]
        %v374 = vld [vmem:[#allocation6 + $0x34] sm:$0xf]
        %v375 = vld [vmem:[#allocation6 + $0x4c] sm:$0xf]
        %v376 = vld [vmem:[#allocation6 + $0x64] sm:$0xf]
        %v377 = vld [vmem:[#allocation6 + $0x7c] sm:$0xf]
        %v378 = vld [vmem:[#allocation6 + $0x94] sm:$0xf]
        %v379 = vld [vmem:[#allocation6 + $0xac] sm:$0xf]
        %v380 = vld [vmem:[#allocation6 + $0xc4] sm:$0xf]
        %v381 = vld [vmem:[#allocation6 + $0xdc] sm:$0xf]
        %v382 = vld [vmem:[#allocation6 + $0xf4] sm:$0xf]
        %v383 = vld [vmem:[#allocation6 + $0x10c] sm:$0xf]
        %v384 = vld [vmem:[#allocation6 + $0x124] sm:$0xf]
        %v385 = vld [vmem:[#allocation6 + $0x13c] sm:$0xf]
        %v386 = vld [vmem:[#allocation6 + $0x154] sm:$0xf]
        %v387 = vld [vmem:[#allocation6 + $0x16c] sm:$0xf]
        %v388 = vld [vmem:[#allocation6 + $0x184] sm:$0xf]
        %v389 = vld [vmem:[#allocation6 + $0x19c] sm:$0xf]
        %v390 = vld [vmem:[#allocation6 + $0x1b4] sm:$0xf]
        %v391 = vld [vmem:[#allocation6 + $0x1cc] sm:$0xf]
        %v392 = vld [vmem:[#allocation6 + $0x1e4] sm:$0xf]
        %v393 = vld [vmem:[#allocation6 + $0x1fc] sm:$0xf]
        %v394 = vld [vmem:[#allocation6 + $0x214] sm:$0xf]
        %v395 = vld [vmem:[#allocation6 + $0x22c] sm:$0xf]
        %v396 = vld [vmem:[#allocation6 + $0x244] sm:$0xf]
        %v397 = vld [vmem:[#allocation6 + $0x25c] sm:$0xf]
        %v398 = vld [vmem:[#allocation6 + $0x274] sm:$0xf]
        %v399 = vld [vmem:[#allocation6 + $0x28c] sm:$0xf]
        %v400 = vld [vmem:[#allocation6 + $0x2a4] sm:$0xf]
        %v401 = vld [vmem:[#allocation6 + $0x2bc] sm:$0xf]
        %v402 = vld [vmem:[#allocation6 + $0x2d4] sm:$0xf]
        %v403 = vld [vmem:[#allocation6 + $0x2ec] sm:$0xf]
        %v404 = vld [vmem:[%s2 + $0x1] sm:$0x1]
        %v406 = vlaneseq
        %v407 = vshrl.u32 %v406, 7
        %v408 = vsub.s32 0, %v407
        %v409 = vrot.slane %v404, %v408
        %v427 = vunpack.c.l.b16 %v356
        %v428 = vunpack.c.h.b16 %v356
        %v429 = vunpack.c.l.b16 %v357
        %v430 = vunpack.c.h.b16 %v357
        %v431 = vunpack.c.l.b16 %v358
        %v432 = vunpack.c.h.b16 %v358
        %v433 = vunpack.c.l.b16 %v359
        %v434 = vunpack.c.h.b16 %v359
        %v435 = vunpack.c.l.b16 %v360
        %v436 = vunpack.c.h.b16 %v360
        %v437 = vunpack.c.l.b16 %v361
        %v438 = vunpack.c.h.b16 %v361
        %v439 = vunpack.c.l.b16 %v362
        %v440 = vunpack.c.h.b16 %v362
        %v441 = vunpack.c.l.b16 %v363
        %v442 = vunpack.c.h.b16 %v363
        %v443 = vunpack.c.l.b16 %v364
        %v444 = vunpack.c.h.b16 %v364
        %v445 = vunpack.c.l.b16 %v365
        %v446 = vunpack.c.h.b16 %v365
        %v447 = vunpack.c.l.b16 %v366
        %v448 = vunpack.c.h.b16 %v366
        %v449 = vunpack.c.l.b16 %v367
        %v450 = vunpack.c.h.b16 %v367
        %v451 = vunpack.c.l.b16 %v368
        %v452 = vunpack.c.h.b16 %v368
        %v453 = vunpack.c.l.b16 %v369
        %v454 = vunpack.c.h.b16 %v369
        %v455 = vunpack.c.l.b16 %v370
        %v456 = vunpack.c.h.b16 %v370
        %v457 = vunpack.c.l.b16 %v371
        %v458 = vunpack.c.h.b16 %v371
        %v459 = vpack.c.b16 %v429, %v427
        %v460 = vpack.c.b16 %v430, %v428
        %v461 = vpack.c.b16 %v433, %v431
        %v462 = vpack.c.b16 %v434, %v432
        %v463 = vpack.c.b16 %v437, %v435
        %v464 = vpack.c.b16 %v438, %v436
        %v465 = vpack.c.b16 %v441, %v439
        %v466 = vpack.c.b16 %v442, %v440
        %v467 = vpack.c.b16 %v445, %v443
        %v468 = vpack.c.b16 %v446, %v444
        %v469 = vpack.c.b16 %v449, %v447
        %v470 = vpack.c.b16 %v450, %v448
        %v471 = vpack.c.b16 %v453, %v451
        %v472 = vpack.c.b16 %v454, %v452
        %v473 = vpack.c.b16 %v457, %v455
        %v474 = vpack.c.b16 %v458, %v456
        %v523 = vunpack.c.l.b16 %v372
        %v524 = vunpack.c.l.b16 %v373
        %v525 = vunpack.c.l.b16 %v374
        %v526 = vunpack.c.l.b16 %v375
        %v527 = vunpack.c.l.b16 %v376
        %v528 = vunpack.c.l.b16 %v377
        %v529 = vunpack.c.l.b16 %v378
        %v530 = vunpack.c.l.b16 %v379
        %v531 = vunpack.c.l.b16 %v380
        %v532 = vunpack.c.l.b16 %v381
        %v533 = vunpack.c.l.b16 %v382
        %v534 = vunpack.c.l.b16 %v383
        %v535 = vunpack.c.l.b16 %v384
        %v536 = vunpack.c.l.b16 %v385
        %v537 = vunpack.c.l.b16 %v386
        %v538 = vunpack.c.l.b16 %v387
        %v539 = vunpack.c.l.b16 %v388
        %v540 = vunpack.c.l.b16 %v389
        %v541 = vunpack.c.l.b16 %v390
        %v542 = vunpack.c.l.b16 %v391
        %v543 = vunpack.c.l.b16 %v392
        %v544 = vunpack.c.l.b16 %v393
        %v545 = vunpack.c.l.b16 %v394
        %v546 = vunpack.c.l.b16 %v395
        %v547 = vunpack.c.l.b16 %v396
        %v548 = vunpack.c.l.b16 %v397
        %v549 = vunpack.c.l.b16 %v398
        %v550 = vunpack.c.l.b16 %v399
        %v551 = vunpack.c.l.b16 %v400
        %v552 = vunpack.c.l.b16 %v401
        %v553 = vunpack.c.l.b16 %v402
        %v554 = vunpack.c.l.b16 %v403
        %v555 = vpack.c.b16 %v524, %v523
        %v556 = vpack.c.b16 %v526, %v525
        %v557 = vpack.c.b16 %v528, %v527
        %v558 = vpack.c.b16 %v530, %v529
        %v559 = vpack.c.b16 %v532, %v531
        %v560 = vpack.c.b16 %v534, %v533
        %v561 = vpack.c.b16 %v536, %v535
        %v562 = vpack.c.b16 %v538, %v537
        %v563 = vpack.c.b16 %v540, %v539
        %v564 = vpack.c.b16 %v542, %v541
        %v565 = vpack.c.b16 %v544, %v543
        %v566 = vpack.c.b16 %v546, %v545
        %v567 = vpack.c.b16 %v548, %v547
        %v568 = vpack.c.b16 %v550, %v549
        %v569 = vpack.c.b16 %v552, %v551
        %v570 = vpack.c.b16 %v554, %v553
        %587 = vmatprep.subr.bf16.mxu0 0
        %588 = vmatpush1.bf16.msra.mxu0 %v555
        %589 = vmatprep.subr.bf16.mxu0 0
        %590 = vmatpush1.bf16.msra.mxu0 %v556
        %591 = vmatprep.subr.bf16.mxu0 0
        %592 = vmatpush1.bf16.msra.mxu0 %v557
        %593 = vmatprep.subr.bf16.mxu0 0
        %594 = vmatpush1.bf16.msra.mxu0 %v558
        %595 = vmatprep.subr.bf16.mxu0 0
        %596 = vmatpush1.bf16.msra.mxu0 %v559
        %597 = vmatprep.subr.bf16.mxu0 0
        %598 = vmatpush1.bf16.msra.mxu0 %v560
        %599 = vmatprep.subr.bf16.mxu0 0
        %600 = vmatpush1.bf16.msra.mxu0 %v561
        %601 = vmatprep.subr.bf16.mxu0 0
        %602 = vmatpush1.bf16.msra.mxu0 %v562
        %603 = vmatprep.subr.bf16.mxu0 0
        %604 = vmatpush1.bf16.msra.mxu0 %v563
        %605 = vmatprep.subr.bf16.mxu0 0
        %606 = vmatpush1.bf16.msra.mxu0 %v564
        %607 = vmatprep.subr.bf16.mxu0 0
        %608 = vmatpush1.bf16.msra.mxu0 %v565
        %609 = vmatprep.subr.bf16.mxu0 0
        %610 = vmatpush1.bf16.msra.mxu0 %v566
        %611 = vmatprep.subr.bf16.mxu0 0
        %612 = vmatpush1.bf16.msra.mxu0 %v567
        %613 = vmatprep.subr.bf16.mxu0 0
        %614 = vmatpush1.bf16.msra.mxu0 %v568
        %615 = vmatprep.subr.bf16.mxu0 0
        %616 = vmatpush1.bf16.msra.mxu0 %v569
        %617 = vmatprep.subr.bf16.mxu0 0
        %618 = vmatpush1.bf16.msra.mxu0 %v570
        %619 = vmatprep.mubr.bf16.mxu0 %v460
        %620 = vmatmul.mubr.bf16.gmra.mrb[0].mxu0 %v459
        %v621 = vpop.f32.mrb[0].mxu0
        %v622 = vadd.f32 %v409, %v621
        %v623 = vpop.f32.mrb[0].mxu0
        %v624 = vpop.f32.mrb[0].mxu0
        %v625 = vadd.f32 %v409, %v624
        %v626 = vpop.f32.mrb[0].mxu0
        %627 = vmatprep.mubr.bf16.mxu0 %v462
        %628 = vmatmul.mubr.bf16.gmra.mrb[0].mxu0 %v461
        %v629 = vpop.f32.mrb[0].mxu0
        %v630 = vadd.f32 %v409, %v629
        %v631 = vpop.f32.mrb[0].mxu0
        %v632 = vpop.f32.mrb[0].mxu0
        %v633 = vadd.f32 %v409, %v632
        %v634 = vpop.f32.mrb[0].mxu0
        %635 = vmatprep.mubr.bf16.mxu0 %v464
        %636 = vmatmul.mubr.bf16.gmra.mrb[0].mxu0 %v463
        %v637 = vpop.f32.mrb[0].mxu0
        %v638 = vadd.f32 %v409, %v637
        %v639 = vpop.f32.mrb[0].mxu0
        %v640 = vpop.f32.mrb[0].mxu0
        %v641 = vadd.f32 %v409, %v640
        %v642 = vpop.f32.mrb[0].mxu0
        %643 = vmatprep.mubr.bf16.mxu0 %v466
        %644 = vmatmul.mubr.bf16.gmra.mrb[0].mxu0 %v465
        %v645 = vpop.f32.mrb[0].mxu0
        %v646 = vadd.f32 %v409, %v645
        %v647 = vpop.f32.mrb[0].mxu0
        %v648 = vpop.f32.mrb[0].mxu0
        %v649 = vadd.f32 %v409, %v648
        %v650 = vpop.f32.mrb[0].mxu0
        %651 = vmatprep.mubr.bf16.mxu0 %v468
        %652 = vmatmul.mubr.bf16.gmra.mrb[0].mxu0 %v467
        %v653 = vpop.f32.mrb[0].mxu0
        %v654 = vadd.f32 %v409, %v653
        %v655 = vpop.f32.mrb[0].mxu0
        %v656 = vpop.f32.mrb[0].mxu0
        %v657 = vadd.f32 %v409, %v656
        %v658 = vpop.f32.mrb[0].mxu0
        %659 = vmatprep.mubr.bf16.mxu0 %v470
        %660 = vmatmul.mubr.bf16.gmra.mrb[0].mxu0 %v469
        %v661 = vpop.f32.mrb[0].mxu0
        %v662 = vadd.f32 %v409, %v661
        %v663 = vpop.f32.mrb[0].mxu0
        %v664 = vpop.f32.mrb[0].mxu0
        %v665 = vadd.f32 %v409, %v664
        %v666 = vpop.f32.mrb[0].mxu0
        %667 = vmatprep.mubr.bf16.mxu0 %v472
        %668 = vmatmul.mubr.bf16.gmra.mrb[0].mxu0 %v471
        %v669 = vpop.f32.mrb[0].mxu0
        %v670 = vadd.f32 %v409, %v669
        %v671 = vpop.f32.mrb[0].mxu0
        %v672 = vpop.f32.mrb[0].mxu0
        %v673 = vadd.f32 %v409, %v672
        %v674 = vpop.f32.mrb[0].mxu0
        %675 = vmatprep.mubr.bf16.mxu0 %v474
        %676 = vmatmul.mubr.bf16.gmra.mrb[0].mxu0 %v473
        %v677 = vpop.f32.mrb[0].mxu0
        %v678 = vadd.f32 %v409, %v677
        %v679 = vpop.f32.mrb[0].mxu0
        %v680 = vpop.f32.mrb[0].mxu0
        %v681 = vadd.f32 %v409, %v680
        %v682 = vpop.f32.mrb[0].mxu0
        %683 = vdwg.mxu0
        %v684 = vld [vmem:[#allocation6 + $0x8] sm:$0xf]
        %v685 = vld [vmem:[#allocation6 + $0x20] sm:$0xf]
        %v686 = vld [vmem:[#allocation6 + $0x38] sm:$0xf]
        %v687 = vld [vmem:[#allocation6 + $0x50] sm:$0xf]
        %v688 = vld [vmem:[#allocation6 + $0x68] sm:$0xf]
        %v689 = vld [vmem:[#allocation6 + $0x80] sm:$0xf]
        %v690 = vld [vmem:[#allocation6 + $0x98] sm:$0xf]
        %v691 = vld [vmem:[#allocation6 + $0xb0] sm:$0xf]
        %v692 = vld [vmem:[#allocation6 + $0xc8] sm:$0xf]
        %v693 = vld [vmem:[#allocation6 + $0xe0] sm:$0xf]
        %v694 = vld [vmem:[#allocation6 + $0xf8] sm:$0xf]
        %v695 = vld [vmem:[#allocation6 + $0x110] sm:$0xf]
        %v696 = vld [vmem:[#allocation6 + $0x128] sm:$0xf]
        %v697 = vld [vmem:[#allocation6 + $0x140] sm:$0xf]
        %v698 = vld [vmem:[#allocation6 + $0x158] sm:$0xf]
        %v699 = vld [vmem:[#allocation6 + $0x170] sm:$0xf]
        %v700 = vld [vmem:[#allocation6 + $0x188] sm:$0xf]
        %v701 = vld [vmem:[#allocation6 + $0x1a0] sm:$0xf]
        %v702 = vld [vmem:[#allocation6 + $0x1b8] sm:$0xf]
        %v703 = vld [vmem:[#allocation6 + $0x1d0] sm:$0xf]
        %v704 = vld [vmem:[#allocation6 + $0x1e8] sm:$0xf]
        %v705 = vld [vmem:[#allocation6 + $0x200] sm:$0xf]
        %v706 = vld [vmem:[#allocation6 + $0x218] sm:$0xf]
        %v707 = vld [vmem:[#allocation6 + $0x230] sm:$0xf]
        %v708 = vld [vmem:[#allocation6 + $0x248] sm:$0xf]
        %v709 = vld [vmem:[#allocation6 + $0x260] sm:$0xf]
        %v710 = vld [vmem:[#allocation6 + $0x278] sm:$0xf]
        %v711 = vld [vmem:[#allocation6 + $0x290] sm:$0xf]
        %v712 = vld [vmem:[#allocation6 + $0x2a8] sm:$0xf]
        %v713 = vld [vmem:[#allocation6 + $0x2c0] sm:$0xf]
        %v714 = vld [vmem:[#allocation6 + $0x2d8] sm:$0xf]
        %v715 = vld [vmem:[#allocation6 + $0x2f0] sm:$0xf]
        %v716 = vld [vmem:[%s2 + $0x2] sm:$0x1]
        %v718 = vlaneseq
        %v719 = vshrl.u32 %v718, 7
        %v720 = vsub.s32 0, %v719
        %v721 = vrot.slane %v716, %v720
        %v755 = vunpack.c.l.b16 %v684
        %v756 = vunpack.c.l.b16 %v685
        %v757 = vunpack.c.l.b16 %v686
        %v758 = vunpack.c.l.b16 %v687
        %v759 = vunpack.c.l.b16 %v688
        %v760 = vunpack.c.l.b16 %v689
        %v761 = vunpack.c.l.b16 %v690
        %v762 = vunpack.c.l.b16 %v691
        %v763 = vunpack.c.l.b16 %v692
        %v764 = vunpack.c.l.b16 %v693
        %v765 = vunpack.c.l.b16 %v694
        %v766 = vunpack.c.l.b16 %v695
        %v767 = vunpack.c.l.b16 %v696
        %v768 = vunpack.c.l.b16 %v697
        %v769 = vunpack.c.l.b16 %v698
        %v770 = vunpack.c.l.b16 %v699
        %v771 = vunpack.c.l.b16 %v700
        %v772 = vunpack.c.l.b16 %v701
        %v773 = vunpack.c.l.b16 %v702
        %v774 = vunpack.c.l.b16 %v703
        %v775 = vunpack.c.l.b16 %v704
        %v776 = vunpack.c.l.b16 %v705
        %v777 = vunpack.c.l.b16 %v706
        %v778 = vunpack.c.l.b16 %v707
        %v779 = vunpack.c.l.b16 %v708
        %v780 = vunpack.c.l.b16 %v709
        %v781 = vunpack.c.l.b16 %v710
        %v782 = vunpack.c.l.b16 %v711
        %v783 = vunpack.c.l.b16 %v712
        %v784 = vunpack.c.l.b16 %v713
        %v785 = vunpack.c.l.b16 %v714
        %v786 = vunpack.c.l.b16 %v715
        %v787 = vpack.c.b16 %v756, %v755
        %v788 = vpack.c.b16 %v758, %v757
        %v789 = vpack.c.b16 %v760, %v759
        %v790 = vpack.c.b16 %v762, %v761
        %v791 = vpack.c.b16 %v764, %v763
        %v792 = vpack.c.b16 %v766, %v765
        %v793 = vpack.c.b16 %v768, %v767
        %v794 = vpack.c.b16 %v770, %v769
        %v795 = vpack.c.b16 %v772, %v771
        %v796 = vpack.c.b16 %v774, %v773
        %v797 = vpack.c.b16 %v776, %v775
        %v798 = vpack.c.b16 %v778, %v777
        %v799 = vpack.c.b16 %v780, %v779
        %v800 = vpack.c.b16 %v782, %v781
        %v801 = vpack.c.b16 %v784, %v783
        %v802 = vpack.c.b16 %v786, %v785
        %819 = vmatprep.subr.bf16.mxu0 0
        %820 = vmatpush1.bf16.msra.mxu0 %v787
        %821 = vmatprep.subr.bf16.mxu0 0
        %822 = vmatpush1.bf16.msra.mxu0 %v788
        %823 = vmatprep.subr.bf16.mxu0 0
        %824 = vmatpush1.bf16.msra.mxu0 %v789
        %825 = vmatprep.subr.bf16.mxu0 0
        %826 = vmatpush1.bf16.msra.mxu0 %v790
        %827 = vmatprep.subr.bf16.mxu0 0
        %828 = vmatpush1.bf16.msra.mxu0 %v791
        %829 = vmatprep.subr.bf16.mxu0 0
        %830 = vmatpush1.bf16.msra.mxu0 %v792
        %831 = vmatprep.subr.bf16.mxu0 0
        %832 = vmatpush1.bf16.msra.mxu0 %v793
        %833 = vmatprep.subr.bf16.mxu0 0
        %834 = vmatpush1.bf16.msra.mxu0 %v794
        %835 = vmatprep.subr.bf16.mxu0 0
        %836 = vmatpush1.bf16.msra.mxu0 %v795
        %837 = vmatprep.subr.bf16.mxu0 0
        %838 = vmatpush1.bf16.msra.mxu0 %v796
        %839 = vmatprep.subr.bf16.mxu0 0
        %840 = vmatpush1.bf16.msra.mxu0 %v797
        %841 = vmatprep.subr.bf16.mxu0 0
        %842 = vmatpush1.bf16.msra.mxu0 %v798
        %843 = vmatprep.subr.bf16.mxu0 0
        %844 = vmatpush1.bf16.msra.mxu0 %v799
        %845 = vmatprep.subr.bf16.mxu0 0
        %846 = vmatpush1.bf16.msra.mxu0 %v800
        %847 = vmatprep.subr.bf16.mxu0 0
        %848 = vmatpush1.bf16.msra.mxu0 %v801
        %849 = vmatprep.subr.bf16.mxu0 0
        %850 = vmatpush1.bf16.msra.mxu0 %v802
        %851 = vmatprep.mubr.bf16.mxu0 %v460
        %852 = vmatmul.mubr.bf16.gmra.mrb[0].mxu0 %v459
        %v853 = vpop.f32.mrb[0].mxu0
        %v854 = vadd.f32 %v721, %v853
        %v855 = vpop.f32.mrb[0].mxu0
        %v856 = vpop.f32.mrb[0].mxu0
        %v857 = vadd.f32 %v721, %v856
        %v858 = vpop.f32.mrb[0].mxu0
        %859 = vmatprep.mubr.bf16.mxu0 %v462
        %860 = vmatmul.mubr.bf16.gmra.mrb[0].mxu0 %v461
        %v861 = vpop.f32.mrb[0].mxu0
        %v862 = vadd.f32 %v721, %v861
        %v863 = vpop.f32.mrb[0].mxu0
        %v864 = vpop.f32.mrb[0].mxu0
        %v865 = vadd.f32 %v721, %v864
        %v866 = vpop.f32.mrb[0].mxu0
        %867 = vmatprep.mubr.bf16.mxu0 %v464
        %868 = vmatmul.mubr.bf16.gmra.mrb[0].mxu0 %v463
        %v869 = vpop.f32.mrb[0].mxu0
        %v870 = vadd.f32 %v721, %v869
        %v871 = vpop.f32.mrb[0].mxu0
        %v872 = vpop.f32.mrb[0].mxu0
        %v873 = vadd.f32 %v721, %v872
        %v874 = vpop.f32.mrb[0].mxu0
        %875 = vmatprep.mubr.bf16.mxu0 %v466
        %876 = vmatmul.mubr.bf16.gmra.mrb[0].mxu0 %v465
        %v877 = vpop.f32.mrb[0].mxu0
        %v878 = vadd.f32 %v721, %v877
        %v879 = vpop.f32.mrb[0].mxu0
        %v880 = vpop.f32.mrb[0].mxu0
        %v881 = vadd.f32 %v721, %v880
        %v882 = vpop.f32.mrb[0].mxu0
        %883 = vmatprep.mubr.bf16.mxu0 %v468
        %884 = vmatmul.mubr.bf16.gmra.mrb[0].mxu0 %v467
        %v885 = vpop.f32.mrb[0].mxu0
        %v886 = vadd.f32 %v721, %v885
        %v887 = vpop.f32.mrb[0].mxu0
        %v888 = vpop.f32.mrb[0].mxu0
        %v889 = vadd.f32 %v721, %v888
        %v890 = vpop.f32.mrb[0].mxu0
        %891 = vmatprep.mubr.bf16.mxu0 %v470
        %892 = vmatmul.mubr.bf16.gmra.mrb[0].mxu0 %v469
        %v893 = vpop.f32.mrb[0].mxu0
        %v894 = vadd.f32 %v721, %v893
        %v895 = vpop.f32.mrb[0].mxu0
        %v896 = vpop.f32.mrb[0].mxu0
        %v897 = vadd.f32 %v721, %v896
        %v898 = vpop.f32.mrb[0].mxu0
        %899 = vmatprep.mubr.bf16.mxu0 %v472
        %900 = vmatmul.mubr.bf16.gmra.mrb[0].mxu0 %v471
        %v901 = vpop.f32.mrb[0].mxu0
        %v902 = vadd.f32 %v721, %v901
        %v903 = vpop.f32.mrb[0].mxu0
        %v904 = vpop.f32.mrb[0].mxu0
        %v905 = vadd.f32 %v721, %v904
        %v906 = vpop.f32.mrb[0].mxu0
        %907 = vmatprep.mubr.bf16.mxu0 %v474
        %908 = vmatmul.mubr.bf16.gmra.mrb[0].mxu0 %v473
        %v909 = vpop.f32.mrb[0].mxu0
        %v910 = vadd.f32 %v721, %v909
        %v911 = vpop.f32.mrb[0].mxu0
        %v912 = vpop.f32.mrb[0].mxu0
        %v913 = vadd.f32 %v721, %v912
        %v914 = vpop.f32.mrb[0].mxu0
        %915 = vdwg.mxu0
        %v916 = vld [vmem:[#allocation9] sm:$0xff]
        %v917 = vld [vmem:[#allocation9 + $0x8] sm:$0xff]
        %v918 = vld [vmem:[#allocation9 + $0x10] sm:$0xff]
        %v919 = vld [vmem:[#allocation9 + $0x18] sm:$0xff]
        %v920 = vld [vmem:[#allocation9 + $0x20] sm:$0xff]
        %v921 = vld [vmem:[#allocation9 + $0x28] sm:$0xff]
        %v922 = vld [vmem:[#allocation9 + $0x30] sm:$0xff]
        %v923 = vld [vmem:[#allocation9 + $0x38] sm:$0xff]
        %v924 = vld [vmem:[#allocation9 + $0x40] sm:$0xff]
        %v925 = vld [vmem:[#allocation9 + $0x48] sm:$0xff]
        %v926 = vld [vmem:[#allocation9 + $0x50] sm:$0xff]
        %v927 = vld [vmem:[#allocation9 + $0x58] sm:$0xff]
        %v928 = vld [vmem:[#allocation9 + $0x60] sm:$0xff]
        %v929 = vld [vmem:[#allocation9 + $0x68] sm:$0xff]
        %v930 = vld [vmem:[#allocation9 + $0x70] sm:$0xff]
        %v931 = vld [vmem:[#allocation9 + $0x78] sm:$0xff]
        %v932 = vmul.f32 %v916, %v622
        %v933 = vmul.f32 %v917, %v625
        %v934 = vmul.f32 %v918, %v630
        %v935 = vmul.f32 %v919, %v633
        %v936 = vmul.f32 %v920, %v638
        %v937 = vmul.f32 %v921, %v641
        %v938 = vmul.f32 %v922, %v646
        %v939 = vmul.f32 %v923, %v649
        %v940 = vmul.f32 %v924, %v654
        %v941 = vmul.f32 %v925, %v657
        %v942 = vmul.f32 %v926, %v662
        %v943 = vmul.f32 %v927, %v665
        %v944 = vmul.f32 %v928, %v670
        %v945 = vmul.f32 %v929, %v673
        %v946 = vmul.f32 %v930, %v678
        %v947 = vmul.f32 %v931, %v681
        %v948 = vld [vmem:[#allocation11] sm:$0xff]
        %v949 = vld [vmem:[#allocation11 + $0x8] sm:$0xff]
        %v950 = vld [vmem:[#allocation11 + $0x10] sm:$0xff]
        %v951 = vld [vmem:[#allocation11 + $0x18] sm:$0xff]
        %v952 = vld [vmem:[#allocation11 + $0x20] sm:$0xff]
        %v953 = vld [vmem:[#allocation11 + $0x28] sm:$0xff]
        %v954 = vld [vmem:[#allocation11 + $0x30] sm:$0xff]
        %v955 = vld [vmem:[#allocation11 + $0x38] sm:$0xff]
        %v956 = vld [vmem:[#allocation11 + $0x40] sm:$0xff]
        %v957 = vld [vmem:[#allocation11 + $0x48] sm:$0xff]
        %v958 = vld [vmem:[#allocation11 + $0x50] sm:$0xff]
        %v959 = vld [vmem:[#allocation11 + $0x58] sm:$0xff]
        %v960 = vld [vmem:[#allocation11 + $0x60] sm:$0xff]
        %v961 = vld [vmem:[#allocation11 + $0x68] sm:$0xff]
        %v962 = vld [vmem:[#allocation11 + $0x70] sm:$0xff]
        %v963 = vld [vmem:[#allocation11 + $0x78] sm:$0xff]
        %964 = vrot.lane.b32.xlu0 %v622, 64
        %v965 = vpop.permute.xlu0 %964
        %966 = vrot.lane.b32.xlu0 %v625, 64
        %v967 = vpop.permute.xlu0 %966
        %968 = vrot.lane.b32.xlu0 %v630, 64
        %v969 = vpop.permute.xlu0 %968
        %970 = vrot.lane.b32.xlu0 %v633, 64
        %v971 = vpop.permute.xlu0 %970
        %972 = vrot.lane.b32.xlu0 %v638, 64
        %v973 = vpop.permute.xlu0 %972
        %974 = vrot.lane.b32.xlu0 %v641, 64
        %v975 = vpop.permute.xlu0 %974
        %976 = vrot.lane.b32.xlu0 %v646, 64
        %v977 = vpop.permute.xlu0 %976
        %978 = vrot.lane.b32.xlu0 %v649, 64
        %v979 = vpop.permute.xlu0 %978
        %980 = vrot.lane.b32.xlu0 %v654, 64
        %v981 = vpop.permute.xlu0 %980
        %982 = vrot.lane.b32.xlu0 %v657, 64
        %v983 = vpop.permute.xlu0 %982
        %984 = vrot.lane.b32.xlu0 %v662, 64
        %v985 = vpop.permute.xlu0 %984
        %986 = vrot.lane.b32.xlu0 %v665, 64
        %v987 = vpop.permute.xlu0 %986
        %988 = vrot.lane.b32.xlu0 %v670, 64
        %v989 = vpop.permute.xlu0 %988
        %990 = vrot.lane.b32.xlu0 %v673, 64
        %v991 = vpop.permute.xlu0 %990
        %992 = vrot.lane.b32.xlu0 %v678, 64
        %v993 = vpop.permute.xlu0 %992
        %994 = vrot.lane.b32.xlu0 %v681, 64
        %v995 = vpop.permute.xlu0 %994
        %v996 = vmul.f32 %v948, %v965
        %v997 = vmul.f32 %v949, %v967
        %v998 = vmul.f32 %v950, %v969
        %v999 = vmul.f32 %v951, %v971
        %v1000 = vmul.f32 %v952, %v973
        %v1001 = vmul.f32 %v953, %v975
        %v1002 = vmul.f32 %v954, %v977
        %v1003 = vmul.f32 %v955, %v979
        %v1004 = vmul.f32 %v956, %v981
        %v1005 = vmul.f32 %v957, %v983
        %v1006 = vmul.f32 %v958, %v985
        %v1007 = vmul.f32 %v959, %v987
        %v1008 = vmul.f32 %v960, %v989
        %v1009 = vmul.f32 %v961, %v991
        %v1010 = vmul.f32 %v962, %v993
        %v1011 = vmul.f32 %v963, %v995
        %v1012 = vadd.f32 %v932, %v996
        %v1013 = vadd.f32 %v933, %v997
        %v1014 = vadd.f32 %v934, %v998
        %v1015 = vadd.f32 %v935, %v999
        %v1016 = vadd.f32 %v936, %v1000
        %v1017 = vadd.f32 %v937, %v1001
        %v1018 = vadd.f32 %v938, %v1002
        %v1019 = vadd.f32 %v939, %v1003
        %v1020 = vadd.f32 %v940, %v1004
        %v1021 = vadd.f32 %v941, %v1005
        %v1022 = vadd.f32 %v942, %v1006
        %v1023 = vadd.f32 %v943, %v1007
        %v1024 = vadd.f32 %v944, %v1008
        %v1025 = vadd.f32 %v945, %v1009
        %v1026 = vadd.f32 %v946, %v1010
        %v1027 = vadd.f32 %v947, %v1011
        %v1028 = vpack.c.bf16 %v1013, %v1012
        %v1029 = vpack.c.bf16 %v1015, %v1014
        %v1030 = vpack.c.bf16 %v1017, %v1016
        %v1031 = vpack.c.bf16 %v1019, %v1018
        %v1032 = vpack.c.bf16 %v1021, %v1020
        %v1033 = vpack.c.bf16 %v1023, %v1022
        %v1034 = vpack.c.bf16 %v1025, %v1024
        %v1035 = vpack.c.bf16 %v1027, %v1026
        %v1036 = vpack.c.bf16 %v857, %v854
        %v1037 = vpack.c.bf16 %v865, %v862
        %v1038 = vpack.c.bf16 %v873, %v870
        %v1039 = vpack.c.bf16 %v881, %v878
        %v1040 = vpack.c.bf16 %v889, %v886
        %v1041 = vpack.c.bf16 %v897, %v894
        %v1042 = vpack.c.bf16 %v905, %v902
        %v1043 = vpack.c.bf16 %v913, %v910
        %s1044 = smul.u32 0, 2
        %s1045 = smul.addr %s1044, 4
        %s1046 = scalar_lea.vmem %s308, %s1045 [#allocation3]
        %v1047 = vld [vmem:[%s1046] sm:$0xff]
        %v1048 = vld [vmem:[%s1046 + $0x8] sm:$0xff]
        %v1049 = vld [vmem:[%s1046 + $0x10] sm:$0xff]
        %v1050 = vld [vmem:[%s1046 + $0x18] sm:$0xff]
        %v1051 = vld [vmem:[%s1046 + $0x20] sm:$0xff]
        %v1052 = vld [vmem:[%s1046 + $0x28] sm:$0xff]
        %v1053 = vld [vmem:[%s1046 + $0x30] sm:$0xff]
        %v1054 = vld [vmem:[%s1046 + $0x38] sm:$0xff]
        %v1055 = vld [vmem:[#allocation6] sm:$0xf]
        %v1056 = vld [vmem:[#allocation6 + $0x18] sm:$0xf]
        %v1057 = vld [vmem:[#allocation6 + $0x30] sm:$0xf]
        %v1058 = vld [vmem:[#allocation6 + $0x48] sm:$0xf]
        %v1059 = vld [vmem:[#allocation6 + $0x60] sm:$0xf]
        %v1060 = vld [vmem:[#allocation6 + $0x78] sm:$0xf]
        %v1061 = vld [vmem:[#allocation6 + $0x90] sm:$0xf]
        %v1062 = vld [vmem:[#allocation6 + $0xa8] sm:$0xf]
        %v1063 = vld [vmem:[#allocation6 + $0xc0] sm:$0xf]
        %v1064 = vld [vmem:[#allocation6 + $0xd8] sm:$0xf]
        %v1065 = vld [vmem:[#allocation6 + $0xf0] sm:$0xf]
        %v1066 = vld [vmem:[#allocation6 + $0x108] sm:$0xf]
        %v1067 = vld [vmem:[#allocation6 + $0x120] sm:$0xf]
        %v1068 = vld [vmem:[#allocation6 + $0x138] sm:$0xf]
        %v1069 = vld [vmem:[#allocation6 + $0x150] sm:$0xf]
        %v1070 = vld [vmem:[#allocation6 + $0x168] sm:$0xf]
        %v1071 = vld [vmem:[#allocation6 + $0x180] sm:$0xf]
        %v1072 = vld [vmem:[#allocation6 + $0x198] sm:$0xf]
        %v1073 = vld [vmem:[#allocation6 + $0x1b0] sm:$0xf]
        %v1074 = vld [vmem:[#allocation6 + $0x1c8] sm:$0xf]
        %v1075 = vld [vmem:[#allocation6 + $0x1e0] sm:$0xf]
        %v1076 = vld [vmem:[#allocation6 + $0x1f8] sm:$0xf]
        %v1077 = vld [vmem:[#allocation6 + $0x210] sm:$0xf]
        %v1078 = vld [vmem:[#allocation6 + $0x228] sm:$0xf]
        %v1079 = vld [vmem:[#allocation6 + $0x240] sm:$0xf]
        %v1080 = vld [vmem:[#allocation6 + $0x258] sm:$0xf]
        %v1081 = vld [vmem:[#allocation6 + $0x270] sm:$0xf]
        %v1082 = vld [vmem:[#allocation6 + $0x288] sm:$0xf]
        %v1083 = vld [vmem:[#allocation6 + $0x2a0] sm:$0xf]
        %v1084 = vld [vmem:[#allocation6 + $0x2b8] sm:$0xf]
        %v1085 = vld [vmem:[#allocation6 + $0x2d0] sm:$0xf]
        %v1086 = vld [vmem:[#allocation6 + $0x2e8] sm:$0xf]
        %v1087 = vld [vmem:[%s2] sm:$0x1]
        %v1089 = vlaneseq
        %v1090 = vshrl.u32 %v1089, 7
        %v1091 = vsub.s32 0, %v1090
        %v1092 = vrot.slane %v1087, %v1091
        %v1102 = vunpack.c.l.b16 %v1047
        %v1103 = vunpack.c.h.b16 %v1047
        %v1104 = vunpack.c.l.b16 %v1048
        %v1105 = vunpack.c.h.b16 %v1048
        %v1106 = vunpack.c.l.b16 %v1049
        %v1107 = vunpack.c.h.b16 %v1049
        %v1108 = vunpack.c.l.b16 %v1050
        %v1109 = vunpack.c.h.b16 %v1050
        %v1110 = vunpack.c.l.b16 %v1051
        %v1111 = vunpack.c.h.b16 %v1051
        %v1112 = vunpack.c.l.b16 %v1052
        %v1113 = vunpack.c.h.b16 %v1052
        %v1114 = vunpack.c.l.b16 %v1053
        %v1115 = vunpack.c.h.b16 %v1053
        %v1116 = vunpack.c.l.b16 %v1054
        %v1117 = vunpack.c.h.b16 %v1054
        %v1118 = vpack.c.b16 %v1104, %v1102
        %v1119 = vpack.c.b16 %v1105, %v1103
        %v1120 = vpack.c.b16 %v1108, %v1106
        %v1121 = vpack.c.b16 %v1109, %v1107
        %v1122 = vpack.c.b16 %v1112, %v1110
        %v1123 = vpack.c.b16 %v1113, %v1111
        %v1124 = vpack.c.b16 %v1116, %v1114
        %v1125 = vpack.c.b16 %v1117, %v1115
        %v1166 = vunpack.c.l.b16 %v1055
        %v1167 = vunpack.c.l.b16 %v1056
        %v1168 = vunpack.c.l.b16 %v1057
        %v1169 = vunpack.c.l.b16 %v1058
        %v1170 = vunpack.c.l.b16 %v1059
        %v1171 = vunpack.c.l.b16 %v1060
        %v1172 = vunpack.c.l.b16 %v1061
        %v1173 = vunpack.c.l.b16 %v1062
        %v1174 = vunpack.c.l.b16 %v1063
        %v1175 = vunpack.c.l.b16 %v1064
        %v1176 = vunpack.c.l.b16 %v1065
        %v1177 = vunpack.c.l.b16 %v1066
        %v1178 = vunpack.c.l.b16 %v1067
        %v1179 = vunpack.c.l.b16 %v1068
        %v1180 = vunpack.c.l.b16 %v1069
        %v1181 = vunpack.c.l.b16 %v1070
        %v1182 = vunpack.c.l.b16 %v1071
        %v1183 = vunpack.c.l.b16 %v1072
        %v1184 = vunpack.c.l.b16 %v1073
        %v1185 = vunpack.c.l.b16 %v1074
        %v1186 = vunpack.c.l.b16 %v1075
        %v1187 = vunpack.c.l.b16 %v1076
        %v1188 = vunpack.c.l.b16 %v1077
        %v1189 = vunpack.c.l.b16 %v1078
        %v1190 = vunpack.c.l.b16 %v1079
        %v1191 = vunpack.c.l.b16 %v1080
        %v1192 = vunpack.c.l.b16 %v1081
        %v1193 = vunpack.c.l.b16 %v1082
        %v1194 = vunpack.c.l.b16 %v1083
        %v1195 = vunpack.c.l.b16 %v1084
        %v1196 = vunpack.c.l.b16 %v1085
        %v1197 = vunpack.c.l.b16 %v1086
        %v1198 = vpack.c.b16 %v1167, %v1166
        %v1199 = vpack.c.b16 %v1169, %v1168
        %v1200 = vpack.c.b16 %v1171, %v1170
        %v1201 = vpack.c.b16 %v1173, %v1172
        %v1202 = vpack.c.b16 %v1175, %v1174
        %v1203 = vpack.c.b16 %v1177, %v1176
        %v1204 = vpack.c.b16 %v1179, %v1178
        %v1205 = vpack.c.b16 %v1181, %v1180
        %v1206 = vpack.c.b16 %v1183, %v1182
        %v1207 = vpack.c.b16 %v1185, %v1184
        %v1208 = vpack.c.b16 %v1187, %v1186
        %v1209 = vpack.c.b16 %v1189, %v1188
        %v1210 = vpack.c.b16 %v1191, %v1190
        %v1211 = vpack.c.b16 %v1193, %v1192
        %v1212 = vpack.c.b16 %v1195, %v1194
        %v1213 = vpack.c.b16 %v1197, %v1196
        %1230 = vmatprep.subr.bf16.mxu0 0
        %1231 = vmatpush1.bf16.msra.mxu0 %v1198
        %1232 = vmatprep.subr.bf16.mxu0 0
        %1233 = vmatpush1.bf16.msra.mxu0 %v1199
        %1234 = vmatprep.subr.bf16.mxu0 0
        %1235 = vmatpush1.bf16.msra.mxu0 %v1200
        %1236 = vmatprep.subr.bf16.mxu0 0
        %1237 = vmatpush1.bf16.msra.mxu0 %v1201
        %1238 = vmatprep.subr.bf16.mxu0 0
        %1239 = vmatpush1.bf16.msra.mxu0 %v1202
        %1240 = vmatprep.subr.bf16.mxu0 0
        %1241 = vmatpush1.bf16.msra.mxu0 %v1203
        %1242 = vmatprep.subr.bf16.mxu0 0
        %1243 = vmatpush1.bf16.msra.mxu0 %v1204
        %1244 = vmatprep.subr.bf16.mxu0 0
        %1245 = vmatpush1.bf16.msra.mxu0 %v1205
        %1246 = vmatprep.subr.bf16.mxu0 0
        %1247 = vmatpush1.bf16.msra.mxu0 %v1206
        %1248 = vmatprep.subr.bf16.mxu0 0
        %1249 = vmatpush1.bf16.msra.mxu0 %v1207
        %1250 = vmatprep.subr.bf16.mxu0 0
        %1251 = vmatpush1.bf16.msra.mxu0 %v1208
        %1252 = vmatprep.subr.bf16.mxu0 0
        %1253 = vmatpush1.bf16.msra.mxu0 %v1209
        %1254 = vmatprep.subr.bf16.mxu0 0
        %1255 = vmatpush1.bf16.msra.mxu0 %v1210
        %1256 = vmatprep.subr.bf16.mxu0 0
        %1257 = vmatpush1.bf16.msra.mxu0 %v1211
        %1258 = vmatprep.subr.bf16.mxu0 0
        %1259 = vmatpush1.bf16.msra.mxu0 %v1212
        %1260 = vmatprep.subr.bf16.mxu0 0
        %1261 = vmatpush1.bf16.msra.mxu0 %v1213
        %1262 = vmatprep.mubr.bf16.mxu0 %v1119
        %1263 = vmatmul.mubr.bf16.gmra.mrb[0].mxu0 %v1118
        %v1264 = vpop.f32.mrb[0].mxu0
        %v1265 = vadd.f32 %v1092, %v1264
        %v1266 = vpop.f32.mrb[0].mxu0
        %v1267 = vpop.f32.mrb[0].mxu0
        %v1268 = vadd.f32 %v1092, %v1267
        %v1269 = vpop.f32.mrb[0].mxu0
        %1270 = vmatprep.mubr.bf16.mxu0 %v1121
        %1271 = vmatmul.mubr.bf16.gmra.mrb[0].mxu0 %v1120
        %v1272 = vpop.f32.mrb[0].mxu0
        %v1273 = vadd.f32 %v1092, %v1272
        %v1274 = vpop.f32.mrb[0].mxu0
        %v1275 = vpop.f32.mrb[0].mxu0
        %v1276 = vadd.f32 %v1092, %v1275
        %v1277 = vpop.f32.mrb[0].mxu0
        %1278 = vmatprep.mubr.bf16.mxu0 %v1123
        %1279 = vmatmul.mubr.bf16.gmra.mrb[0].mxu0 %v1122
        %v1280 = vpop.f32.mrb[0].mxu0
        %v1281 = vadd.f32 %v1092, %v1280
        %v1282 = vpop.f32.mrb[0].mxu0
        %v1283 = vpop.f32.mrb[0].mxu0
        %v1284 = vadd.f32 %v1092, %v1283
        %v1285 = vpop.f32.mrb[0].mxu0
        %1286 = vmatprep.mubr.bf16.mxu0 %v1125
        %1287 = vmatmul.mubr.bf16.gmra.mrb[0].mxu0 %v1124
        %v1288 = vpop.f32.mrb[0].mxu0
        %v1289 = vadd.f32 %v1092, %v1288
        %v1290 = vpop.f32.mrb[0].mxu0
        %v1291 = vpop.f32.mrb[0].mxu0
        %v1292 = vadd.f32 %v1092, %v1291
        %v1293 = vpop.f32.mrb[0].mxu0
        %1294 = vdwg.mxu0
        %v1295 = vld [vmem:[#allocation9] sm:$0xff]
        %v1296 = vld [vmem:[#allocation9 + $0x8] sm:$0xff]
        %v1297 = vld [vmem:[#allocation9 + $0x10] sm:$0xff]
        %v1298 = vld [vmem:[#allocation9 + $0x18] sm:$0xff]
        %v1299 = vld [vmem:[#allocation9 + $0x20] sm:$0xff]
        %v1300 = vld [vmem:[#allocation9 + $0x28] sm:$0xff]
        %v1301 = vld [vmem:[#allocation9 + $0x30] sm:$0xff]
        %v1302 = vld [vmem:[#allocation9 + $0x38] sm:$0xff]
        %v1303 = vld [vmem:[#allocation11] sm:$0xff]
        %v1304 = vld [vmem:[#allocation11 + $0x8] sm:$0xff]
        %v1305 = vld [vmem:[#allocation11 + $0x10] sm:$0xff]
        %v1306 = vld [vmem:[#allocation11 + $0x18] sm:$0xff]
        %v1307 = vld [vmem:[#allocation11 + $0x20] sm:$0xff]
        %v1308 = vld [vmem:[#allocation11 + $0x28] sm:$0xff]
        %v1309 = vld [vmem:[#allocation11 + $0x30] sm:$0xff]
        %v1310 = vld [vmem:[#allocation11 + $0x38] sm:$0xff]
        %v1311 = vmul.f32 %v1295, %v1265
        %v1312 = vmul.f32 %v1296, %v1268
        %v1313 = vmul.f32 %v1297, %v1273
        %v1314 = vmul.f32 %v1298, %v1276
        %v1315 = vmul.f32 %v1299, %v1281
        %v1316 = vmul.f32 %v1300, %v1284
        %v1317 = vmul.f32 %v1301, %v1289
        %v1318 = vmul.f32 %v1302, %v1292
        %1319 = vrot.lane.b32.xlu0 %v1265, 64
        %v1320 = vpop.permute.xlu0 %1319
        %1321 = vrot.lane.b32.xlu0 %v1268, 64
        %v1322 = vpop.permute.xlu0 %1321
        %1323 = vrot.lane.b32.xlu0 %v1273, 64
        %v1324 = vpop.permute.xlu0 %1323
        %1325 = vrot.lane.b32.xlu0 %v1276, 64
        %v1326 = vpop.permute.xlu0 %1325
        %1327 = vrot.lane.b32.xlu0 %v1281, 64
        %v1328 = vpop.permute.xlu0 %1327
        %1329 = vrot.lane.b32.xlu0 %v1284, 64
        %v1330 = vpop.permute.xlu0 %1329
        %1331 = vrot.lane.b32.xlu0 %v1289, 64
        %v1332 = vpop.permute.xlu0 %1331
        %1333 = vrot.lane.b32.xlu0 %v1292, 64
        %v1334 = vpop.permute.xlu0 %1333
        %v1335 = vmul.f32 %v1303, %v1320
        %v1336 = vmul.f32 %v1304, %v1322
        %v1337 = vmul.f32 %v1305, %v1324
        %v1338 = vmul.f32 %v1306, %v1326
        %v1339 = vmul.f32 %v1307, %v1328
        %v1340 = vmul.f32 %v1308, %v1330
        %v1341 = vmul.f32 %v1309, %v1332
        %v1342 = vmul.f32 %v1310, %v1334
        %v1343 = vadd.f32 %v1311, %v1335
        %v1344 = vadd.f32 %v1312, %v1336
        %v1345 = vadd.f32 %v1313, %v1337
        %v1346 = vadd.f32 %v1314, %v1338
        %v1347 = vadd.f32 %v1315, %v1339
        %v1348 = vadd.f32 %v1316, %v1340
        %v1349 = vadd.f32 %v1317, %v1341
        %v1350 = vadd.f32 %v1318, %v1342
        %v1351 = vpack.c.bf16 %v1344, %v1343
        %v1352 = vpack.c.bf16 %v1346, %v1345
        %v1353 = vpack.c.bf16 %v1348, %v1347
        %v1354 = vpack.c.bf16 %v1350, %v1349
        %1355 = vmatprep.subr.bf16.mxu0 0
        %1356 = vmatpush1.bf16.xpose.msra.mxu0 %v1028
        %1357 = vmatprep.subr.bf16.mxu0 0
        %1358 = vmatpush1.bf16.xpose.msra.mxu0 %v1029
        %1359 = vmatprep.subr.bf16.mxu0 0
        %1360 = vmatpush1.bf16.xpose.msra.mxu0 %v1030
        %1361 = vmatprep.subr.bf16.mxu0 0
        %1362 = vmatpush1.bf16.xpose.msra.mxu0 %v1031
        %1363 = vmatprep.subr.bf16.mxu0 0
        %1364 = vmatpush1.bf16.xpose.msra.mxu0 %v1032
        %1365 = vmatprep.subr.bf16.mxu0 0
        %1366 = vmatpush1.bf16.xpose.msra.mxu0 %v1033
        %1367 = vmatprep.subr.bf16.mxu0 0
        %1368 = vmatpush1.bf16.xpose.msra.mxu0 %v1034
        %1369 = vmatprep.subr.bf16.mxu0 0
        %1370 = vmatpush1.bf16.xpose.msra.mxu0 %v1035
        %1371 = vmatprep.subr.bf16.mxu0 0
        %1372 = vmatpush1.bf16.xpose.msra.mxu0 0
        %1373 = vmatprep.subr.bf16.mxu0 0
        %1374 = vmatpush1.bf16.xpose.msra.mxu0 0
        %1375 = vmatprep.subr.bf16.mxu0 0
        %1376 = vmatpush1.bf16.xpose.msra.mxu0 0
        %1377 = vmatprep.subr.bf16.mxu0 0
        %1378 = vmatpush1.bf16.xpose.msra.mxu0 0
        %1379 = vmatprep.subr.bf16.mxu0 0
        %1380 = vmatpush1.bf16.xpose.msra.mxu0 0
        %1381 = vmatprep.subr.bf16.mxu0 0
        %1382 = vmatpush1.bf16.xpose.msra.mxu0 0
        %1383 = vmatprep.subr.bf16.mxu0 0
        %1384 = vmatpush1.bf16.xpose.msra.mxu0 0
        %1385 = vmatprep.subr.bf16.mxu0 0
        %1386 = vmatpush1.bf16.xpose.msra.mxu0 0
        %1387 = vmatprep.mubr.bf16.mxu0 0
        %1388 = vmatmul.mubr.bf16.gmra.mrb[0].mxu0 %v1351
        %v1389 = vpop.f32.mrb[0].mxu0
        %v1390 = vadd.f32 0.0, %v1389
        %v1391 = vpop.f32.mrb[0].mxu0
        %v1392 = vpop.f32.mrb[0].mxu0
        %v1393 = vadd.f32 0.0, %v1392
        %v1394 = vpop.f32.mrb[0].mxu0
        %1395 = vmatprep.mubr.bf16.mxu0 0
        %1396 = vmatmul.mubr.bf16.gmra.mrb[0].mxu0 %v1352
        %v1397 = vpop.f32.mrb[0].mxu0
        %v1398 = vadd.f32 0.0, %v1397
        %v1399 = vpop.f32.mrb[0].mxu0
        %v1400 = vpop.f32.mrb[0].mxu0
        %v1401 = vadd.f32 0.0, %v1400
        %v1402 = vpop.f32.mrb[0].mxu0
        %1403 = vmatprep.mubr.bf16.mxu0 0
        %1404 = vmatmul.mubr.bf16.gmra.mrb[0].mxu0 %v1353
        %v1405 = vpop.f32.mrb[0].mxu0
        %v1406 = vadd.f32 0.0, %v1405
        %v1407 = vpop.f32.mrb[0].mxu0
        %v1408 = vpop.f32.mrb[0].mxu0
        %v1409 = vadd.f32 0.0, %v1408
        %v1410 = vpop.f32.mrb[0].mxu0
        %1411 = vmatprep.mubr.bf16.mxu0 0
        %1412 = vmatmul.mubr.bf16.gmra.mrb[0].mxu0 %v1354
        %v1413 = vpop.f32.mrb[0].mxu0
        %v1414 = vadd.f32 0.0, %v1413
        %v1415 = vpop.f32.mrb[0].mxu0
        %v1416 = vpop.f32.mrb[0].mxu0
        %v1417 = vadd.f32 0.0, %v1416
        %v1418 = vpop.f32.mrb[0].mxu0
        %1419 = vdwg.mxu0
        %v1420 = vlaneseq
        %v1421 = vshrl.u32 %v1420, 7
        %v1422 = vadd.s32 %v1421, 8
        %v1423 = vadd.s32 %v1421, 16
        %v1424 = vadd.s32 %v1421, 24
        %v1425 = vadd.s32 %v1421, 32
        %v1426 = vadd.s32 %v1421, 40
        %v1427 = vadd.s32 %v1421, 48
        %v1428 = vadd.s32 %v1421, 56
        %v1429 = vstv 0
        %v1430 = vadd.s32 %v1421, %v1429
        %v1431 = vadd.s32 %v1422, %v1429
        %v1432 = vadd.s32 %v1423, %v1429
        %v1433 = vadd.s32 %v1424, %v1429
        %v1434 = vadd.s32 %v1425, %v1429
        %v1435 = vadd.s32 %v1426, %v1429
        %v1436 = vadd.s32 %v1427, %v1429
        %v1437 = vadd.s32 %v1428, %v1429
        %v1438 = vlaneseq
        %v1439 = vand.u32 %v1438, 127
        %vm1440 = vcmp.gt.s32.totalorder %v1439, %v1430
        %vm1441 = vcmp.gt.s32.totalorder %v1439, %v1431
        %vm1442 = vcmp.gt.s32.totalorder %v1439, %v1432
        %vm1443 = vcmp.gt.s32.totalorder %v1439, %v1433
        %vm1444 = vcmp.gt.s32.totalorder %v1439, %v1434
        %vm1445 = vcmp.gt.s32.totalorder %v1439, %v1435
        %vm1446 = vcmp.gt.s32.totalorder %v1439, %v1436
        %vm1447 = vcmp.gt.s32.totalorder %v1439, %v1437
        %v1448 = vsel %vm1440, -1e+30, %v1390
        %v1449 = vsel %vm1441, -1e+30, %v1393
        %v1450 = vsel %vm1442, -1e+30, %v1398
        %v1451 = vsel %vm1443, -1e+30, %v1401
        %v1452 = vsel %vm1444, -1e+30, %v1406
        %v1453 = vsel %vm1445, -1e+30, %v1409
        %v1454 = vsel %vm1446, -1e+30, %v1414
        %v1455 = vsel %vm1447, -1e+30, %v1417
        %1456 = vmax.xlane.f32.xlu0 %v1448
        %v1457 = vpop.xlane.xlu0 %1456
        %1458 = vmax.xlane.f32.xlu0 %v1449
        %v1459 = vpop.xlane.xlu0 %1458
        %1460 = vmax.xlane.f32.xlu0 %v1450
        %v1461 = vpop.xlane.xlu0 %1460
        %1462 = vmax.xlane.f32.xlu0 %v1451
        %v1463 = vpop.xlane.xlu0 %1462
        %1464 = vmax.xlane.f32.xlu0 %v1452
        %v1465 = vpop.xlane.xlu0 %1464
        %1466 = vmax.xlane.f32.xlu0 %v1453
        %v1467 = vpop.xlane.xlu0 %1466
        %1468 = vmax.xlane.f32.xlu0 %v1454
        %v1469 = vpop.xlane.xlu0 %1468
        %1470 = vmax.xlane.f32.xlu0 %v1455
        %v1471 = vpop.xlane.xlu0 %1470
        %v1472 = vsub.f32 %v1448, %v1457
        %v1473 = vsub.f32 %v1449, %v1459
        %v1474 = vsub.f32 %v1450, %v1461
        %v1475 = vsub.f32 %v1451, %v1463
        %v1476 = vsub.f32 %v1452, %v1465
        %v1477 = vsub.f32 %v1453, %v1467
        %v1478 = vsub.f32 %v1454, %v1469
        %v1479 = vsub.f32 %v1455, %v1471
        %v1480 = vmul.f32 %v1472, 1.442695
        %v1481 = vpow.pop %v1480
        %v1482 = vmul.f32 %v1473, 1.442695
        %v1483 = vpow.pop %v1482
        %v1484 = vmul.f32 %v1474, 1.442695
        %v1485 = vpow.pop %v1484
        %v1486 = vmul.f32 %v1475, 1.442695
        %v1487 = vpow.pop %v1486
        %v1488 = vmul.f32 %v1476, 1.442695
        %v1489 = vpow.pop %v1488
        %v1490 = vmul.f32 %v1477, 1.442695
        %v1491 = vpow.pop %v1490
        %v1492 = vmul.f32 %v1478, 1.442695
        %v1493 = vpow.pop %v1492
        %v1494 = vmul.f32 %v1479, 1.442695
        %v1495 = vpow.pop %v1494
        %1496 = vadd.xlane.f32.xlu0 %v1481
        %v1497 = vpop.xlane.xlu0 %1496
        %1498 = vadd.xlane.f32.xlu0 %v1483
        %v1499 = vpop.xlane.xlu0 %1498
        %1500 = vadd.xlane.f32.xlu0 %v1485
        %v1501 = vpop.xlane.xlu0 %1500
        %1502 = vadd.xlane.f32.xlu0 %v1487
        %v1503 = vpop.xlane.xlu0 %1502
        %1504 = vadd.xlane.f32.xlu0 %v1489
        %v1505 = vpop.xlane.xlu0 %1504
        %1506 = vadd.xlane.f32.xlu0 %v1491
        %v1507 = vpop.xlane.xlu0 %1506
        %1508 = vadd.xlane.f32.xlu0 %v1493
        %v1509 = vpop.xlane.xlu0 %1508
        %1510 = vadd.xlane.f32.xlu0 %v1495
        %v1511 = vpop.xlane.xlu0 %1510
        %v1512 = vpack.c.bf16 %v1483, %v1481
        %v1513 = vpack.c.bf16 %v1487, %v1485
        %v1514 = vpack.c.bf16 %v1491, %v1489
        %v1515 = vpack.c.bf16 %v1495, %v1493
        %1516 = vmatprep.subr.bf16.mxu0 0
        %1517 = vmatpush1.bf16.msra.mxu0 %v1036
        %1518 = vmatprep.subr.bf16.mxu0 0
        %1519 = vmatpush1.bf16.msra.mxu0 %v1037
        %1520 = vmatprep.subr.bf16.mxu0 0
        %1521 = vmatpush1.bf16.msra.mxu0 %v1038
        %1522 = vmatprep.subr.bf16.mxu0 0
        %1523 = vmatpush1.bf16.msra.mxu0 %v1039
        %1524 = vmatprep.subr.bf16.mxu0 0
        %1525 = vmatpush1.bf16.msra.mxu0 %v1040
        %1526 = vmatprep.subr.bf16.mxu0 0
        %1527 = vmatpush1.bf16.msra.mxu0 %v1041
        %1528 = vmatprep.subr.bf16.mxu0 0
        %1529 = vmatpush1.bf16.msra.mxu0 %v1042
        %1530 = vmatprep.subr.bf16.mxu0 0
        %1531 = vmatpush1.bf16.msra.mxu0 %v1043
        %1532 = vmatprep.subr.bf16.mxu0 0
        %1533 = vmatpush1.bf16.msra.mxu0 0
        %1534 = vmatprep.subr.bf16.mxu0 0
        %1535 = vmatpush1.bf16.msra.mxu0 0
        %1536 = vmatprep.subr.bf16.mxu0 0
        %1537 = vmatpush1.bf16.msra.mxu0 0
        %1538 = vmatprep.subr.bf16.mxu0 0
        %1539 = vmatpush1.bf16.msra.mxu0 0
        %1540 = vmatprep.subr.bf16.mxu0 0
        %1541 = vmatpush1.bf16.msra.mxu0 0
        %1542 = vmatprep.subr.bf16.mxu0 0
        %1543 = vmatpush1.bf16.msra.mxu0 0
        %1544 = vmatprep.subr.bf16.mxu0 0
        %1545 = vmatpush1.bf16.msra.mxu0 0
        %1546 = vmatprep.subr.bf16.mxu0 0
        %1547 = vmatpush1.bf16.msra.mxu0 0
        %1548 = vmatprep.mubr.bf16.mxu0 0
        %1549 = vmatmul.mubr.bf16.gmra.mrb[0].mxu0 %v1512
        %v1550 = vpop.f32.mrb[0].mxu0
        %v1551 = vadd.f32 0.0, %v1550
        %v1552 = vpop.f32.mrb[0].mxu0
        %v1553 = vpop.f32.mrb[0].mxu0
        %v1554 = vadd.f32 0.0, %v1553
        %v1555 = vpop.f32.mrb[0].mxu0
        %1556 = vmatprep.mubr.bf16.mxu0 0
        %1557 = vmatmul.mubr.bf16.gmra.mrb[0].mxu0 %v1513
        %v1558 = vpop.f32.mrb[0].mxu0
        %v1559 = vadd.f32 0.0, %v1558
        %v1560 = vpop.f32.mrb[0].mxu0
        %v1561 = vpop.f32.mrb[0].mxu0
        %v1562 = vadd.f32 0.0, %v1561
        %v1563 = vpop.f32.mrb[0].mxu0
        %1564 = vmatprep.mubr.bf16.mxu0 0
        %1565 = vmatmul.mubr.bf16.gmra.mrb[0].mxu0 %v1514
        %v1566 = vpop.f32.mrb[0].mxu0
        %v1567 = vadd.f32 0.0, %v1566
        %v1568 = vpop.f32.mrb[0].mxu0
        %v1569 = vpop.f32.mrb[0].mxu0
        %v1570 = vadd.f32 0.0, %v1569
        %v1571 = vpop.f32.mrb[0].mxu0
        %1572 = vmatprep.mubr.bf16.mxu0 0
        %1573 = vmatmul.mubr.bf16.gmra.mrb[0].mxu0 %v1515
        %v1574 = vpop.f32.mrb[0].mxu0
        %v1575 = vadd.f32 0.0, %v1574
        %v1576 = vpop.f32.mrb[0].mxu0
        %v1577 = vpop.f32.mrb[0].mxu0
        %v1578 = vadd.f32 0.0, %v1577
        %v1579 = vpop.f32.mrb[0].mxu0
        %1580 = vdwg.mxu0
        %v1581 = vrcp.pop %v1497
        %v1582 = vrcp.pop %v1499
        %v1583 = vrcp.pop %v1501
        %v1584 = vrcp.pop %v1503
        %v1585 = vrcp.pop %v1505
        %v1586 = vrcp.pop %v1507
        %v1587 = vrcp.pop %v1509
        %v1588 = vrcp.pop %v1511
        %v1589 = vmul.f32 %v1551, %v1581
        %v1590 = vmul.f32 %v1554, %v1582
        %v1591 = vmul.f32 %v1559, %v1583
        %v1592 = vmul.f32 %v1562, %v1584
        %v1593 = vmul.f32 %v1567, %v1585
        %v1594 = vmul.f32 %v1570, %v1586
        %v1595 = vmul.f32 %v1575, %v1587
        %v1596 = vmul.f32 %v1578, %v1588
        %v1597 = vpack.c.bf16 %v1590, %v1589
        %v1598 = vpack.c.bf16 %v1592, %v1591
        %v1599 = vpack.c.bf16 %v1594, %v1593
        %v1600 = vpack.c.bf16 %v1596, %v1595
        %s1601 = smul.u32 0, 2
        %s1602 = smul.addr %s1601, 8
        %s1603 = scalar_lea.vmem [#allocation2], %s1602
        %1604 = vst [vmem:[%s1603] sm:$0xff] %v1597
        %1605 = vst [vmem:[%s1603 + $0x10] sm:$0xff] %v1598
        %1606 = vst [vmem:[%s1603 + $0x20] sm:$0xff] %v1599
        %1607 = vst [vmem:[%s1603 + $0x30] sm:$0xff] %v1600
        %s1608 = smul.u32 8, 2
        %s1609 = smul.addr %s1608, 4
        %s1610 = scalar_lea.vmem %s308, %s1609 [#allocation3]
        %v1611 = vld [vmem:[%s1610] sm:$0xff]
        %v1612 = vld [vmem:[%s1610 + $0x8] sm:$0xff]
        %v1613 = vld [vmem:[%s1610 + $0x10] sm:$0xff]
        %v1614 = vld [vmem:[%s1610 + $0x18] sm:$0xff]
        %v1615 = vld [vmem:[%s1610 + $0x20] sm:$0xff]
        %v1616 = vld [vmem:[%s1610 + $0x28] sm:$0xff]
        %v1617 = vld [vmem:[%s1610 + $0x30] sm:$0xff]
        %v1618 = vld [vmem:[%s1610 + $0x38] sm:$0xff]
        %v1619 = vld [vmem:[#allocation6] sm:$0xf]
        %v1620 = vld [vmem:[#allocation6 + $0x18] sm:$0xf]
        %v1621 = vld [vmem:[#allocation6 + $0x30] sm:$0xf]
        %v1622 = vld [vmem:[#allocation6 + $0x48] sm:$0xf]
        %v1623 = vld [vmem:[#allocation6 + $0x60] sm:$0xf]
        %v1624 = vld [vmem:[#allocation6 + $0x78] sm:$0xf]
        %v1625 = vld [vmem:[#allocation6 + $0x90] sm:$0xf]
        %v1626 = vld [vmem:[#allocation6 + $0xa8] sm:$0xf]
        %v1627 = vld [vmem:[#allocation6 + $0xc0] sm:$0xf]
        %v1628 = vld [vmem:[#allocation6 + $0xd8] sm:$0xf]
        %v1629 = vld [vmem:[#allocation6 + $0xf0] sm:$0xf]
        %v1630 = vld [vmem:[#allocation6 + $0x108] sm:$0xf]
        %v1631 = vld [vmem:[#allocation6 + $0x120] sm:$0xf]
        %v1632 = vld [vmem:[#allocation6 + $0x138] sm:$0xf]
        %v1633 = vld [vmem:[#allocation6 + $0x150] sm:$0xf]
        %v1634 = vld [vmem:[#allocation6 + $0x168] sm:$0xf]
        %v1635 = vld [vmem:[#allocation6 + $0x180] sm:$0xf]
        %v1636 = vld [vmem:[#allocation6 + $0x198] sm:$0xf]
        %v1637 = vld [vmem:[#allocation6 + $0x1b0] sm:$0xf]
        %v1638 = vld [vmem:[#allocation6 + $0x1c8] sm:$0xf]
        %v1639 = vld [vmem:[#allocation6 + $0x1e0] sm:$0xf]
        %v1640 = vld [vmem:[#allocation6 + $0x1f8] sm:$0xf]
        %v1641 = vld [vmem:[#allocation6 + $0x210] sm:$0xf]
        %v1642 = vld [vmem:[#allocation6 + $0x228] sm:$0xf]
        %v1643 = vld [vmem:[#allocation6 + $0x240] sm:$0xf]
        %v1644 = vld [vmem:[#allocation6 + $0x258] sm:$0xf]
        %v1645 = vld [vmem:[#allocation6 + $0x270] sm:$0xf]
        %v1646 = vld [vmem:[#allocation6 + $0x288] sm:$0xf]
        %v1647 = vld [vmem:[#allocation6 + $0x2a0] sm:$0xf]
        %v1648 = vld [vmem:[#allocation6 + $0x2b8] sm:$0xf]
        %v1649 = vld [vmem:[#allocation6 + $0x2d0] sm:$0xf]
        %v1650 = vld [vmem:[#allocation6 + $0x2e8] sm:$0xf]
        %v1651 = vld [vmem:[%s2] sm:$0x1]
        %v1653 = vlaneseq
        %v1654 = vshrl.u32 %v1653, 7
        %v1655 = vsub.s32 0, %v1654
        %v1656 = vrot.slane %v1651, %v1655
        %v1666 = vunpack.c.l.b16 %v1611
        %v1667 = vunpack.c.h.b16 %v1611
        %v1668 = vunpack.c.l.b16 %v1612
        %v1669 = vunpack.c.h.b16 %v1612
        %v1670 = vunpack.c.l.b16 %v1613
        %v1671 = vunpack.c.h.b16 %v1613
        %v1672 = vunpack.c.l.b16 %v1614
        %v1673 = vunpack.c.h.b16 %v1614
        %v1674 = vunpack.c.l.b16 %v1615
        %v1675 = vunpack.c.h.b16 %v1615
        %v1676 = vunpack.c.l.b16 %v1616
        %v1677 = vunpack.c.h.b16 %v1616
        %v1678 = vunpack.c.l.b16 %v1617
        %v1679 = vunpack.c.h.b16 %v1617
        %v1680 = vunpack.c.l.b16 %v1618
        %v1681 = vunpack.c.h.b16 %v1618
        %v1682 = vpack.c.b16 %v1668, %v1666
        %v1683 = vpack.c.b16 %v1669, %v1667
        %v1684 = vpack.c.b16 %v1672, %v1670
        %v1685 = vpack.c.b16 %v1673, %v1671
        %v1686 = vpack.c.b16 %v1676, %v1674
        %v1687 = vpack.c.b16 %v1677, %v1675
        %v1688 = vpack.c.b16 %v1680, %v1678
        %v1689 = vpack.c.b16 %v1681, %v1679
        %v1730 = vunpack.c.l.b16 %v1619
        %v1731 = vunpack.c.l.b16 %v1620
        %v1732 = vunpack.c.l.b16 %v1621
        %v1733 = vunpack.c.l.b16 %v1622
        %v1734 = vunpack.c.l.b16 %v1623
        %v1735 = vunpack.c.l.b16 %v1624
        %v1736 = vunpack.c.l.b16 %v1625
        %v1737 = vunpack.c.l.b16 %v1626
        %v1738 = vunpack.c.l.b16 %v1627
        %v1739 = vunpack.c.l.b16 %v1628
        %v1740 = vunpack.c.l.b16 %v1629
        %v1741 = vunpack.c.l.b16 %v1630
        %v1742 = vunpack.c.l.b16 %v1631
        %v1743 = vunpack.c.l.b16 %v1632
        %v1744 = vunpack.c.l.b16 %v1633
        %v1745 = vunpack.c.l.b16 %v1634
        %v1746 = vunpack.c.l.b16 %v1635
        %v1747 = vunpack.c.l.b16 %v1636
        %v1748 = vunpack.c.l.b16 %v1637
        %v1749 = vunpack.c.l.b16 %v1638
        %v1750 = vunpack.c.l.b16 %v1639
        %v1751 = vunpack.c.l.b16 %v1640
        %v1752 = vunpack.c.l.b16 %v1641
        %v1753 = vunpack.c.l.b16 %v1642
        %v1754 = vunpack.c.l.b16 %v1643
        %v1755 = vunpack.c.l.b16 %v1644
        %v1756 = vunpack.c.l.b16 %v1645
        %v1757 = vunpack.c.l.b16 %v1646
        %v1758 = vunpack.c.l.b16 %v1647
        %v1759 = vunpack.c.l.b16 %v1648
        %v1760 = vunpack.c.l.b16 %v1649
        %v1761 = vunpack.c.l.b16 %v1650
        %v1762 = vpack.c.b16 %v1731, %v1730
        %v1763 = vpack.c.b16 %v1733, %v1732
        %v1764 = vpack.c.b16 %v1735, %v1734
        %v1765 = vpack.c.b16 %v1737, %v1736
        %v1766 = vpack.c.b16 %v1739, %v1738
        %v1767 = vpack.c.b16 %v1741, %v1740
        %v1768 = vpack.c.b16 %v1743, %v1742
        %v1769 = vpack.c.b16 %v1745, %v1744
        %v1770 = vpack.c.b16 %v1747, %v1746
        %v1771 = vpack.c.b16 %v1749, %v1748
        %v1772 = vpack.c.b16 %v1751, %v1750
        %v1773 = vpack.c.b16 %v1753, %v1752
        %v1774 = vpack.c.b16 %v1755, %v1754
        %v1775 = vpack.c.b16 %v1757, %v1756
        %v1776 = vpack.c.b16 %v1759, %v1758
        %v1777 = vpack.c.b16 %v1761, %v1760
        %1794 = vmatprep.subr.bf16.mxu0 0
        %1795 = vmatpush1.bf16.msra.mxu0 %v1762
        %1796 = vmatprep.subr.bf16.mxu0 0
        %1797 = vmatpush1.bf16.msra.mxu0 %v1763
        %1798 = vmatprep.subr.bf16.mxu0 0
        %1799 = vmatpush1.bf16.msra.mxu0 %v1764
        %1800 = vmatprep.subr.bf16.mxu0 0
        %1801 = vmatpush1.bf16.msra.mxu0 %v1765
        %1802 = vmatprep.subr.bf16.mxu0 0
        %1803 = vmatpush1.bf16.msra.mxu0 %v1766
        %1804 = vmatprep.subr.bf16.mxu0 0
        %1805 = vmatpush1.bf16.msra.mxu0 %v1767
        %1806 = vmatprep.subr.bf16.mxu0 0
        %1807 = vmatpush1.bf16.msra.mxu0 %v1768
        %1808 = vmatprep.subr.bf16.mxu0 0
        %1809 = vmatpush1.bf16.msra.mxu0 %v1769
        %1810 = vmatprep.subr.bf16.mxu0 0
        %1811 = vmatpush1.bf16.msra.mxu0 %v1770
        %1812 = vmatprep.subr.bf16.mxu0 0
        %1813 = vmatpush1.bf16.msra.mxu0 %v1771
        %1814 = vmatprep.subr.bf16.mxu0 0
        %1815 = vmatpush1.bf16.msra.mxu0 %v1772
        %1816 = vmatprep.subr.bf16.mxu0 0
        %1817 = vmatpush1.bf16.msra.mxu0 %v1773
        %1818 = vmatprep.subr.bf16.mxu0 0
        %1819 = vmatpush1.bf16.msra.mxu0 %v1774
        %1820 = vmatprep.subr.bf16.mxu0 0
        %1821 = vmatpush1.bf16.msra.mxu0 %v1775
        %1822 = vmatprep.subr.bf16.mxu0 0
        %1823 = vmatpush1.bf16.msra.mxu0 %v1776
        %1824 = vmatprep.subr.bf16.mxu0 0
        %1825 = vmatpush1.bf16.msra.mxu0 %v1777
        %1826 = vmatprep.mubr.bf16.mxu0 %v1683
        %1827 = vmatmul.mubr.bf16.gmra.mrb[0].mxu0 %v1682
        %v1828 = vpop.f32.mrb[0].mxu0
        %v1829 = vadd.f32 %v1656, %v1828
        %v1830 = vpop.f32.mrb[0].mxu0
        %v1831 = vpop.f32.mrb[0].mxu0
        %v1832 = vadd.f32 %v1656, %v1831
        %v1833 = vpop.f32.mrb[0].mxu0
        %1834 = vmatprep.mubr.bf16.mxu0 %v1685
        %1835 = vmatmul.mubr.bf16.gmra.mrb[0].mxu0 %v1684
        %v1836 = vpop.f32.mrb[0].mxu0
        %v1837 = vadd.f32 %v1656, %v1836
        %v1838 = vpop.f32.mrb[0].mxu0
        %v1839 = vpop.f32.mrb[0].mxu0
        %v1840 = vadd.f32 %v1656, %v1839
        %v1841 = vpop.f32.mrb[0].mxu0
        %1842 = vmatprep.mubr.bf16.mxu0 %v1687
        %1843 = vmatmul.mubr.bf16.gmra.mrb[0].mxu0 %v1686
        %v1844 = vpop.f32.mrb[0].mxu0
        %v1845 = vadd.f32 %v1656, %v1844
        %v1846 = vpop.f32.mrb[0].mxu0
        %v1847 = vpop.f32.mrb[0].mxu0
        %v1848 = vadd.f32 %v1656, %v1847
        %v1849 = vpop.f32.mrb[0].mxu0
        %1850 = vmatprep.mubr.bf16.mxu0 %v1689
        %1851 = vmatmul.mubr.bf16.gmra.mrb[0].mxu0 %v1688
        %v1852 = vpop.f32.mrb[0].mxu0
        %v1853 = vadd.f32 %v1656, %v1852
        %v1854 = vpop.f32.mrb[0].mxu0
        %v1855 = vpop.f32.mrb[0].mxu0
        %v1856 = vadd.f32 %v1656, %v1855
        %v1857 = vpop.f32.mrb[0].mxu0
        %1858 = vdwg.mxu0
        %s1859 = scalar_lea.vmem [#allocation9], 64
        %v1860 = vld [vmem:[%s1859] sm:$0xff]
        %v1861 = vld [vmem:[%s1859 + $0x8] sm:$0xff]
        %v1862 = vld [vmem:[%s1859 + $0x10] sm:$0xff]
        %v1863 = vld [vmem:[%s1859 + $0x18] sm:$0xff]
        %v1864 = vld [vmem:[%s1859 + $0x20] sm:$0xff]
        %v1865 = vld [vmem:[%s1859 + $0x28] sm:$0xff]
        %v1866 = vld [vmem:[%s1859 + $0x30] sm:$0xff]
        %v1867 = vld [vmem:[%s1859 + $0x38] sm:$0xff]
        %s1868 = scalar_lea.vmem [#allocation11], 64
        %v1869 = vld [vmem:[%s1868] sm:$0xff]
        %v1870 = vld [vmem:[%s1868 + $0x8] sm:$0xff]
        %v1871 = vld [vmem:[%s1868 + $0x10] sm:$0xff]
        %v1872 = vld [vmem:[%s1868 + $0x18] sm:$0xff]
        %v1873 = vld [vmem:[%s1868 + $0x20] sm:$0xff]
        %v1874 = vld [vmem:[%s1868 + $0x28] sm:$0xff]
        %v1875 = vld [vmem:[%s1868 + $0x30] sm:$0xff]
        %v1876 = vld [vmem:[%s1868 + $0x38] sm:$0xff]
        %v1877 = vmul.f32 %v1860, %v1829
        %v1878 = vmul.f32 %v1861, %v1832
        %v1879 = vmul.f32 %v1862, %v1837
        %v1880 = vmul.f32 %v1863, %v1840
        %v1881 = vmul.f32 %v1864, %v1845
        %v1882 = vmul.f32 %v1865, %v1848
        %v1883 = vmul.f32 %v1866, %v1853
        %v1884 = vmul.f32 %v1867, %v1856
        %1885 = vrot.lane.b32.xlu0 %v1829, 64
        %v1886 = vpop.permute.xlu0 %1885
        %1887 = vrot.lane.b32.xlu0 %v1832, 64
        %v1888 = vpop.permute.xlu0 %1887
        %1889 = vrot.lane.b32.xlu0 %v1837, 64
        %v1890 = vpop.permute.xlu0 %1889
        %1891 = vrot.lane.b32.xlu0 %v1840, 64
        %v1892 = vpop.permute.xlu0 %1891
        %1893 = vrot.lane.b32.xlu0 %v1845, 64
        %v1894 = vpop.permute.xlu0 %1893
        %1895 = vrot.lane.b32.xlu0 %v1848, 64
        %v1896 = vpop.permute.xlu0 %1895
        %1897 = vrot.lane.b32.xlu0 %v1853, 64
        %v1898 = vpop.permute.xlu0 %1897
        %1899 = vrot.lane.b32.xlu0 %v1856, 64
        %v1900 = vpop.permute.xlu0 %1899
        %v1901 = vmul.f32 %v1869, %v1886
        %v1902 = vmul.f32 %v1870, %v1888
        %v1903 = vmul.f32 %v1871, %v1890
        %v1904 = vmul.f32 %v1872, %v1892
        %v1905 = vmul.f32 %v1873, %v1894
        %v1906 = vmul.f32 %v1874, %v1896
        %v1907 = vmul.f32 %v1875, %v1898
        %v1908 = vmul.f32 %v1876, %v1900
        %v1909 = vadd.f32 %v1877, %v1901
        %v1910 = vadd.f32 %v1878, %v1902
        %v1911 = vadd.f32 %v1879, %v1903
        %v1912 = vadd.f32 %v1880, %v1904
        %v1913 = vadd.f32 %v1881, %v1905
        %v1914 = vadd.f32 %v1882, %v1906
        %v1915 = vadd.f32 %v1883, %v1907
        %v1916 = vadd.f32 %v1884, %v1908
        %v1917 = vpack.c.bf16 %v1910, %v1909
        %v1918 = vpack.c.bf16 %v1912, %v1911
        %v1919 = vpack.c.bf16 %v1914, %v1913
        %v1920 = vpack.c.bf16 %v1916, %v1915
        %1921 = vmatprep.subr.bf16.mxu0 0
        %1922 = vmatpush1.bf16.xpose.msra.mxu0 %v1028
        %1923 = vmatprep.subr.bf16.mxu0 0
        %1924 = vmatpush1.bf16.xpose.msra.mxu0 %v1029
        %1925 = vmatprep.subr.bf16.mxu0 0
        %1926 = vmatpush1.bf16.xpose.msra.mxu0 %v1030
        %1927 = vmatprep.subr.bf16.mxu0 0
        %1928 = vmatpush1.bf16.xpose.msra.mxu0 %v1031
        %1929 = vmatprep.subr.bf16.mxu0 0
        %1930 = vmatpush1.bf16.xpose.msra.mxu0 %v1032
        %1931 = vmatprep.subr.bf16.mxu0 0
        %1932 = vmatpush1.bf16.xpose.msra.mxu0 %v1033
        %1933 = vmatprep.subr.bf16.mxu0 0
        %1934 = vmatpush1.bf16.xpose.msra.mxu0 %v1034
        %1935 = vmatprep.subr.bf16.mxu0 0
        %1936 = vmatpush1.bf16.xpose.msra.mxu0 %v1035
        %1937 = vmatprep.subr.bf16.mxu0 0
        %1938 = vmatpush1.bf16.xpose.msra.mxu0 0
        %1939 = vmatprep.subr.bf16.mxu0 0
        %1940 = vmatpush1.bf16.xpose.msra.mxu0 0
        %1941 = vmatprep.subr.bf16.mxu0 0
        %1942 = vmatpush1.bf16.xpose.msra.mxu0 0
        %1943 = vmatprep.subr.bf16.mxu0 0
        %1944 = vmatpush1.bf16.xpose.msra.mxu0 0
        %1945 = vmatprep.subr.bf16.mxu0 0
        %1946 = vmatpush1.bf16.xpose.msra.mxu0 0
        %1947 = vmatprep.subr.bf16.mxu0 0
        %1948 = vmatpush1.bf16.xpose.msra.mxu0 0
        %1949 = vmatprep.subr.bf16.mxu0 0
        %1950 = vmatpush1.bf16.xpose.msra.mxu0 0
        %1951 = vmatprep.subr.bf16.mxu0 0
        %1952 = vmatpush1.bf16.xpose.msra.mxu0 0
        %1953 = vmatprep.mubr.bf16.mxu0 0
        %1954 = vmatmul.mubr.bf16.gmra.mrb[0].mxu0 %v1917
        %v1955 = vpop.f32.mrb[0].mxu0
        %v1956 = vadd.f32 0.0, %v1955
        %v1957 = vpop.f32.mrb[0].mxu0
        %v1958 = vpop.f32.mrb[0].mxu0
        %v1959 = vadd.f32 0.0, %v1958
        %v1960 = vpop.f32.mrb[0].mxu0
        %1961 = vmatprep.mubr.bf16.mxu0 0
        %1962 = vmatmul.mubr.bf16.gmra.mrb[0].mxu0 %v1918
        %v1963 = vpop.f32.mrb[0].mxu0
        %v1964 = vadd.f32 0.0, %v1963
        %v1965 = vpop.f32.mrb[0].mxu0
        %v1966 = vpop.f32.mrb[0].mxu0
        %v1967 = vadd.f32 0.0, %v1966
        %v1968 = vpop.f32.mrb[0].mxu0
        %1969 = vmatprep.mubr.bf16.mxu0 0
        %1970 = vmatmul.mubr.bf16.gmra.mrb[0].mxu0 %v1919
        %v1971 = vpop.f32.mrb[0].mxu0
        %v1972 = vadd.f32 0.0, %v1971
        %v1973 = vpop.f32.mrb[0].mxu0
        %v1974 = vpop.f32.mrb[0].mxu0
        %v1975 = vadd.f32 0.0, %v1974
        %v1976 = vpop.f32.mrb[0].mxu0
        %1977 = vmatprep.mubr.bf16.mxu0 0
        %1978 = vmatmul.mubr.bf16.gmra.mrb[0].mxu0 %v1920
        %v1979 = vpop.f32.mrb[0].mxu0
        %v1980 = vadd.f32 0.0, %v1979
        %v1981 = vpop.f32.mrb[0].mxu0
        %v1982 = vpop.f32.mrb[0].mxu0
        %v1983 = vadd.f32 0.0, %v1982
        %v1984 = vpop.f32.mrb[0].mxu0
        %1985 = vdwg.mxu0
        %v1986 = vstv 64
        %v1987 = vadd.s32 %v1421, %v1986
        %v1988 = vadd.s32 %v1422, %v1986
        %v1989 = vadd.s32 %v1423, %v1986
        %v1990 = vadd.s32 %v1424, %v1986
        %v1991 = vadd.s32 %v1425, %v1986
        %v1992 = vadd.s32 %v1426, %v1986
        %v1993 = vadd.s32 %v1427, %v1986
        %v1994 = vadd.s32 %v1428, %v1986
        %vm1995 = vcmp.gt.s32.totalorder %v1439, %v1987
        %vm1996 = vcmp.gt.s32.totalorder %v1439, %v1988
        %vm1997 = vcmp.gt.s32.totalorder %v1439, %v1989
        %vm1998 = vcmp.gt.s32.totalorder %v1439, %v1990
        %vm1999 = vcmp.gt.s32.totalorder %v1439, %v1991
        %vm2000 = vcmp.gt.s32.totalorder %v1439, %v1992
        %vm2001 = vcmp.gt.s32.totalorder %v1439, %v1993
        %vm2002 = vcmp.gt.s32.totalorder %v1439, %v1994
        %v2003 = vsel %vm1995, -1e+30, %v1956
        %v2004 = vsel %vm1996, -1e+30, %v1959
        %v2005 = vsel %vm1997, -1e+30, %v1964
        %v2006 = vsel %vm1998, -1e+30, %v1967
        %v2007 = vsel %vm1999, -1e+30, %v1972
        %v2008 = vsel %vm2000, -1e+30, %v1975
        %v2009 = vsel %vm2001, -1e+30, %v1980
        %v2010 = vsel %vm2002, -1e+30, %v1983
        %2011 = vmax.xlane.f32.xlu0 %v2003
        %v2012 = vpop.xlane.xlu0 %2011
        %2013 = vmax.xlane.f32.xlu0 %v2004
        %v2014 = vpop.xlane.xlu0 %2013
        %2015 = vmax.xlane.f32.xlu0 %v2005
        %v2016 = vpop.xlane.xlu0 %2015
        %2017 = vmax.xlane.f32.xlu0 %v2006
        %v2018 = vpop.xlane.xlu0 %2017
        %2019 = vmax.xlane.f32.xlu0 %v2007
        %v2020 = vpop.xlane.xlu0 %2019
        %2021 = vmax.xlane.f32.xlu0 %v2008
        %v2022 = vpop.xlane.xlu0 %2021
        %2023 = vmax.xlane.f32.xlu0 %v2009
        %v2024 = vpop.xlane.xlu0 %2023
        %2025 = vmax.xlane.f32.xlu0 %v2010
        %v2026 = vpop.xlane.xlu0 %2025
        %v2027 = vsub.f32 %v2003, %v2012
        %v2028 = vsub.f32 %v2004, %v2014
        %v2029 = vsub.f32 %v2005, %v2016
        %v2030 = vsub.f32 %v2006, %v2018
        %v2031 = vsub.f32 %v2007, %v2020
        %v2032 = vsub.f32 %v2008, %v2022
        %v2033 = vsub.f32 %v2009, %v2024
        %v2034 = vsub.f32 %v2010, %v2026
        %v2035 = vmul.f32 %v2027, 1.442695
        %v2036 = vpow.pop %v2035
        %v2037 = vmul.f32 %v2028, 1.442695
        %v2038 = vpow.pop %v2037
        %v2039 = vmul.f32 %v2029, 1.442695
        %v2040 = vpow.pop %v2039
        %v2041 = vmul.f32 %v2030, 1.442695
        %v2042 = vpow.pop %v2041
        %v2043 = vmul.f32 %v2031, 1.442695
        %v2044 = vpow.pop %v2043
        %v2045 = vmul.f32 %v2032, 1.442695
        %v2046 = vpow.pop %v2045
        %v2047 = vmul.f32 %v2033, 1.442695
        %v2048 = vpow.pop %v2047
        %v2049 = vmul.f32 %v2034, 1.442695
        %v2050 = vpow.pop %v2049
        %2051 = vadd.xlane.f32.xlu0 %v2036
        %v2052 = vpop.xlane.xlu0 %2051
        %2053 = vadd.xlane.f32.xlu0 %v2038
        %v2054 = vpop.xlane.xlu0 %2053
        %2055 = vadd.xlane.f32.xlu0 %v2040
        %v2056 = vpop.xlane.xlu0 %2055
        %2057 = vadd.xlane.f32.xlu0 %v2042
        %v2058 = vpop.xlane.xlu0 %2057
        %2059 = vadd.xlane.f32.xlu0 %v2044
        %v2060 = vpop.xlane.xlu0 %2059
        %2061 = vadd.xlane.f32.xlu0 %v2046
        %v2062 = vpop.xlane.xlu0 %2061
        %2063 = vadd.xlane.f32.xlu0 %v2048
        %v2064 = vpop.xlane.xlu0 %2063
        %2065 = vadd.xlane.f32.xlu0 %v2050
        %v2066 = vpop.xlane.xlu0 %2065
        %v2067 = vpack.c.bf16 %v2038, %v2036
        %v2068 = vpack.c.bf16 %v2042, %v2040
        %v2069 = vpack.c.bf16 %v2046, %v2044
        %v2070 = vpack.c.bf16 %v2050, %v2048
        %2071 = vmatprep.subr.bf16.mxu0 0
        %2072 = vmatpush1.bf16.msra.mxu0 %v1036
        %2073 = vmatprep.subr.bf16.mxu0 0
        %2074 = vmatpush1.bf16.msra.mxu0 %v1037
        %2075 = vmatprep.subr.bf16.mxu0 0
        %2076 = vmatpush1.bf16.msra.mxu0 %v1038
        %2077 = vmatprep.subr.bf16.mxu0 0
        %2078 = vmatpush1.bf16.msra.mxu0 %v1039
        %2079 = vmatprep.subr.bf16.mxu0 0
        %2080 = vmatpush1.bf16.msra.mxu0 %v1040
        %2081 = vmatprep.subr.bf16.mxu0 0
        %2082 = vmatpush1.bf16.msra.mxu0 %v1041
        %2083 = vmatprep.subr.bf16.mxu0 0
        %2084 = vmatpush1.bf16.msra.mxu0 %v1042
        %2085 = vmatprep.subr.bf16.mxu0 0
        %2086 = vmatpush1.bf16.msra.mxu0 %v1043
        %2087 = vmatprep.subr.bf16.mxu0 0
        %2088 = vmatpush1.bf16.msra.mxu0 0
        %2089 = vmatprep.subr.bf16.mxu0 0
        %2090 = vmatpush1.bf16.msra.mxu0 0
        %2091 = vmatprep.subr.bf16.mxu0 0
        %2092 = vmatpush1.bf16.msra.mxu0 0
        %2093 = vmatprep.subr.bf16.mxu0 0
        %2094 = vmatpush1.bf16.msra.mxu0 0
        %2095 = vmatprep.subr.bf16.mxu0 0
        %2096 = vmatpush1.bf16.msra.mxu0 0
        %2097 = vmatprep.subr.bf16.mxu0 0
        %2098 = vmatpush1.bf16.msra.mxu0 0
        %2099 = vmatprep.subr.bf16.mxu0 0
        %2100 = vmatpush1.bf16.msra.mxu0 0
        %2101 = vmatprep.subr.bf16.mxu0 0
        %2102 = vmatpush1.bf16.msra.mxu0 0
        %2103 = vmatprep.mubr.bf16.mxu0 0
        %2104 = vmatmul.mubr.bf16.gmra.mrb[0].mxu0 %v2067
        %v2105 = vpop.f32.mrb[0].mxu0
        %v2106 = vadd.f32 0.0, %v2105
        %v2107 = vpop.f32.mrb[0].mxu0
        %v2108 = vpop.f32.mrb[0].mxu0
        %v2109 = vadd.f32 0.0, %v2108
        %v2110 = vpop.f32.mrb[0].mxu0
        %2111 = vmatprep.mubr.bf16.mxu0 0
        %2112 = vmatmul.mubr.bf16.gmra.mrb[0].mxu0 %v2068
        %v2113 = vpop.f32.mrb[0].mxu0
        %v2114 = vadd.f32 0.0, %v2113
        %v2115 = vpop.f32.mrb[0].mxu0
        %v2116 = vpop.f32.mrb[0].mxu0
        %v2117 = vadd.f32 0.0, %v2116
        %v2118 = vpop.f32.mrb[0].mxu0
        %2119 = vmatprep.mubr.bf16.mxu0 0
        %2120 = vmatmul.mubr.bf16.gmra.mrb[0].mxu0 %v2069
        %v2121 = vpop.f32.mrb[0].mxu0
        %v2122 = vadd.f32 0.0, %v2121
        %v2123 = vpop.f32.mrb[0].mxu0
        %v2124 = vpop.f32.mrb[0].mxu0
        %v2125 = vadd.f32 0.0, %v2124
        %v2126 = vpop.f32.mrb[0].mxu0
        %2127 = vmatprep.mubr.bf16.mxu0 0
        %2128 = vmatmul.mubr.bf16.gmra.mrb[0].mxu0 %v2070
        %v2129 = vpop.f32.mrb[0].mxu0
        %v2130 = vadd.f32 0.0, %v2129
        %v2131 = vpop.f32.mrb[0].mxu0
        %v2132 = vpop.f32.mrb[0].mxu0
        %v2133 = vadd.f32 0.0, %v2132
        %v2134 = vpop.f32.mrb[0].mxu0
        %2135 = vdwg.mxu0
        %v2136 = vrcp.pop %v2052
        %v2137 = vrcp.pop %v2054
        %v2138 = vrcp.pop %v2056
        %v2139 = vrcp.pop %v2058
        %v2140 = vrcp.pop %v2060
        %v2141 = vrcp.pop %v2062
        %v2142 = vrcp.pop %v2064
        %v2143 = vrcp.pop %v2066
        %v2144 = vmul.f32 %v2106, %v2136
        %v2145 = vmul.f32 %v2109, %v2137
        %v2146 = vmul.f32 %v2114, %v2138
        %v2147 = vmul.f32 %v2117, %v2139
        %v2148 = vmul.f32 %v2122, %v2140
        %v2149 = vmul.f32 %v2125, %v2141
        %v2150 = vmul.f32 %v2130, %v2142
        %v2151 = vmul.f32 %v2133, %v2143
        %v2152 = vpack.c.bf16 %v2145, %v2144
        %v2153 = vpack.c.bf16 %v2147, %v2146
        %v2154 = vpack.c.bf16 %v2149, %v2148
        %v2155 = vpack.c.bf16 %v2151, %v2150
        %s2156 = smul.u32 4, 2
        %s2157 = smul.addr %s2156, 8
        %s2158 = scalar_lea.vmem [#allocation2], %s2157
        %2159 = vst [vmem:[%s2158] sm:$0xff] %v2152
        %2160 = vst [vmem:[%s2158 + $0x10] sm:$0xff] %v2153
        %2161 = vst [vmem:[%s2158 + $0x20] sm:$0xff] %v2154
        %2162 = vst [vmem:[%s2158 + $0x30] sm:$0xff] %v2155
        %v2163 = vld [vmem:[%s308] sm:$0xff]
        %v2164 = vld [vmem:[%s308 + $0x8] sm:$0xff]
        %v2165 = vld [vmem:[%s308 + $0x10] sm:$0xff]
        %v2166 = vld [vmem:[%s308 + $0x18] sm:$0xff]
        %v2167 = vld [vmem:[%s308 + $0x20] sm:$0xff]
        %v2168 = vld [vmem:[%s308 + $0x28] sm:$0xff]
        %v2169 = vld [vmem:[%s308 + $0x30] sm:$0xff]
        %v2170 = vld [vmem:[%s308 + $0x38] sm:$0xff]
        %v2171 = vld [vmem:[%s308 + $0x40] sm:$0xff]
        %v2172 = vld [vmem:[%s308 + $0x48] sm:$0xff]
        %v2173 = vld [vmem:[%s308 + $0x50] sm:$0xff]
        %v2174 = vld [vmem:[%s308 + $0x58] sm:$0xff]
        %v2175 = vld [vmem:[%s308 + $0x60] sm:$0xff]
        %v2176 = vld [vmem:[%s308 + $0x68] sm:$0xff]
        %v2177 = vld [vmem:[%s308 + $0x70] sm:$0xff]
        %v2178 = vld [vmem:[%s308 + $0x78] sm:$0xff]
        %v2179 = vld [vmem:[#allocation6 + $0x10] sm:$0xf]
        %v2180 = vld [vmem:[#allocation6 + $0x28] sm:$0xf]
        %v2181 = vld [vmem:[#allocation6 + $0x40] sm:$0xf]
        %v2182 = vld [vmem:[#allocation6 + $0x58] sm:$0xf]
        %v2183 = vld [vmem:[#allocation6 + $0x70] sm:$0xf]
        %v2184 = vld [vmem:[#allocation6 + $0x88] sm:$0xf]
        %v2185 = vld [vmem:[#allocation6 + $0xa0] sm:$0xf]
        %v2186 = vld [vmem:[#allocation6 + $0xb8] sm:$0xf]
        %v2187 = vld [vmem:[#allocation6 + $0xd0] sm:$0xf]
        %v2188 = vld [vmem:[#allocation6 + $0xe8] sm:$0xf]
        %v2189 = vld [vmem:[#allocation6 + $0x100] sm:$0xf]
        %v2190 = vld [vmem:[#allocation6 + $0x118] sm:$0xf]
        %v2191 = vld [vmem:[#allocation6 + $0x130] sm:$0xf]
        %v2192 = vld [vmem:[#allocation6 + $0x148] sm:$0xf]
        %v2193 = vld [vmem:[#allocation6 + $0x160] sm:$0xf]
        %v2194 = vld [vmem:[#allocation6 + $0x178] sm:$0xf]
        %v2195 = vld [vmem:[#allocation6 + $0x190] sm:$0xf]
        %v2196 = vld [vmem:[#allocation6 + $0x1a8] sm:$0xf]
        %v2197 = vld [vmem:[#allocation6 + $0x1c0] sm:$0xf]
        %v2198 = vld [vmem:[#allocation6 + $0x1d8] sm:$0xf]
        %v2199 = vld [vmem:[#allocation6 + $0x1f0] sm:$0xf]
        %v2200 = vld [vmem:[#allocation6 + $0x208] sm:$0xf]
        %v2201 = vld [vmem:[#allocation6 + $0x220] sm:$0xf]
        %v2202 = vld [vmem:[#allocation6 + $0x238] sm:$0xf]
        %v2203 = vld [vmem:[#allocation6 + $0x250] sm:$0xf]
        %v2204 = vld [vmem:[#allocation6 + $0x268] sm:$0xf]
        %v2205 = vld [vmem:[#allocation6 + $0x280] sm:$0xf]
        %v2206 = vld [vmem:[#allocation6 + $0x298] sm:$0xf]
        %v2207 = vld [vmem:[#allocation6 + $0x2b0] sm:$0xf]
        %v2208 = vld [vmem:[#allocation6 + $0x2c8] sm:$0xf]
        %v2209 = vld [vmem:[#allocation6 + $0x2e0] sm:$0xf]
        %v2210 = vld [vmem:[#allocation6 + $0x2f8] sm:$0xf]
        %v2211 = vld [vmem:[%s2 + $0x4] sm:$0x1]
        %v2213 = vlaneseq
        %v2214 = vshrl.u32 %v2213, 7
        %v2215 = vsub.s32 0, %v2214
        %v2216 = vrot.slane %v2211, %v2215
        %v2234 = vunpack.c.l.b16 %v2163
        %v2235 = vunpack.c.h.b16 %v2163
        %v2236 = vunpack.c.l.b16 %v2164
        %v2237 = vunpack.c.h.b16 %v2164
        %v2238 = vunpack.c.l.b16 %v2165
        %v2239 = vunpack.c.h.b16 %v2165
        %v2240 = vunpack.c.l.b16 %v2166
        %v2241 = vunpack.c.h.b16 %v2166
        %v2242 = vunpack.c.l.b16 %v2167
        %v2243 = vunpack.c.h.b16 %v2167
        %v2244 = vunpack.c.l.b16 %v2168
        %v2245 = vunpack.c.h.b16 %v2168
        %v2246 = vunpack.c.l.b16 %v2169
        %v2247 = vunpack.c.h.b16 %v2169
        %v2248 = vunpack.c.l.b16 %v2170
        %v2249 = vunpack.c.h.b16 %v2170
        %v2250 = vunpack.c.l.b16 %v2171
        %v2251 = vunpack.c.h.b16 %v2171
        %v2252 = vunpack.c.l.b16 %v2172
        %v2253 = vunpack.c.h.b16 %v2172
        %v2254 = vunpack.c.l.b16 %v2173
        %v2255 = vunpack.c.h.b16 %v2173
        %v2256 = vunpack.c.l.b16 %v2174
        %v2257 = vunpack.c.h.b16 %v2174
        %v2258 = vunpack.c.l.b16 %v2175
        %v2259 = vunpack.c.h.b16 %v2175
        %v2260 = vunpack.c.l.b16 %v2176
        %v2261 = vunpack.c.h.b16 %v2176
        %v2262 = vunpack.c.l.b16 %v2177
        %v2263 = vunpack.c.h.b16 %v2177
        %v2264 = vunpack.c.l.b16 %v2178
        %v2265 = vunpack.c.h.b16 %v2178
        %v2266 = vpack.c.b16 %v2236, %v2234
        %v2267 = vpack.c.b16 %v2237, %v2235
        %v2268 = vpack.c.b16 %v2240, %v2238
        %v2269 = vpack.c.b16 %v2241, %v2239
        %v2270 = vpack.c.b16 %v2244, %v2242
        %v2271 = vpack.c.b16 %v2245, %v2243
        %v2272 = vpack.c.b16 %v2248, %v2246
        %v2273 = vpack.c.b16 %v2249, %v2247
        %v2274 = vpack.c.b16 %v2252, %v2250
        %v2275 = vpack.c.b16 %v2253, %v2251
        %v2276 = vpack.c.b16 %v2256, %v2254
        %v2277 = vpack.c.b16 %v2257, %v2255
        %v2278 = vpack.c.b16 %v2260, %v2258
        %v2279 = vpack.c.b16 %v2261, %v2259
        %v2280 = vpack.c.b16 %v2264, %v2262
        %v2281 = vpack.c.b16 %v2265, %v2263
        %v2330 = vunpack.c.l.b16 %v2179
        %v2331 = vunpack.c.l.b16 %v2180
        %v2332 = vunpack.c.l.b16 %v2181
        %v2333 = vunpack.c.l.b16 %v2182
        %v2334 = vunpack.c.l.b16 %v2183
        %v2335 = vunpack.c.l.b16 %v2184
        %v2336 = vunpack.c.l.b16 %v2185
        %v2337 = vunpack.c.l.b16 %v2186
        %v2338 = vunpack.c.l.b16 %v2187
        %v2339 = vunpack.c.l.b16 %v2188
        %v2340 = vunpack.c.l.b16 %v2189
        %v2341 = vunpack.c.l.b16 %v2190
        %v2342 = vunpack.c.l.b16 %v2191
        %v2343 = vunpack.c.l.b16 %v2192
        %v2344 = vunpack.c.l.b16 %v2193
        %v2345 = vunpack.c.l.b16 %v2194
        %v2346 = vunpack.c.l.b16 %v2195
        %v2347 = vunpack.c.l.b16 %v2196
        %v2348 = vunpack.c.l.b16 %v2197
        %v2349 = vunpack.c.l.b16 %v2198
        %v2350 = vunpack.c.l.b16 %v2199
        %v2351 = vunpack.c.l.b16 %v2200
        %v2352 = vunpack.c.l.b16 %v2201
        %v2353 = vunpack.c.l.b16 %v2202
        %v2354 = vunpack.c.l.b16 %v2203
        %v2355 = vunpack.c.l.b16 %v2204
        %v2356 = vunpack.c.l.b16 %v2205
        %v2357 = vunpack.c.l.b16 %v2206
        %v2358 = vunpack.c.l.b16 %v2207
        %v2359 = vunpack.c.l.b16 %v2208
        %v2360 = vunpack.c.l.b16 %v2209
        %v2361 = vunpack.c.l.b16 %v2210
        %v2362 = vpack.c.b16 %v2331, %v2330
        %v2363 = vpack.c.b16 %v2333, %v2332
        %v2364 = vpack.c.b16 %v2335, %v2334
        %v2365 = vpack.c.b16 %v2337, %v2336
        %v2366 = vpack.c.b16 %v2339, %v2338
        %v2367 = vpack.c.b16 %v2341, %v2340
        %v2368 = vpack.c.b16 %v2343, %v2342
        %v2369 = vpack.c.b16 %v2345, %v2344
        %v2370 = vpack.c.b16 %v2347, %v2346
        %v2371 = vpack.c.b16 %v2349, %v2348
        %v2372 = vpack.c.b16 %v2351, %v2350
        %v2373 = vpack.c.b16 %v2353, %v2352
        %v2374 = vpack.c.b16 %v2355, %v2354
        %v2375 = vpack.c.b16 %v2357, %v2356
        %v2376 = vpack.c.b16 %v2359, %v2358
        %v2377 = vpack.c.b16 %v2361, %v2360
        %2394 = vmatprep.subr.bf16.mxu0 0
        %2395 = vmatpush1.bf16.msra.mxu0 %v2362
        %2396 = vmatprep.subr.bf16.mxu0 0
        %2397 = vmatpush1.bf16.msra.mxu0 %v2363
        %2398 = vmatprep.subr.bf16.mxu0 0
        %2399 = vmatpush1.bf16.msra.mxu0 %v2364
        %2400 = vmatprep.subr.bf16.mxu0 0
        %2401 = vmatpush1.bf16.msra.mxu0 %v2365
        %2402 = vmatprep.subr.bf16.mxu0 0
        %2403 = vmatpush1.bf16.msra.mxu0 %v2366
        %2404 = vmatprep.subr.bf16.mxu0 0
        %2405 = vmatpush1.bf16.msra.mxu0 %v2367
        %2406 = vmatprep.subr.bf16.mxu0 0
        %2407 = vmatpush1.bf16.msra.mxu0 %v2368
        %2408 = vmatprep.subr.bf16.mxu0 0
        %2409 = vmatpush1.bf16.msra.mxu0 %v2369
        %2410 = vmatprep.subr.bf16.mxu0 0
        %2411 = vmatpush1.bf16.msra.mxu0 %v2370
        %2412 = vmatprep.subr.bf16.mxu0 0
        %2413 = vmatpush1.bf16.msra.mxu0 %v2371
        %2414 = vmatprep.subr.bf16.mxu0 0
        %2415 = vmatpush1.bf16.msra.mxu0 %v2372
        %2416 = vmatprep.subr.bf16.mxu0 0
        %2417 = vmatpush1.bf16.msra.mxu0 %v2373
        %2418 = vmatprep.subr.bf16.mxu0 0
        %2419 = vmatpush1.bf16.msra.mxu0 %v2374
        %2420 = vmatprep.subr.bf16.mxu0 0
        %2421 = vmatpush1.bf16.msra.mxu0 %v2375
        %2422 = vmatprep.subr.bf16.mxu0 0
        %2423 = vmatpush1.bf16.msra.mxu0 %v2376
        %2424 = vmatprep.subr.bf16.mxu0 0
        %2425 = vmatpush1.bf16.msra.mxu0 %v2377
        %2426 = vmatprep.mubr.bf16.mxu0 %v2267
        %2427 = vmatmul.mubr.bf16.gmra.mrb[0].mxu0 %v2266
        %v2428 = vpop.f32.mrb[0].mxu0
        %v2429 = vadd.f32 %v2216, %v2428
        %v2430 = vpop.f32.mrb[0].mxu0
        %v2431 = vpop.f32.mrb[0].mxu0
        %v2432 = vadd.f32 %v2216, %v2431
        %v2433 = vpop.f32.mrb[0].mxu0
        %2434 = vmatprep.mubr.bf16.mxu0 %v2269
        %2435 = vmatmul.mubr.bf16.gmra.mrb[0].mxu0 %v2268
        %v2436 = vpop.f32.mrb[0].mxu0
        %v2437 = vadd.f32 %v2216, %v2436
        %v2438 = vpop.f32.mrb[0].mxu0
        %v2439 = vpop.f32.mrb[0].mxu0
        %v2440 = vadd.f32 %v2216, %v2439
        %v2441 = vpop.f32.mrb[0].mxu0
        %2442 = vmatprep.mubr.bf16.mxu0 %v2271
        %2443 = vmatmul.mubr.bf16.gmra.mrb[0].mxu0 %v2270
        %v2444 = vpop.f32.mrb[0].mxu0
        %v2445 = vadd.f32 %v2216, %v2444
        %v2446 = vpop.f32.mrb[0].mxu0
        %v2447 = vpop.f32.mrb[0].mxu0
        %v2448 = vadd.f32 %v2216, %v2447
        %v2449 = vpop.f32.mrb[0].mxu0
        %2450 = vmatprep.mubr.bf16.mxu0 %v2273
        %2451 = vmatmul.mubr.bf16.gmra.mrb[0].mxu0 %v2272
        %v2452 = vpop.f32.mrb[0].mxu0
        %v2453 = vadd.f32 %v2216, %v2452
        %v2454 = vpop.f32.mrb[0].mxu0
        %v2455 = vpop.f32.mrb[0].mxu0
        %v2456 = vadd.f32 %v2216, %v2455
        %v2457 = vpop.f32.mrb[0].mxu0
        %2458 = vmatprep.mubr.bf16.mxu0 %v2275
        %2459 = vmatmul.mubr.bf16.gmra.mrb[0].mxu0 %v2274
        %v2460 = vpop.f32.mrb[0].mxu0
        %v2461 = vadd.f32 %v2216, %v2460
        %v2462 = vpop.f32.mrb[0].mxu0
        %v2463 = vpop.f32.mrb[0].mxu0
        %v2464 = vadd.f32 %v2216, %v2463
        %v2465 = vpop.f32.mrb[0].mxu0
        %2466 = vmatprep.mubr.bf16.mxu0 %v2277
        %2467 = vmatmul.mubr.bf16.gmra.mrb[0].mxu0 %v2276
        %v2468 = vpop.f32.mrb[0].mxu0
        %v2469 = vadd.f32 %v2216, %v2468
        %v2470 = vpop.f32.mrb[0].mxu0
        %v2471 = vpop.f32.mrb[0].mxu0
        %v2472 = vadd.f32 %v2216, %v2471
        %v2473 = vpop.f32.mrb[0].mxu0
        %2474 = vmatprep.mubr.bf16.mxu0 %v2279
        %2475 = vmatmul.mubr.bf16.gmra.mrb[0].mxu0 %v2278
        %v2476 = vpop.f32.mrb[0].mxu0
        %v2477 = vadd.f32 %v2216, %v2476
        %v2478 = vpop.f32.mrb[0].mxu0
        %v2479 = vpop.f32.mrb[0].mxu0
        %v2480 = vadd.f32 %v2216, %v2479
        %v2481 = vpop.f32.mrb[0].mxu0
        %2482 = vmatprep.mubr.bf16.mxu0 %v2281
        %2483 = vmatmul.mubr.bf16.gmra.mrb[0].mxu0 %v2280
        %v2484 = vpop.f32.mrb[0].mxu0
        %v2485 = vadd.f32 %v2216, %v2484
        %v2486 = vpop.f32.mrb[0].mxu0
        %v2487 = vpop.f32.mrb[0].mxu0
        %v2488 = vadd.f32 %v2216, %v2487
        %v2489 = vpop.f32.mrb[0].mxu0
        %2490 = vdwg.mxu0
        %v2491 = vld [vmem:[#allocation6 + $0x14] sm:$0xf]
        %v2492 = vld [vmem:[#allocation6 + $0x2c] sm:$0xf]
        %v2493 = vld [vmem:[#allocation6 + $0x44] sm:$0xf]
        %v2494 = vld [vmem:[#allocation6 + $0x5c] sm:$0xf]
        %v2495 = vld [vmem:[#allocation6 + $0x74] sm:$0xf]
        %v2496 = vld [vmem:[#allocation6 + $0x8c] sm:$0xf]
        %v2497 = vld [vmem:[#allocation6 + $0xa4] sm:$0xf]
        %v2498 = vld [vmem:[#allocation6 + $0xbc] sm:$0xf]
        %v2499 = vld [vmem:[#allocation6 + $0xd4] sm:$0xf]
        %v2500 = vld [vmem:[#allocation6 + $0xec] sm:$0xf]
        %v2501 = vld [vmem:[#allocation6 + $0x104] sm:$0xf]
        %v2502 = vld [vmem:[#allocation6 + $0x11c] sm:$0xf]
        %v2503 = vld [vmem:[#allocation6 + $0x134] sm:$0xf]
        %v2504 = vld [vmem:[#allocation6 + $0x14c] sm:$0xf]
        %v2505 = vld [vmem:[#allocation6 + $0x164] sm:$0xf]
        %v2506 = vld [vmem:[#allocation6 + $0x17c] sm:$0xf]
        %v2507 = vld [vmem:[#allocation6 + $0x194] sm:$0xf]
        %v2508 = vld [vmem:[#allocation6 + $0x1ac] sm:$0xf]
        %v2509 = vld [vmem:[#allocation6 + $0x1c4] sm:$0xf]
        %v2510 = vld [vmem:[#allocation6 + $0x1dc] sm:$0xf]
        %v2511 = vld [vmem:[#allocation6 + $0x1f4] sm:$0xf]
        %v2512 = vld [vmem:[#allocation6 + $0x20c] sm:$0xf]
        %v2513 = vld [vmem:[#allocation6 + $0x224] sm:$0xf]
        %v2514 = vld [vmem:[#allocation6 + $0x23c] sm:$0xf]
        %v2515 = vld [vmem:[#allocation6 + $0x254] sm:$0xf]
        %v2516 = vld [vmem:[#allocation6 + $0x26c] sm:$0xf]
        %v2517 = vld [vmem:[#allocation6 + $0x284] sm:$0xf]
        %v2518 = vld [vmem:[#allocation6 + $0x29c] sm:$0xf]
        %v2519 = vld [vmem:[#allocation6 + $0x2b4] sm:$0xf]
        %v2520 = vld [vmem:[#allocation6 + $0x2cc] sm:$0xf]
        %v2521 = vld [vmem:[#allocation6 + $0x2e4] sm:$0xf]
        %v2522 = vld [vmem:[#allocation6 + $0x2fc] sm:$0xf]
        %v2523 = vld [vmem:[%s2 + $0x5] sm:$0x1]
        %v2525 = vlaneseq
        %v2526 = vshrl.u32 %v2525, 7
        %v2527 = vsub.s32 0, %v2526
        %v2528 = vrot.slane %v2523, %v2527
        %v2562 = vunpack.c.l.b16 %v2491
        %v2563 = vunpack.c.l.b16 %v2492
        %v2564 = vunpack.c.l.b16 %v2493
        %v2565 = vunpack.c.l.b16 %v2494
        %v2566 = vunpack.c.l.b16 %v2495
        %v2567 = vunpack.c.l.b16 %v2496
        %v2568 = vunpack.c.l.b16 %v2497
        %v2569 = vunpack.c.l.b16 %v2498
        %v2570 = vunpack.c.l.b16 %v2499
        %v2571 = vunpack.c.l.b16 %v2500
        %v2572 = vunpack.c.l.b16 %v2501
        %v2573 = vunpack.c.l.b16 %v2502
        %v2574 = vunpack.c.l.b16 %v2503
        %v2575 = vunpack.c.l.b16 %v2504
        %v2576 = vunpack.c.l.b16 %v2505
        %v2577 = vunpack.c.l.b16 %v2506
        %v2578 = vunpack.c.l.b16 %v2507
        %v2579 = vunpack.c.l.b16 %v2508
        %v2580 = vunpack.c.l.b16 %v2509
        %v2581 = vunpack.c.l.b16 %v2510
        %v2582 = vunpack.c.l.b16 %v2511
        %v2583 = vunpack.c.l.b16 %v2512
        %v2584 = vunpack.c.l.b16 %v2513
        %v2585 = vunpack.c.l.b16 %v2514
        %v2586 = vunpack.c.l.b16 %v2515
        %v2587 = vunpack.c.l.b16 %v2516
        %v2588 = vunpack.c.l.b16 %v2517
        %v2589 = vunpack.c.l.b16 %v2518
        %v2590 = vunpack.c.l.b16 %v2519
        %v2591 = vunpack.c.l.b16 %v2520
        %v2592 = vunpack.c.l.b16 %v2521
        %v2593 = vunpack.c.l.b16 %v2522
        %v2594 = vpack.c.b16 %v2563, %v2562
        %v2595 = vpack.c.b16 %v2565, %v2564
        %v2596 = vpack.c.b16 %v2567, %v2566
        %v2597 = vpack.c.b16 %v2569, %v2568
        %v2598 = vpack.c.b16 %v2571, %v2570
        %v2599 = vpack.c.b16 %v2573, %v2572
        %v2600 = vpack.c.b16 %v2575, %v2574
        %v2601 = vpack.c.b16 %v2577, %v2576
        %v2602 = vpack.c.b16 %v2579, %v2578
        %v2603 = vpack.c.b16 %v2581, %v2580
        %v2604 = vpack.c.b16 %v2583, %v2582
        %v2605 = vpack.c.b16 %v2585, %v2584
        %v2606 = vpack.c.b16 %v2587, %v2586
        %v2607 = vpack.c.b16 %v2589, %v2588
        %v2608 = vpack.c.b16 %v2591, %v2590
        %v2609 = vpack.c.b16 %v2593, %v2592
        %2626 = vmatprep.subr.bf16.mxu0 0
        %2627 = vmatpush1.bf16.msra.mxu0 %v2594
        %2628 = vmatprep.subr.bf16.mxu0 0
        %2629 = vmatpush1.bf16.msra.mxu0 %v2595
        %2630 = vmatprep.subr.bf16.mxu0 0
        %2631 = vmatpush1.bf16.msra.mxu0 %v2596
        %2632 = vmatprep.subr.bf16.mxu0 0
        %2633 = vmatpush1.bf16.msra.mxu0 %v2597
        %2634 = vmatprep.subr.bf16.mxu0 0
        %2635 = vmatpush1.bf16.msra.mxu0 %v2598
        %2636 = vmatprep.subr.bf16.mxu0 0
        %2637 = vmatpush1.bf16.msra.mxu0 %v2599
        %2638 = vmatprep.subr.bf16.mxu0 0
        %2639 = vmatpush1.bf16.msra.mxu0 %v2600
        %2640 = vmatprep.subr.bf16.mxu0 0
        %2641 = vmatpush1.bf16.msra.mxu0 %v2601
        %2642 = vmatprep.subr.bf16.mxu0 0
        %2643 = vmatpush1.bf16.msra.mxu0 %v2602
        %2644 = vmatprep.subr.bf16.mxu0 0
        %2645 = vmatpush1.bf16.msra.mxu0 %v2603
        %2646 = vmatprep.subr.bf16.mxu0 0
        %2647 = vmatpush1.bf16.msra.mxu0 %v2604
        %2648 = vmatprep.subr.bf16.mxu0 0
        %2649 = vmatpush1.bf16.msra.mxu0 %v2605
        %2650 = vmatprep.subr.bf16.mxu0 0
        %2651 = vmatpush1.bf16.msra.mxu0 %v2606
        %2652 = vmatprep.subr.bf16.mxu0 0
        %2653 = vmatpush1.bf16.msra.mxu0 %v2607
        %2654 = vmatprep.subr.bf16.mxu0 0
        %2655 = vmatpush1.bf16.msra.mxu0 %v2608
        %2656 = vmatprep.subr.bf16.mxu0 0
        %2657 = vmatpush1.bf16.msra.mxu0 %v2609
        %2658 = vmatprep.mubr.bf16.mxu0 %v2267
        %2659 = vmatmul.mubr.bf16.gmra.mrb[0].mxu0 %v2266
        %v2660 = vpop.f32.mrb[0].mxu0
        %v2661 = vadd.f32 %v2528, %v2660
        %v2662 = vpop.f32.mrb[0].mxu0
        %v2663 = vpop.f32.mrb[0].mxu0
        %v2664 = vadd.f32 %v2528, %v2663
        %v2665 = vpop.f32.mrb[0].mxu0
        %2666 = vmatprep.mubr.bf16.mxu0 %v2269
        %2667 = vmatmul.mubr.bf16.gmra.mrb[0].mxu0 %v2268
        %v2668 = vpop.f32.mrb[0].mxu0
        %v2669 = vadd.f32 %v2528, %v2668
        %v2670 = vpop.f32.mrb[0].mxu0
        %v2671 = vpop.f32.mrb[0].mxu0
        %v2672 = vadd.f32 %v2528, %v2671
        %v2673 = vpop.f32.mrb[0].mxu0
        %2674 = vmatprep.mubr.bf16.mxu0 %v2271
        %2675 = vmatmul.mubr.bf16.gmra.mrb[0].mxu0 %v2270
        %v2676 = vpop.f32.mrb[0].mxu0
        %v2677 = vadd.f32 %v2528, %v2676
        %v2678 = vpop.f32.mrb[0].mxu0
        %v2679 = vpop.f32.mrb[0].mxu0
        %v2680 = vadd.f32 %v2528, %v2679
        %v2681 = vpop.f32.mrb[0].mxu0
        %2682 = vmatprep.mubr.bf16.mxu0 %v2273
        %2683 = vmatmul.mubr.bf16.gmra.mrb[0].mxu0 %v2272
        %v2684 = vpop.f32.mrb[0].mxu0
        %v2685 = vadd.f32 %v2528, %v2684
        %v2686 = vpop.f32.mrb[0].mxu0
        %v2687 = vpop.f32.mrb[0].mxu0
        %v2688 = vadd.f32 %v2528, %v2687
        %v2689 = vpop.f32.mrb[0].mxu0
        %2690 = vmatprep.mubr.bf16.mxu0 %v2275
        %2691 = vmatmul.mubr.bf16.gmra.mrb[0].mxu0 %v2274
        %v2692 = vpop.f32.mrb[0].mxu0
        %v2693 = vadd.f32 %v2528, %v2692
        %v2694 = vpop.f32.mrb[0].mxu0
        %v2695 = vpop.f32.mrb[0].mxu0
        %v2696 = vadd.f32 %v2528, %v2695
        %v2697 = vpop.f32.mrb[0].mxu0
        %2698 = vmatprep.mubr.bf16.mxu0 %v2277
        %2699 = vmatmul.mubr.bf16.gmra.mrb[0].mxu0 %v2276
        %v2700 = vpop.f32.mrb[0].mxu0
        %v2701 = vadd.f32 %v2528, %v2700
        %v2702 = vpop.f32.mrb[0].mxu0
        %v2703 = vpop.f32.mrb[0].mxu0
        %v2704 = vadd.f32 %v2528, %v2703
        %v2705 = vpop.f32.mrb[0].mxu0
        %2706 = vmatprep.mubr.bf16.mxu0 %v2279
        %2707 = vmatmul.mubr.bf16.gmra.mrb[0].mxu0 %v2278
        %v2708 = vpop.f32.mrb[0].mxu0
        %v2709 = vadd.f32 %v2528, %v2708
        %v2710 = vpop.f32.mrb[0].mxu0
        %v2711 = vpop.f32.mrb[0].mxu0
        %v2712 = vadd.f32 %v2528, %v2711
        %v2713 = vpop.f32.mrb[0].mxu0
        %2714 = vmatprep.mubr.bf16.mxu0 %v2281
        %2715 = vmatmul.mubr.bf16.gmra.mrb[0].mxu0 %v2280
        %v2716 = vpop.f32.mrb[0].mxu0
        %v2717 = vadd.f32 %v2528, %v2716
        %v2718 = vpop.f32.mrb[0].mxu0
        %v2719 = vpop.f32.mrb[0].mxu0
        %v2720 = vadd.f32 %v2528, %v2719
        %v2721 = vpop.f32.mrb[0].mxu0
        %2722 = vdwg.mxu0
        %v2723 = vld [vmem:[#allocation9] sm:$0xff]
        %v2724 = vld [vmem:[#allocation9 + $0x8] sm:$0xff]
        %v2725 = vld [vmem:[#allocation9 + $0x10] sm:$0xff]
        %v2726 = vld [vmem:[#allocation9 + $0x18] sm:$0xff]
        %v2727 = vld [vmem:[#allocation9 + $0x20] sm:$0xff]
        %v2728 = vld [vmem:[#allocation9 + $0x28] sm:$0xff]
        %v2729 = vld [vmem:[#allocation9 + $0x30] sm:$0xff]
        %v2730 = vld [vmem:[#allocation9 + $0x38] sm:$0xff]
        %v2731 = vld [vmem:[#allocation9 + $0x40] sm:$0xff]
        %v2732 = vld [vmem:[#allocation9 + $0x48] sm:$0xff]
        %v2733 = vld [vmem:[#allocation9 + $0x50] sm:$0xff]
        %v2734 = vld [vmem:[#allocation9 + $0x58] sm:$0xff]
        %v2735 = vld [vmem:[#allocation9 + $0x60] sm:$0xff]
        %v2736 = vld [vmem:[#allocation9 + $0x68] sm:$0xff]
        %v2737 = vld [vmem:[#allocation9 + $0x70] sm:$0xff]
        %v2738 = vld [vmem:[#allocation9 + $0x78] sm:$0xff]
        %v2739 = vmul.f32 %v2723, %v2429
        %v2740 = vmul.f32 %v2724, %v2432
        %v2741 = vmul.f32 %v2725, %v2437
        %v2742 = vmul.f32 %v2726, %v2440
        %v2743 = vmul.f32 %v2727, %v2445
        %v2744 = vmul.f32 %v2728, %v2448
        %v2745 = vmul.f32 %v2729, %v2453
        %v2746 = vmul.f32 %v2730, %v2456
        %v2747 = vmul.f32 %v2731, %v2461
        %v2748 = vmul.f32 %v2732, %v2464
        %v2749 = vmul.f32 %v2733, %v2469
        %v2750 = vmul.f32 %v2734, %v2472
        %v2751 = vmul.f32 %v2735, %v2477
        %v2752 = vmul.f32 %v2736, %v2480
        %v2753 = vmul.f32 %v2737, %v2485
        %v2754 = vmul.f32 %v2738, %v2488
        %v2755 = vld [vmem:[#allocation11] sm:$0xff]
        %v2756 = vld [vmem:[#allocation11 + $0x8] sm:$0xff]
        %v2757 = vld [vmem:[#allocation11 + $0x10] sm:$0xff]
        %v2758 = vld [vmem:[#allocation11 + $0x18] sm:$0xff]
        %v2759 = vld [vmem:[#allocation11 + $0x20] sm:$0xff]
        %v2760 = vld [vmem:[#allocation11 + $0x28] sm:$0xff]
        %v2761 = vld [vmem:[#allocation11 + $0x30] sm:$0xff]
        %v2762 = vld [vmem:[#allocation11 + $0x38] sm:$0xff]
        %v2763 = vld [vmem:[#allocation11 + $0x40] sm:$0xff]
        %v2764 = vld [vmem:[#allocation11 + $0x48] sm:$0xff]
        %v2765 = vld [vmem:[#allocation11 + $0x50] sm:$0xff]
        %v2766 = vld [vmem:[#allocation11 + $0x58] sm:$0xff]
        %v2767 = vld [vmem:[#allocation11 + $0x60] sm:$0xff]
        %v2768 = vld [vmem:[#allocation11 + $0x68] sm:$0xff]
        %v2769 = vld [vmem:[#allocation11 + $0x70] sm:$0xff]
        %v2770 = vld [vmem:[#allocation11 + $0x78] sm:$0xff]
        %2771 = vrot.lane.b32.xlu0 %v2429, 64
        %v2772 = vpop.permute.xlu0 %2771
        %2773 = vrot.lane.b32.xlu0 %v2432, 64
        %v2774 = vpop.permute.xlu0 %2773
        %2775 = vrot.lane.b32.xlu0 %v2437, 64
        %v2776 = vpop.permute.xlu0 %2775
        %2777 = vrot.lane.b32.xlu0 %v2440, 64
        %v2778 = vpop.permute.xlu0 %2777
        %2779 = vrot.lane.b32.xlu0 %v2445, 64
        %v2780 = vpop.permute.xlu0 %2779
        %2781 = vrot.lane.b32.xlu0 %v2448, 64
        %v2782 = vpop.permute.xlu0 %2781
        %2783 = vrot.lane.b32.xlu0 %v2453, 64
        %v2784 = vpop.permute.xlu0 %2783
        %2785 = vrot.lane.b32.xlu0 %v2456, 64
        %v2786 = vpop.permute.xlu0 %2785
        %2787 = vrot.lane.b32.xlu0 %v2461, 64
        %v2788 = vpop.permute.xlu0 %2787
        %2789 = vrot.lane.b32.xlu0 %v2464, 64
        %v2790 = vpop.permute.xlu0 %2789
        %2791 = vrot.lane.b32.xlu0 %v2469, 64
        %v2792 = vpop.permute.xlu0 %2791
        %2793 = vrot.lane.b32.xlu0 %v2472, 64
        %v2794 = vpop.permute.xlu0 %2793
        %2795 = vrot.lane.b32.xlu0 %v2477, 64
        %v2796 = vpop.permute.xlu0 %2795
        %2797 = vrot.lane.b32.xlu0 %v2480, 64
        %v2798 = vpop.permute.xlu0 %2797
        %2799 = vrot.lane.b32.xlu0 %v2485, 64
        %v2800 = vpop.permute.xlu0 %2799
        %2801 = vrot.lane.b32.xlu0 %v2488, 64
        %v2802 = vpop.permute.xlu0 %2801
        %v2803 = vmul.f32 %v2755, %v2772
        %v2804 = vmul.f32 %v2756, %v2774
        %v2805 = vmul.f32 %v2757, %v2776
        %v2806 = vmul.f32 %v2758, %v2778
        %v2807 = vmul.f32 %v2759, %v2780
        %v2808 = vmul.f32 %v2760, %v2782
        %v2809 = vmul.f32 %v2761, %v2784
        %v2810 = vmul.f32 %v2762, %v2786
        %v2811 = vmul.f32 %v2763, %v2788
        %v2812 = vmul.f32 %v2764, %v2790
        %v2813 = vmul.f32 %v2765, %v2792
        %v2814 = vmul.f32 %v2766, %v2794
        %v2815 = vmul.f32 %v2767, %v2796
        %v2816 = vmul.f32 %v2768, %v2798
        %v2817 = vmul.f32 %v2769, %v2800
        %v2818 = vmul.f32 %v2770, %v2802
        %v2819 = vadd.f32 %v2739, %v2803
        %v2820 = vadd.f32 %v2740, %v2804
        %v2821 = vadd.f32 %v2741, %v2805
        %v2822 = vadd.f32 %v2742, %v2806
        %v2823 = vadd.f32 %v2743, %v2807
        %v2824 = vadd.f32 %v2744, %v2808
        %v2825 = vadd.f32 %v2745, %v2809
        %v2826 = vadd.f32 %v2746, %v2810
        %v2827 = vadd.f32 %v2747, %v2811
        %v2828 = vadd.f32 %v2748, %v2812
        %v2829 = vadd.f32 %v2749, %v2813
        %v2830 = vadd.f32 %v2750, %v2814
        %v2831 = vadd.f32 %v2751, %v2815
        %v2832 = vadd.f32 %v2752, %v2816
        %v2833 = vadd.f32 %v2753, %v2817
        %v2834 = vadd.f32 %v2754, %v2818
        %v2835 = vpack.c.bf16 %v2820, %v2819
        %v2836 = vpack.c.bf16 %v2822, %v2821
        %v2837 = vpack.c.bf16 %v2824, %v2823
        %v2838 = vpack.c.bf16 %v2826, %v2825
        %v2839 = vpack.c.bf16 %v2828, %v2827
        %v2840 = vpack.c.bf16 %v2830, %v2829
        %v2841 = vpack.c.bf16 %v2832, %v2831
        %v2842 = vpack.c.bf16 %v2834, %v2833
        %v2843 = vpack.c.bf16 %v2664, %v2661
        %v2844 = vpack.c.bf16 %v2672, %v2669
        %v2845 = vpack.c.bf16 %v2680, %v2677
        %v2846 = vpack.c.bf16 %v2688, %v2685
        %v2847 = vpack.c.bf16 %v2696, %v2693
        %v2848 = vpack.c.bf16 %v2704, %v2701
        %v2849 = vpack.c.bf16 %v2712, %v2709
        %v2850 = vpack.c.bf16 %v2720, %v2717
        %v2851 = vld [vmem:[%s1046] sm:$0xff]
        %v2852 = vld [vmem:[%s1046 + $0x8] sm:$0xff]
        %v2853 = vld [vmem:[%s1046 + $0x10] sm:$0xff]
        %v2854 = vld [vmem:[%s1046 + $0x18] sm:$0xff]
        %v2855 = vld [vmem:[%s1046 + $0x20] sm:$0xff]
        %v2856 = vld [vmem:[%s1046 + $0x28] sm:$0xff]
        %v2857 = vld [vmem:[%s1046 + $0x30] sm:$0xff]
        %v2858 = vld [vmem:[%s1046 + $0x38] sm:$0xff]
        %v2859 = vld [vmem:[#allocation6 + $0xc] sm:$0xf]
        %v2860 = vld [vmem:[#allocation6 + $0x24] sm:$0xf]
        %v2861 = vld [vmem:[#allocation6 + $0x3c] sm:$0xf]
        %v2862 = vld [vmem:[#allocation6 + $0x54] sm:$0xf]
        %v2863 = vld [vmem:[#allocation6 + $0x6c] sm:$0xf]
        %v2864 = vld [vmem:[#allocation6 + $0x84] sm:$0xf]
        %v2865 = vld [vmem:[#allocation6 + $0x9c] sm:$0xf]
        %v2866 = vld [vmem:[#allocation6 + $0xb4] sm:$0xf]
        %v2867 = vld [vmem:[#allocation6 + $0xcc] sm:$0xf]
        %v2868 = vld [vmem:[#allocation6 + $0xe4] sm:$0xf]
        %v2869 = vld [vmem:[#allocation6 + $0xfc] sm:$0xf]
        %v2870 = vld [vmem:[#allocation6 + $0x114] sm:$0xf]
        %v2871 = vld [vmem:[#allocation6 + $0x12c] sm:$0xf]
        %v2872 = vld [vmem:[#allocation6 + $0x144] sm:$0xf]
        %v2873 = vld [vmem:[#allocation6 + $0x15c] sm:$0xf]
        %v2874 = vld [vmem:[#allocation6 + $0x174] sm:$0xf]
        %v2875 = vld [vmem:[#allocation6 + $0x18c] sm:$0xf]
        %v2876 = vld [vmem:[#allocation6 + $0x1a4] sm:$0xf]
        %v2877 = vld [vmem:[#allocation6 + $0x1bc] sm:$0xf]
        %v2878 = vld [vmem:[#allocation6 + $0x1d4] sm:$0xf]
        %v2879 = vld [vmem:[#allocation6 + $0x1ec] sm:$0xf]
        %v2880 = vld [vmem:[#allocation6 + $0x204] sm:$0xf]
        %v2881 = vld [vmem:[#allocation6 + $0x21c] sm:$0xf]
        %v2882 = vld [vmem:[#allocation6 + $0x234] sm:$0xf]
        %v2883 = vld [vmem:[#allocation6 + $0x24c] sm:$0xf]
        %v2884 = vld [vmem:[#allocation6 + $0x264] sm:$0xf]
        %v2885 = vld [vmem:[#allocation6 + $0x27c] sm:$0xf]
        %v2886 = vld [vmem:[#allocation6 + $0x294] sm:$0xf]
        %v2887 = vld [vmem:[#allocation6 + $0x2ac] sm:$0xf]
        %v2888 = vld [vmem:[#allocation6 + $0x2c4] sm:$0xf]
        %v2889 = vld [vmem:[#allocation6 + $0x2dc] sm:$0xf]
        %v2890 = vld [vmem:[#allocation6 + $0x2f4] sm:$0xf]
        %v2891 = vld [vmem:[%s2 + $0x3] sm:$0x1]
        %v2893 = vlaneseq
        %v2894 = vshrl.u32 %v2893, 7
        %v2895 = vsub.s32 0, %v2894
        %v2896 = vrot.slane %v2891, %v2895
        %v2906 = vunpack.c.l.b16 %v2851
        %v2907 = vunpack.c.h.b16 %v2851
        %v2908 = vunpack.c.l.b16 %v2852
        %v2909 = vunpack.c.h.b16 %v2852
        %v2910 = vunpack.c.l.b16 %v2853
        %v2911 = vunpack.c.h.b16 %v2853
        %v2912 = vunpack.c.l.b16 %v2854
        %v2913 = vunpack.c.h.b16 %v2854
        %v2914 = vunpack.c.l.b16 %v2855
        %v2915 = vunpack.c.h.b16 %v2855
        %v2916 = vunpack.c.l.b16 %v2856
        %v2917 = vunpack.c.h.b16 %v2856
        %v2918 = vunpack.c.l.b16 %v2857
        %v2919 = vunpack.c.h.b16 %v2857
        %v2920 = vunpack.c.l.b16 %v2858
        %v2921 = vunpack.c.h.b16 %v2858
        %v2922 = vpack.c.b16 %v2908, %v2906
        %v2923 = vpack.c.b16 %v2909, %v2907
        %v2924 = vpack.c.b16 %v2912, %v2910
        %v2925 = vpack.c.b16 %v2913, %v2911
        %v2926 = vpack.c.b16 %v2916, %v2914
        %v2927 = vpack.c.b16 %v2917, %v2915
        %v2928 = vpack.c.b16 %v2920, %v2918
        %v2929 = vpack.c.b16 %v2921, %v2919
        %v2970 = vunpack.c.l.b16 %v2859
        %v2971 = vunpack.c.l.b16 %v2860
        %v2972 = vunpack.c.l.b16 %v2861
        %v2973 = vunpack.c.l.b16 %v2862
        %v2974 = vunpack.c.l.b16 %v2863
        %v2975 = vunpack.c.l.b16 %v2864
        %v2976 = vunpack.c.l.b16 %v2865
        %v2977 = vunpack.c.l.b16 %v2866
        %v2978 = vunpack.c.l.b16 %v2867
        %v2979 = vunpack.c.l.b16 %v2868
        %v2980 = vunpack.c.l.b16 %v2869
        %v2981 = vunpack.c.l.b16 %v2870
        %v2982 = vunpack.c.l.b16 %v2871
        %v2983 = vunpack.c.l.b16 %v2872
        %v2984 = vunpack.c.l.b16 %v2873
        %v2985 = vunpack.c.l.b16 %v2874
        %v2986 = vunpack.c.l.b16 %v2875
        %v2987 = vunpack.c.l.b16 %v2876
        %v2988 = vunpack.c.l.b16 %v2877
        %v2989 = vunpack.c.l.b16 %v2878
        %v2990 = vunpack.c.l.b16 %v2879
        %v2991 = vunpack.c.l.b16 %v2880
        %v2992 = vunpack.c.l.b16 %v2881
        %v2993 = vunpack.c.l.b16 %v2882
        %v2994 = vunpack.c.l.b16 %v2883
        %v2995 = vunpack.c.l.b16 %v2884
        %v2996 = vunpack.c.l.b16 %v2885
        %v2997 = vunpack.c.l.b16 %v2886
        %v2998 = vunpack.c.l.b16 %v2887
        %v2999 = vunpack.c.l.b16 %v2888
        %v3000 = vunpack.c.l.b16 %v2889
        %v3001 = vunpack.c.l.b16 %v2890
        %v3002 = vpack.c.b16 %v2971, %v2970
        %v3003 = vpack.c.b16 %v2973, %v2972
        %v3004 = vpack.c.b16 %v2975, %v2974
        %v3005 = vpack.c.b16 %v2977, %v2976
        %v3006 = vpack.c.b16 %v2979, %v2978
        %v3007 = vpack.c.b16 %v2981, %v2980
        %v3008 = vpack.c.b16 %v2983, %v2982
        %v3009 = vpack.c.b16 %v2985, %v2984
        %v3010 = vpack.c.b16 %v2987, %v2986
        %v3011 = vpack.c.b16 %v2989, %v2988
        %v3012 = vpack.c.b16 %v2991, %v2990
        %v3013 = vpack.c.b16 %v2993, %v2992
        %v3014 = vpack.c.b16 %v2995, %v2994
        %v3015 = vpack.c.b16 %v2997, %v2996
        %v3016 = vpack.c.b16 %v2999, %v2998
        %v3017 = vpack.c.b16 %v3001, %v3000
        %3034 = vmatprep.subr.bf16.mxu0 0
        %3035 = vmatpush1.bf16.msra.mxu0 %v3002
        %3036 = vmatprep.subr.bf16.mxu0 0
        %3037 = vmatpush1.bf16.msra.mxu0 %v3003
        %3038 = vmatprep.subr.bf16.mxu0 0
        %3039 = vmatpush1.bf16.msra.mxu0 %v3004
        %3040 = vmatprep.subr.bf16.mxu0 0
        %3041 = vmatpush1.bf16.msra.mxu0 %v3005
        %3042 = vmatprep.subr.bf16.mxu0 0
        %3043 = vmatpush1.bf16.msra.mxu0 %v3006
        %3044 = vmatprep.subr.bf16.mxu0 0
        %3045 = vmatpush1.bf16.msra.mxu0 %v3007
        %3046 = vmatprep.subr.bf16.mxu0 0
        %3047 = vmatpush1.bf16.msra.mxu0 %v3008
        %3048 = vmatprep.subr.bf16.mxu0 0
        %3049 = vmatpush1.bf16.msra.mxu0 %v3009
        %3050 = vmatprep.subr.bf16.mxu0 0
        %3051 = vmatpush1.bf16.msra.mxu0 %v3010
        %3052 = vmatprep.subr.bf16.mxu0 0
        %3053 = vmatpush1.bf16.msra.mxu0 %v3011
        %3054 = vmatprep.subr.bf16.mxu0 0
        %3055 = vmatpush1.bf16.msra.mxu0 %v3012
        %3056 = vmatprep.subr.bf16.mxu0 0
        %3057 = vmatpush1.bf16.msra.mxu0 %v3013
        %3058 = vmatprep.subr.bf16.mxu0 0
        %3059 = vmatpush1.bf16.msra.mxu0 %v3014
        %3060 = vmatprep.subr.bf16.mxu0 0
        %3061 = vmatpush1.bf16.msra.mxu0 %v3015
        %3062 = vmatprep.subr.bf16.mxu0 0
        %3063 = vmatpush1.bf16.msra.mxu0 %v3016
        %3064 = vmatprep.subr.bf16.mxu0 0
        %3065 = vmatpush1.bf16.msra.mxu0 %v3017
        %3066 = vmatprep.mubr.bf16.mxu0 %v2923
        %3067 = vmatmul.mubr.bf16.gmra.mrb[0].mxu0 %v2922
        %v3068 = vpop.f32.mrb[0].mxu0
        %v3069 = vadd.f32 %v2896, %v3068
        %v3070 = vpop.f32.mrb[0].mxu0
        %v3071 = vpop.f32.mrb[0].mxu0
        %v3072 = vadd.f32 %v2896, %v3071
        %v3073 = vpop.f32.mrb[0].mxu0
        %3074 = vmatprep.mubr.bf16.mxu0 %v2925
        %3075 = vmatmul.mubr.bf16.gmra.mrb[0].mxu0 %v2924
        %v3076 = vpop.f32.mrb[0].mxu0
        %v3077 = vadd.f32 %v2896, %v3076
        %v3078 = vpop.f32.mrb[0].mxu0
        %v3079 = vpop.f32.mrb[0].mxu0
        %v3080 = vadd.f32 %v2896, %v3079
        %v3081 = vpop.f32.mrb[0].mxu0
        %3082 = vmatprep.mubr.bf16.mxu0 %v2927
        %3083 = vmatmul.mubr.bf16.gmra.mrb[0].mxu0 %v2926
        %v3084 = vpop.f32.mrb[0].mxu0
        %v3085 = vadd.f32 %v2896, %v3084
        %v3086 = vpop.f32.mrb[0].mxu0
        %v3087 = vpop.f32.mrb[0].mxu0
        %v3088 = vadd.f32 %v2896, %v3087
        %v3089 = vpop.f32.mrb[0].mxu0
        %3090 = vmatprep.mubr.bf16.mxu0 %v2929
        %3091 = vmatmul.mubr.bf16.gmra.mrb[0].mxu0 %v2928
        %v3092 = vpop.f32.mrb[0].mxu0
        %v3093 = vadd.f32 %v2896, %v3092
        %v3094 = vpop.f32.mrb[0].mxu0
        %v3095 = vpop.f32.mrb[0].mxu0
        %v3096 = vadd.f32 %v2896, %v3095
        %v3097 = vpop.f32.mrb[0].mxu0
        %3098 = vdwg.mxu0
        %v3099 = vld [vmem:[#allocation9] sm:$0xff]
        %v3100 = vld [vmem:[#allocation9 + $0x8] sm:$0xff]
        %v3101 = vld [vmem:[#allocation9 + $0x10] sm:$0xff]
        %v3102 = vld [vmem:[#allocation9 + $0x18] sm:$0xff]
        %v3103 = vld [vmem:[#allocation9 + $0x20] sm:$0xff]
        %v3104 = vld [vmem:[#allocation9 + $0x28] sm:$0xff]
        %v3105 = vld [vmem:[#allocation9 + $0x30] sm:$0xff]
        %v3106 = vld [vmem:[#allocation9 + $0x38] sm:$0xff]
        %v3107 = vld [vmem:[#allocation11] sm:$0xff]
        %v3108 = vld [vmem:[#allocation11 + $0x8] sm:$0xff]
        %v3109 = vld [vmem:[#allocation11 + $0x10] sm:$0xff]
        %v3110 = vld [vmem:[#allocation11 + $0x18] sm:$0xff]
        %v3111 = vld [vmem:[#allocation11 + $0x20] sm:$0xff]
        %v3112 = vld [vmem:[#allocation11 + $0x28] sm:$0xff]
        %v3113 = vld [vmem:[#allocation11 + $0x30] sm:$0xff]
        %v3114 = vld [vmem:[#allocation11 + $0x38] sm:$0xff]
        %v3115 = vmul.f32 %v3099, %v3069
        %v3116 = vmul.f32 %v3100, %v3072
        %v3117 = vmul.f32 %v3101, %v3077
        %v3118 = vmul.f32 %v3102, %v3080
        %v3119 = vmul.f32 %v3103, %v3085
        %v3120 = vmul.f32 %v3104, %v3088
        %v3121 = vmul.f32 %v3105, %v3093
        %v3122 = vmul.f32 %v3106, %v3096
        %3123 = vrot.lane.b32.xlu0 %v3069, 64
        %v3124 = vpop.permute.xlu0 %3123
        %3125 = vrot.lane.b32.xlu0 %v3072, 64
        %v3126 = vpop.permute.xlu0 %3125
        %3127 = vrot.lane.b32.xlu0 %v3077, 64
        %v3128 = vpop.permute.xlu0 %3127
        %3129 = vrot.lane.b32.xlu0 %v3080, 64
        %v3130 = vpop.permute.xlu0 %3129
        %3131 = vrot.lane.b32.xlu0 %v3085, 64
        %v3132 = vpop.permute.xlu0 %3131
        %3133 = vrot.lane.b32.xlu0 %v3088, 64
        %v3134 = vpop.permute.xlu0 %3133
        %3135 = vrot.lane.b32.xlu0 %v3093, 64
        %v3136 = vpop.permute.xlu0 %3135
        %3137 = vrot.lane.b32.xlu0 %v3096, 64
        %v3138 = vpop.permute.xlu0 %3137
        %v3139 = vmul.f32 %v3107, %v3124
        %v3140 = vmul.f32 %v3108, %v3126
        %v3141 = vmul.f32 %v3109, %v3128
        %v3142 = vmul.f32 %v3110, %v3130
        %v3143 = vmul.f32 %v3111, %v3132
        %v3144 = vmul.f32 %v3112, %v3134
        %v3145 = vmul.f32 %v3113, %v3136
        %v3146 = vmul.f32 %v3114, %v3138
        %v3147 = vadd.f32 %v3115, %v3139
        %v3148 = vadd.f32 %v3116, %v3140
        %v3149 = vadd.f32 %v3117, %v3141
        %v3150 = vadd.f32 %v3118, %v3142
        %v3151 = vadd.f32 %v3119, %v3143
        %v3152 = vadd.f32 %v3120, %v3144
        %v3153 = vadd.f32 %v3121, %v3145
        %v3154 = vadd.f32 %v3122, %v3146
        %v3155 = vpack.c.bf16 %v3148, %v3147
        %v3156 = vpack.c.bf16 %v3150, %v3149
        %v3157 = vpack.c.bf16 %v3152, %v3151
        %v3158 = vpack.c.bf16 %v3154, %v3153
        %3159 = vmatprep.subr.bf16.mxu0 0
        %3160 = vmatpush1.bf16.xpose.msra.mxu0 %v2835
        %3161 = vmatprep.subr.bf16.mxu0 0
        %3162 = vmatpush1.bf16.xpose.msra.mxu0 %v2836
        %3163 = vmatprep.subr.bf16.mxu0 0
        %3164 = vmatpush1.bf16.xpose.msra.mxu0 %v2837
        %3165 = vmatprep.subr.bf16.mxu0 0
        %3166 = vmatpush1.bf16.xpose.msra.mxu0 %v2838
        %3167 = vmatprep.subr.bf16.mxu0 0
        %3168 = vmatpush1.bf16.xpose.msra.mxu0 %v2839
        %3169 = vmatprep.subr.bf16.mxu0 0
        %3170 = vmatpush1.bf16.xpose.msra.mxu0 %v2840
        %3171 = vmatprep.subr.bf16.mxu0 0
        %3172 = vmatpush1.bf16.xpose.msra.mxu0 %v2841
        %3173 = vmatprep.subr.bf16.mxu0 0
        %3174 = vmatpush1.bf16.xpose.msra.mxu0 %v2842
        %3175 = vmatprep.subr.bf16.mxu0 0
        %3176 = vmatpush1.bf16.xpose.msra.mxu0 0
        %3177 = vmatprep.subr.bf16.mxu0 0
        %3178 = vmatpush1.bf16.xpose.msra.mxu0 0
        %3179 = vmatprep.subr.bf16.mxu0 0
        %3180 = vmatpush1.bf16.xpose.msra.mxu0 0
        %3181 = vmatprep.subr.bf16.mxu0 0
        %3182 = vmatpush1.bf16.xpose.msra.mxu0 0
        %3183 = vmatprep.subr.bf16.mxu0 0
        %3184 = vmatpush1.bf16.xpose.msra.mxu0 0
        %3185 = vmatprep.subr.bf16.mxu0 0
        %3186 = vmatpush1.bf16.xpose.msra.mxu0 0
        %3187 = vmatprep.subr.bf16.mxu0 0
        %3188 = vmatpush1.bf16.xpose.msra.mxu0 0
        %3189 = vmatprep.subr.bf16.mxu0 0
        %3190 = vmatpush1.bf16.xpose.msra.mxu0 0
        %3191 = vmatprep.mubr.bf16.mxu0 0
        %3192 = vmatmul.mubr.bf16.gmra.mrb[0].mxu0 %v3155
        %v3193 = vpop.f32.mrb[0].mxu0
        %v3194 = vadd.f32 0.0, %v3193
        %v3195 = vpop.f32.mrb[0].mxu0
        %v3196 = vpop.f32.mrb[0].mxu0
        %v3197 = vadd.f32 0.0, %v3196
        %v3198 = vpop.f32.mrb[0].mxu0
        %3199 = vmatprep.mubr.bf16.mxu0 0
        %3200 = vmatmul.mubr.bf16.gmra.mrb[0].mxu0 %v3156
        %v3201 = vpop.f32.mrb[0].mxu0
        %v3202 = vadd.f32 0.0, %v3201
        %v3203 = vpop.f32.mrb[0].mxu0
        %v3204 = vpop.f32.mrb[0].mxu0
        %v3205 = vadd.f32 0.0, %v3204
        %v3206 = vpop.f32.mrb[0].mxu0
        %3207 = vmatprep.mubr.bf16.mxu0 0
        %3208 = vmatmul.mubr.bf16.gmra.mrb[0].mxu0 %v3157
        %v3209 = vpop.f32.mrb[0].mxu0
        %v3210 = vadd.f32 0.0, %v3209
        %v3211 = vpop.f32.mrb[0].mxu0
        %v3212 = vpop.f32.mrb[0].mxu0
        %v3213 = vadd.f32 0.0, %v3212
        %v3214 = vpop.f32.mrb[0].mxu0
        %3215 = vmatprep.mubr.bf16.mxu0 0
        %3216 = vmatmul.mubr.bf16.gmra.mrb[0].mxu0 %v3158
        %v3217 = vpop.f32.mrb[0].mxu0
        %v3218 = vadd.f32 0.0, %v3217
        %v3219 = vpop.f32.mrb[0].mxu0
        %v3220 = vpop.f32.mrb[0].mxu0
        %v3221 = vadd.f32 0.0, %v3220
        %v3222 = vpop.f32.mrb[0].mxu0
        %3223 = vdwg.mxu0
        %v3224 = vsel %vm1440, -1e+30, %v3194
        %v3225 = vsel %vm1441, -1e+30, %v3197
        %v3226 = vsel %vm1442, -1e+30, %v3202
        %v3227 = vsel %vm1443, -1e+30, %v3205
        %v3228 = vsel %vm1444, -1e+30, %v3210
        %v3229 = vsel %vm1445, -1e+30, %v3213
        %v3230 = vsel %vm1446, -1e+30, %v3218
        %v3231 = vsel %vm1447, -1e+30, %v3221
        %3232 = vmax.xlane.f32.xlu0 %v3224
        %v3233 = vpop.xlane.xlu0 %3232
        %3234 = vmax.xlane.f32.xlu0 %v3225
        %v3235 = vpop.xlane.xlu0 %3234
        %3236 = vmax.xlane.f32.xlu0 %v3226
        %v3237 = vpop.xlane.xlu0 %3236
        %3238 = vmax.xlane.f32.xlu0 %v3227
        %v3239 = vpop.xlane.xlu0 %3238
        %3240 = vmax.xlane.f32.xlu0 %v3228
        %v3241 = vpop.xlane.xlu0 %3240
        %3242 = vmax.xlane.f32.xlu0 %v3229
        %v3243 = vpop.xlane.xlu0 %3242
        %3244 = vmax.xlane.f32.xlu0 %v3230
        %v3245 = vpop.xlane.xlu0 %3244
        %3246 = vmax.xlane.f32.xlu0 %v3231
        %v3247 = vpop.xlane.xlu0 %3246
        %v3248 = vsub.f32 %v3224, %v3233
        %v3249 = vsub.f32 %v3225, %v3235
        %v3250 = vsub.f32 %v3226, %v3237
        %v3251 = vsub.f32 %v3227, %v3239
        %v3252 = vsub.f32 %v3228, %v3241
        %v3253 = vsub.f32 %v3229, %v3243
        %v3254 = vsub.f32 %v3230, %v3245
        %v3255 = vsub.f32 %v3231, %v3247
        %v3256 = vmul.f32 %v3248, 1.442695
        %v3257 = vpow.pop %v3256
        %v3258 = vmul.f32 %v3249, 1.442695
        %v3259 = vpow.pop %v3258
        %v3260 = vmul.f32 %v3250, 1.442695
        %v3261 = vpow.pop %v3260
        %v3262 = vmul.f32 %v3251, 1.442695
        %v3263 = vpow.pop %v3262
        %v3264 = vmul.f32 %v3252, 1.442695
        %v3265 = vpow.pop %v3264
        %v3266 = vmul.f32 %v3253, 1.442695
        %v3267 = vpow.pop %v3266
        %v3268 = vmul.f32 %v3254, 1.442695
        %v3269 = vpow.pop %v3268
        %v3270 = vmul.f32 %v3255, 1.442695
        %v3271 = vpow.pop %v3270
        %3272 = vadd.xlane.f32.xlu0 %v3257
        %v3273 = vpop.xlane.xlu0 %3272
        %3274 = vadd.xlane.f32.xlu0 %v3259
        %v3275 = vpop.xlane.xlu0 %3274
        %3276 = vadd.xlane.f32.xlu0 %v3261
        %v3277 = vpop.xlane.xlu0 %3276
        %3278 = vadd.xlane.f32.xlu0 %v3263
        %v3279 = vpop.xlane.xlu0 %3278
        %3280 = vadd.xlane.f32.xlu0 %v3265
        %v3281 = vpop.xlane.xlu0 %3280
        %3282 = vadd.xlane.f32.xlu0 %v3267
        %v3283 = vpop.xlane.xlu0 %3282
        %3284 = vadd.xlane.f32.xlu0 %v3269
        %v3285 = vpop.xlane.xlu0 %3284
        %3286 = vadd.xlane.f32.xlu0 %v3271
        %v3287 = vpop.xlane.xlu0 %3286
        %v3288 = vpack.c.bf16 %v3259, %v3257
        %v3289 = vpack.c.bf16 %v3263, %v3261
        %v3290 = vpack.c.bf16 %v3267, %v3265
        %v3291 = vpack.c.bf16 %v3271, %v3269
        %3292 = vmatprep.subr.bf16.mxu0 0
        %3293 = vmatpush1.bf16.msra.mxu0 %v2843
        %3294 = vmatprep.subr.bf16.mxu0 0
        %3295 = vmatpush1.bf16.msra.mxu0 %v2844
        %3296 = vmatprep.subr.bf16.mxu0 0
        %3297 = vmatpush1.bf16.msra.mxu0 %v2845
        %3298 = vmatprep.subr.bf16.mxu0 0
        %3299 = vmatpush1.bf16.msra.mxu0 %v2846
        %3300 = vmatprep.subr.bf16.mxu0 0
        %3301 = vmatpush1.bf16.msra.mxu0 %v2847
        %3302 = vmatprep.subr.bf16.mxu0 0
        %3303 = vmatpush1.bf16.msra.mxu0 %v2848
        %3304 = vmatprep.subr.bf16.mxu0 0
        %3305 = vmatpush1.bf16.msra.mxu0 %v2849
        %3306 = vmatprep.subr.bf16.mxu0 0
        %3307 = vmatpush1.bf16.msra.mxu0 %v2850
        %3308 = vmatprep.subr.bf16.mxu0 0
        %3309 = vmatpush1.bf16.msra.mxu0 0
        %3310 = vmatprep.subr.bf16.mxu0 0
        %3311 = vmatpush1.bf16.msra.mxu0 0
        %3312 = vmatprep.subr.bf16.mxu0 0
        %3313 = vmatpush1.bf16.msra.mxu0 0
        %3314 = vmatprep.subr.bf16.mxu0 0
        %3315 = vmatpush1.bf16.msra.mxu0 0
        %3316 = vmatprep.subr.bf16.mxu0 0
        %3317 = vmatpush1.bf16.msra.mxu0 0
        %3318 = vmatprep.subr.bf16.mxu0 0
        %3319 = vmatpush1.bf16.msra.mxu0 0
        %3320 = vmatprep.subr.bf16.mxu0 0
        %3321 = vmatpush1.bf16.msra.mxu0 0
        %3322 = vmatprep.subr.bf16.mxu0 0
        %3323 = vmatpush1.bf16.msra.mxu0 0
        %3324 = vmatprep.mubr.bf16.mxu0 0
        %3325 = vmatmul.mubr.bf16.gmra.mrb[0].mxu0 %v3288
        %v3326 = vpop.f32.mrb[0].mxu0
        %v3327 = vadd.f32 0.0, %v3326
        %v3328 = vpop.f32.mrb[0].mxu0
        %v3329 = vpop.f32.mrb[0].mxu0
        %v3330 = vadd.f32 0.0, %v3329
        %v3331 = vpop.f32.mrb[0].mxu0
        %3332 = vmatprep.mubr.bf16.mxu0 0
        %3333 = vmatmul.mubr.bf16.gmra.mrb[0].mxu0 %v3289
        %v3334 = vpop.f32.mrb[0].mxu0
        %v3335 = vadd.f32 0.0, %v3334
        %v3336 = vpop.f32.mrb[0].mxu0
        %v3337 = vpop.f32.mrb[0].mxu0
        %v3338 = vadd.f32 0.0, %v3337
        %v3339 = vpop.f32.mrb[0].mxu0
        %3340 = vmatprep.mubr.bf16.mxu0 0
        %3341 = vmatmul.mubr.bf16.gmra.mrb[0].mxu0 %v3290
        %v3342 = vpop.f32.mrb[0].mxu0
        %v3343 = vadd.f32 0.0, %v3342
        %v3344 = vpop.f32.mrb[0].mxu0
        %v3345 = vpop.f32.mrb[0].mxu0
        %v3346 = vadd.f32 0.0, %v3345
        %v3347 = vpop.f32.mrb[0].mxu0
        %3348 = vmatprep.mubr.bf16.mxu0 0
        %3349 = vmatmul.mubr.bf16.gmra.mrb[0].mxu0 %v3291
        %v3350 = vpop.f32.mrb[0].mxu0
        %v3351 = vadd.f32 0.0, %v3350
        %v3352 = vpop.f32.mrb[0].mxu0
        %v3353 = vpop.f32.mrb[0].mxu0
        %v3354 = vadd.f32 0.0, %v3353
        %v3355 = vpop.f32.mrb[0].mxu0
        %3356 = vdwg.mxu0
        %v3357 = vrcp.pop %v3273
        %v3358 = vrcp.pop %v3275
        %v3359 = vrcp.pop %v3277
        %v3360 = vrcp.pop %v3279
        %v3361 = vrcp.pop %v3281
        %v3362 = vrcp.pop %v3283
        %v3363 = vrcp.pop %v3285
        %v3364 = vrcp.pop %v3287
        %v3365 = vmul.f32 %v3327, %v3357
        %v3366 = vmul.f32 %v3330, %v3358
        %v3367 = vmul.f32 %v3335, %v3359
        %v3368 = vmul.f32 %v3338, %v3360
        %v3369 = vmul.f32 %v3343, %v3361
        %v3370 = vmul.f32 %v3346, %v3362
        %v3371 = vmul.f32 %v3351, %v3363
        %v3372 = vmul.f32 %v3354, %v3364
        %v3373 = vpack.c.bf16 %v3366, %v3365
        %v3374 = vpack.c.bf16 %v3368, %v3367
        %v3375 = vpack.c.bf16 %v3370, %v3369
        %v3376 = vpack.c.bf16 %v3372, %v3371
        %3377 = vst [vmem:[%s1603 + $0x8] sm:$0xff] %v3373
        %3378 = vst [vmem:[%s1603 + $0x18] sm:$0xff] %v3374
        %3379 = vst [vmem:[%s1603 + $0x28] sm:$0xff] %v3375
        %3380 = vst [vmem:[%s1603 + $0x38] sm:$0xff] %v3376
        %v3381 = vld [vmem:[%s1610] sm:$0xff]
        %v3382 = vld [vmem:[%s1610 + $0x8] sm:$0xff]
        %v3383 = vld [vmem:[%s1610 + $0x10] sm:$0xff]
        %v3384 = vld [vmem:[%s1610 + $0x18] sm:$0xff]
        %v3385 = vld [vmem:[%s1610 + $0x20] sm:$0xff]
        %v3386 = vld [vmem:[%s1610 + $0x28] sm:$0xff]
        %v3387 = vld [vmem:[%s1610 + $0x30] sm:$0xff]
        %v3388 = vld [vmem:[%s1610 + $0x38] sm:$0xff]
        %v3389 = vld [vmem:[#allocation6 + $0xc] sm:$0xf]
        %v3390 = vld [vmem:[#allocation6 + $0x24] sm:$0xf]
        %v3391 = vld [vmem:[#allocation6 + $0x3c] sm:$0xf]
        %v3392 = vld [vmem:[#allocation6 + $0x54] sm:$0xf]
        %v3393 = vld [vmem:[#allocation6 + $0x6c] sm:$0xf]
        %v3394 = vld [vmem:[#allocation6 + $0x84] sm:$0xf]
        %v3395 = vld [vmem:[#allocation6 + $0x9c] sm:$0xf]
        %v3396 = vld [vmem:[#allocation6 + $0xb4] sm:$0xf]
        %v3397 = vld [vmem:[#allocation6 + $0xcc] sm:$0xf]
        %v3398 = vld [vmem:[#allocation6 + $0xe4] sm:$0xf]
        %v3399 = vld [vmem:[#allocation6 + $0xfc] sm:$0xf]
        %v3400 = vld [vmem:[#allocation6 + $0x114] sm:$0xf]
        %v3401 = vld [vmem:[#allocation6 + $0x12c] sm:$0xf]
        %v3402 = vld [vmem:[#allocation6 + $0x144] sm:$0xf]
        %v3403 = vld [vmem:[#allocation6 + $0x15c] sm:$0xf]
        %v3404 = vld [vmem:[#allocation6 + $0x174] sm:$0xf]
        %v3405 = vld [vmem:[#allocation6 + $0x18c] sm:$0xf]
        %v3406 = vld [vmem:[#allocation6 + $0x1a4] sm:$0xf]
        %v3407 = vld [vmem:[#allocation6 + $0x1bc] sm:$0xf]
        %v3408 = vld [vmem:[#allocation6 + $0x1d4] sm:$0xf]
        %v3409 = vld [vmem:[#allocation6 + $0x1ec] sm:$0xf]
        %v3410 = vld [vmem:[#allocation6 + $0x204] sm:$0xf]
        %v3411 = vld [vmem:[#allocation6 + $0x21c] sm:$0xf]
        %v3412 = vld [vmem:[#allocation6 + $0x234] sm:$0xf]
        %v3413 = vld [vmem:[#allocation6 + $0x24c] sm:$0xf]
        %v3414 = vld [vmem:[#allocation6 + $0x264] sm:$0xf]
        %v3415 = vld [vmem:[#allocation6 + $0x27c] sm:$0xf]
        %v3416 = vld [vmem:[#allocation6 + $0x294] sm:$0xf]
        %v3417 = vld [vmem:[#allocation6 + $0x2ac] sm:$0xf]
        %v3418 = vld [vmem:[#allocation6 + $0x2c4] sm:$0xf]
        %v3419 = vld [vmem:[#allocation6 + $0x2dc] sm:$0xf]
        %v3420 = vld [vmem:[#allocation6 + $0x2f4] sm:$0xf]
        %v3421 = vld [vmem:[%s2 + $0x3] sm:$0x1]
        %v3423 = vlaneseq
        %v3424 = vshrl.u32 %v3423, 7
        %v3425 = vsub.s32 0, %v3424
        %v3426 = vrot.slane %v3421, %v3425
        %v3436 = vunpack.c.l.b16 %v3381
        %v3437 = vunpack.c.h.b16 %v3381
        %v3438 = vunpack.c.l.b16 %v3382
        %v3439 = vunpack.c.h.b16 %v3382
        %v3440 = vunpack.c.l.b16 %v3383
        %v3441 = vunpack.c.h.b16 %v3383
        %v3442 = vunpack.c.l.b16 %v3384
        %v3443 = vunpack.c.h.b16 %v3384
        %v3444 = vunpack.c.l.b16 %v3385
        %v3445 = vunpack.c.h.b16 %v3385
        %v3446 = vunpack.c.l.b16 %v3386
        %v3447 = vunpack.c.h.b16 %v3386
        %v3448 = vunpack.c.l.b16 %v3387
        %v3449 = vunpack.c.h.b16 %v3387
        %v3450 = vunpack.c.l.b16 %v3388
        %v3451 = vunpack.c.h.b16 %v3388
        %v3452 = vpack.c.b16 %v3438, %v3436
        %v3453 = vpack.c.b16 %v3439, %v3437
        %v3454 = vpack.c.b16 %v3442, %v3440
        %v3455 = vpack.c.b16 %v3443, %v3441
        %v3456 = vpack.c.b16 %v3446, %v3444
        %v3457 = vpack.c.b16 %v3447, %v3445
        %v3458 = vpack.c.b16 %v3450, %v3448
        %v3459 = vpack.c.b16 %v3451, %v3449
        %v3500 = vunpack.c.l.b16 %v3389
        %v3501 = vunpack.c.l.b16 %v3390
        %v3502 = vunpack.c.l.b16 %v3391
        %v3503 = vunpack.c.l.b16 %v3392
        %v3504 = vunpack.c.l.b16 %v3393
        %v3505 = vunpack.c.l.b16 %v3394
        %v3506 = vunpack.c.l.b16 %v3395
        %v3507 = vunpack.c.l.b16 %v3396
        %v3508 = vunpack.c.l.b16 %v3397
        %v3509 = vunpack.c.l.b16 %v3398
        %v3510 = vunpack.c.l.b16 %v3399
        %v3511 = vunpack.c.l.b16 %v3400
        %v3512 = vunpack.c.l.b16 %v3401
        %v3513 = vunpack.c.l.b16 %v3402
        %v3514 = vunpack.c.l.b16 %v3403
        %v3515 = vunpack.c.l.b16 %v3404
        %v3516 = vunpack.c.l.b16 %v3405
        %v3517 = vunpack.c.l.b16 %v3406
        %v3518 = vunpack.c.l.b16 %v3407
        %v3519 = vunpack.c.l.b16 %v3408
        %v3520 = vunpack.c.l.b16 %v3409
        %v3521 = vunpack.c.l.b16 %v3410
        %v3522 = vunpack.c.l.b16 %v3411
        %v3523 = vunpack.c.l.b16 %v3412
        %v3524 = vunpack.c.l.b16 %v3413
        %v3525 = vunpack.c.l.b16 %v3414
        %v3526 = vunpack.c.l.b16 %v3415
        %v3527 = vunpack.c.l.b16 %v3416
        %v3528 = vunpack.c.l.b16 %v3417
        %v3529 = vunpack.c.l.b16 %v3418
        %v3530 = vunpack.c.l.b16 %v3419
        %v3531 = vunpack.c.l.b16 %v3420
        %v3532 = vpack.c.b16 %v3501, %v3500
        %v3533 = vpack.c.b16 %v3503, %v3502
        %v3534 = vpack.c.b16 %v3505, %v3504
        %v3535 = vpack.c.b16 %v3507, %v3506
        %v3536 = vpack.c.b16 %v3509, %v3508
        %v3537 = vpack.c.b16 %v3511, %v3510
        %v3538 = vpack.c.b16 %v3513, %v3512
        %v3539 = vpack.c.b16 %v3515, %v3514
        %v3540 = vpack.c.b16 %v3517, %v3516
        %v3541 = vpack.c.b16 %v3519, %v3518
        %v3542 = vpack.c.b16 %v3521, %v3520
        %v3543 = vpack.c.b16 %v3523, %v3522
        %v3544 = vpack.c.b16 %v3525, %v3524
        %v3545 = vpack.c.b16 %v3527, %v3526
        %v3546 = vpack.c.b16 %v3529, %v3528
        %v3547 = vpack.c.b16 %v3531, %v3530
        %3564 = vmatprep.subr.bf16.mxu0 0
        %3565 = vmatpush1.bf16.msra.mxu0 %v3532
        %3566 = vmatprep.subr.bf16.mxu0 0
        %3567 = vmatpush1.bf16.msra.mxu0 %v3533
        %3568 = vmatprep.subr.bf16.mxu0 0
        %3569 = vmatpush1.bf16.msra.mxu0 %v3534
        %3570 = vmatprep.subr.bf16.mxu0 0
        %3571 = vmatpush1.bf16.msra.mxu0 %v3535
        %3572 = vmatprep.subr.bf16.mxu0 0
        %3573 = vmatpush1.bf16.msra.mxu0 %v3536
        %3574 = vmatprep.subr.bf16.mxu0 0
        %3575 = vmatpush1.bf16.msra.mxu0 %v3537
        %3576 = vmatprep.subr.bf16.mxu0 0
        %3577 = vmatpush1.bf16.msra.mxu0 %v3538
        %3578 = vmatprep.subr.bf16.mxu0 0
        %3579 = vmatpush1.bf16.msra.mxu0 %v3539
        %3580 = vmatprep.subr.bf16.mxu0 0
        %3581 = vmatpush1.bf16.msra.mxu0 %v3540
        %3582 = vmatprep.subr.bf16.mxu0 0
        %3583 = vmatpush1.bf16.msra.mxu0 %v3541
        %3584 = vmatprep.subr.bf16.mxu0 0
        %3585 = vmatpush1.bf16.msra.mxu0 %v3542
        %3586 = vmatprep.subr.bf16.mxu0 0
        %3587 = vmatpush1.bf16.msra.mxu0 %v3543
        %3588 = vmatprep.subr.bf16.mxu0 0
        %3589 = vmatpush1.bf16.msra.mxu0 %v3544
        %3590 = vmatprep.subr.bf16.mxu0 0
        %3591 = vmatpush1.bf16.msra.mxu0 %v3545
        %3592 = vmatprep.subr.bf16.mxu0 0
        %3593 = vmatpush1.bf16.msra.mxu0 %v3546
        %3594 = vmatprep.subr.bf16.mxu0 0
        %3595 = vmatpush1.bf16.msra.mxu0 %v3547
        %3596 = vmatprep.mubr.bf16.mxu0 %v3453
        %3597 = vmatmul.mubr.bf16.gmra.mrb[0].mxu0 %v3452
        %v3598 = vpop.f32.mrb[0].mxu0
        %v3599 = vadd.f32 %v3426, %v3598
        %v3600 = vpop.f32.mrb[0].mxu0
        %v3601 = vpop.f32.mrb[0].mxu0
        %v3602 = vadd.f32 %v3426, %v3601
        %v3603 = vpop.f32.mrb[0].mxu0
        %3604 = vmatprep.mubr.bf16.mxu0 %v3455
        %3605 = vmatmul.mubr.bf16.gmra.mrb[0].mxu0 %v3454
        %v3606 = vpop.f32.mrb[0].mxu0
        %v3607 = vadd.f32 %v3426, %v3606
        %v3608 = vpop.f32.mrb[0].mxu0
        %v3609 = vpop.f32.mrb[0].mxu0
        %v3610 = vadd.f32 %v3426, %v3609
        %v3611 = vpop.f32.mrb[0].mxu0
        %3612 = vmatprep.mubr.bf16.mxu0 %v3457
        %3613 = vmatmul.mubr.bf16.gmra.mrb[0].mxu0 %v3456
        %v3614 = vpop.f32.mrb[0].mxu0
        %v3615 = vadd.f32 %v3426, %v3614
        %v3616 = vpop.f32.mrb[0].mxu0
        %v3617 = vpop.f32.mrb[0].mxu0
        %v3618 = vadd.f32 %v3426, %v3617
        %v3619 = vpop.f32.mrb[0].mxu0
        %3620 = vmatprep.mubr.bf16.mxu0 %v3459
        %3621 = vmatmul.mubr.bf16.gmra.mrb[0].mxu0 %v3458
        %v3622 = vpop.f32.mrb[0].mxu0
        %v3623 = vadd.f32 %v3426, %v3622
        %v3624 = vpop.f32.mrb[0].mxu0
        %v3625 = vpop.f32.mrb[0].mxu0
        %v3626 = vadd.f32 %v3426, %v3625
        %v3627 = vpop.f32.mrb[0].mxu0
        %3628 = vdwg.mxu0
        %v3629 = vld [vmem:[%s1859] sm:$0xff]
        %v3630 = vld [vmem:[%s1859 + $0x8] sm:$0xff]
        %v3631 = vld [vmem:[%s1859 + $0x10] sm:$0xff]
        %v3632 = vld [vmem:[%s1859 + $0x18] sm:$0xff]
        %v3633 = vld [vmem:[%s1859 + $0x20] sm:$0xff]
        %v3634 = vld [vmem:[%s1859 + $0x28] sm:$0xff]
        %v3635 = vld [vmem:[%s1859 + $0x30] sm:$0xff]
        %v3636 = vld [vmem:[%s1859 + $0x38] sm:$0xff]
        %v3637 = vld [vmem:[%s1868] sm:$0xff]
        %v3638 = vld [vmem:[%s1868 + $0x8] sm:$0xff]
        %v3639 = vld [vmem:[%s1868 + $0x10] sm:$0xff]
        %v3640 = vld [vmem:[%s1868 + $0x18] sm:$0xff]
        %v3641 = vld [vmem:[%s1868 + $0x20] sm:$0xff]
        %v3642 = vld [vmem:[%s1868 + $0x28] sm:$0xff]
        %v3643 = vld [vmem:[%s1868 + $0x30] sm:$0xff]
        %v3644 = vld [vmem:[%s1868 + $0x38] sm:$0xff]
        %v3645 = vmul.f32 %v3629, %v3599
        %v3646 = vmul.f32 %v3630, %v3602
        %v3647 = vmul.f32 %v3631, %v3607
        %v3648 = vmul.f32 %v3632, %v3610
        %v3649 = vmul.f32 %v3633, %v3615
        %v3650 = vmul.f32 %v3634, %v3618
        %v3651 = vmul.f32 %v3635, %v3623
        %v3652 = vmul.f32 %v3636, %v3626
        %3653 = vrot.lane.b32.xlu0 %v3599, 64
        %v3654 = vpop.permute.xlu0 %3653
        %3655 = vrot.lane.b32.xlu0 %v3602, 64
        %v3656 = vpop.permute.xlu0 %3655
        %3657 = vrot.lane.b32.xlu0 %v3607, 64
        %v3658 = vpop.permute.xlu0 %3657
        %3659 = vrot.lane.b32.xlu0 %v3610, 64
        %v3660 = vpop.permute.xlu0 %3659
        %3661 = vrot.lane.b32.xlu0 %v3615, 64
        %v3662 = vpop.permute.xlu0 %3661
        %3663 = vrot.lane.b32.xlu0 %v3618, 64
        %v3664 = vpop.permute.xlu0 %3663
        %3665 = vrot.lane.b32.xlu0 %v3623, 64
        %v3666 = vpop.permute.xlu0 %3665
        %3667 = vrot.lane.b32.xlu0 %v3626, 64
        %v3668 = vpop.permute.xlu0 %3667
        %v3669 = vmul.f32 %v3637, %v3654
        %v3670 = vmul.f32 %v3638, %v3656
        %v3671 = vmul.f32 %v3639, %v3658
        %v3672 = vmul.f32 %v3640, %v3660
        %v3673 = vmul.f32 %v3641, %v3662
        %v3674 = vmul.f32 %v3642, %v3664
        %v3675 = vmul.f32 %v3643, %v3666
        %v3676 = vmul.f32 %v3644, %v3668
        %v3677 = vadd.f32 %v3645, %v3669
        %v3678 = vadd.f32 %v3646, %v3670
        %v3679 = vadd.f32 %v3647, %v3671
        %v3680 = vadd.f32 %v3648, %v3672
        %v3681 = vadd.f32 %v3649, %v3673
        %v3682 = vadd.f32 %v3650, %v3674
        %v3683 = vadd.f32 %v3651, %v3675
        %v3684 = vadd.f32 %v3652, %v3676
        %v3685 = vpack.c.bf16 %v3678, %v3677
        %v3686 = vpack.c.bf16 %v3680, %v3679
        %v3687 = vpack.c.bf16 %v3682, %v3681
        %v3688 = vpack.c.bf16 %v3684, %v3683
        %3689 = vmatprep.subr.bf16.mxu0 0
        %3690 = vmatpush1.bf16.xpose.msra.mxu0 %v2835
        %3691 = vmatprep.subr.bf16.mxu0 0
        %3692 = vmatpush1.bf16.xpose.msra.mxu0 %v2836
        %3693 = vmatprep.subr.bf16.mxu0 0
        %3694 = vmatpush1.bf16.xpose.msra.mxu0 %v2837
        %3695 = vmatprep.subr.bf16.mxu0 0
        %3696 = vmatpush1.bf16.xpose.msra.mxu0 %v2838
        %3697 = vmatprep.subr.bf16.mxu0 0
        %3698 = vmatpush1.bf16.xpose.msra.mxu0 %v2839
        %3699 = vmatprep.subr.bf16.mxu0 0
        %3700 = vmatpush1.bf16.xpose.msra.mxu0 %v2840
        %3701 = vmatprep.subr.bf16.mxu0 0
        %3702 = vmatpush1.bf16.xpose.msra.mxu0 %v2841
        %3703 = vmatprep.subr.bf16.mxu0 0
        %3704 = vmatpush1.bf16.xpose.msra.mxu0 %v2842
        %3705 = vmatprep.subr.bf16.mxu0 0
        %3706 = vmatpush1.bf16.xpose.msra.mxu0 0
        %3707 = vmatprep.subr.bf16.mxu0 0
        %3708 = vmatpush1.bf16.xpose.msra.mxu0 0
        %3709 = vmatprep.subr.bf16.mxu0 0
        %3710 = vmatpush1.bf16.xpose.msra.mxu0 0
        %3711 = vmatprep.subr.bf16.mxu0 0
        %3712 = vmatpush1.bf16.xpose.msra.mxu0 0
        %3713 = vmatprep.subr.bf16.mxu0 0
        %3714 = vmatpush1.bf16.xpose.msra.mxu0 0
        %3715 = vmatprep.subr.bf16.mxu0 0
        %3716 = vmatpush1.bf16.xpose.msra.mxu0 0
        %3717 = vmatprep.subr.bf16.mxu0 0
        %3718 = vmatpush1.bf16.xpose.msra.mxu0 0
        %3719 = vmatprep.subr.bf16.mxu0 0
        %3720 = vmatpush1.bf16.xpose.msra.mxu0 0
        %3721 = vmatprep.mubr.bf16.mxu0 0
        %3722 = vmatmul.mubr.bf16.gmra.mrb[0].mxu0 %v3685
        %v3723 = vpop.f32.mrb[0].mxu0
        %v3724 = vadd.f32 0.0, %v3723
        %v3725 = vpop.f32.mrb[0].mxu0
        %v3726 = vpop.f32.mrb[0].mxu0
        %v3727 = vadd.f32 0.0, %v3726
        %v3728 = vpop.f32.mrb[0].mxu0
        %3729 = vmatprep.mubr.bf16.mxu0 0
        %3730 = vmatmul.mubr.bf16.gmra.mrb[0].mxu0 %v3686
        %v3731 = vpop.f32.mrb[0].mxu0
        %v3732 = vadd.f32 0.0, %v3731
        %v3733 = vpop.f32.mrb[0].mxu0
        %v3734 = vpop.f32.mrb[0].mxu0
        %v3735 = vadd.f32 0.0, %v3734
        %v3736 = vpop.f32.mrb[0].mxu0
        %3737 = vmatprep.mubr.bf16.mxu0 0
        %3738 = vmatmul.mubr.bf16.gmra.mrb[0].mxu0 %v3687
        %v3739 = vpop.f32.mrb[0].mxu0
        %v3740 = vadd.f32 0.0, %v3739
        %v3741 = vpop.f32.mrb[0].mxu0
        %v3742 = vpop.f32.mrb[0].mxu0
        %v3743 = vadd.f32 0.0, %v3742
        %v3744 = vpop.f32.mrb[0].mxu0
        %3745 = vmatprep.mubr.bf16.mxu0 0
        %3746 = vmatmul.mubr.bf16.gmra.mrb[0].mxu0 %v3688
        %v3747 = vpop.f32.mrb[0].mxu0
        %v3748 = vadd.f32 0.0, %v3747
        %v3749 = vpop.f32.mrb[0].mxu0
        %v3750 = vpop.f32.mrb[0].mxu0
        %v3751 = vadd.f32 0.0, %v3750
        %v3752 = vpop.f32.mrb[0].mxu0
        %3753 = vdwg.mxu0
        %v3754 = vsel %vm1995, -1e+30, %v3724
        %v3755 = vsel %vm1996, -1e+30, %v3727
        %v3756 = vsel %vm1997, -1e+30, %v3732
        %v3757 = vsel %vm1998, -1e+30, %v3735
        %v3758 = vsel %vm1999, -1e+30, %v3740
        %v3759 = vsel %vm2000, -1e+30, %v3743
        %v3760 = vsel %vm2001, -1e+30, %v3748
        %v3761 = vsel %vm2002, -1e+30, %v3751
        %3762 = vmax.xlane.f32.xlu0 %v3754
        %v3763 = vpop.xlane.xlu0 %3762
        %3764 = vmax.xlane.f32.xlu0 %v3755
        %v3765 = vpop.xlane.xlu0 %3764
        %3766 = vmax.xlane.f32.xlu0 %v3756
        %v3767 = vpop.xlane.xlu0 %3766
        %3768 = vmax.xlane.f32.xlu0 %v3757
        %v3769 = vpop.xlane.xlu0 %3768
        %3770 = vmax.xlane.f32.xlu0 %v3758
        %v3771 = vpop.xlane.xlu0 %3770
        %3772 = vmax.xlane.f32.xlu0 %v3759
        %v3773 = vpop.xlane.xlu0 %3772
        %3774 = vmax.xlane.f32.xlu0 %v3760
        %v3775 = vpop.xlane.xlu0 %3774
        %3776 = vmax.xlane.f32.xlu0 %v3761
        %v3777 = vpop.xlane.xlu0 %3776
        %v3778 = vsub.f32 %v3754, %v3763
        %v3779 = vsub.f32 %v3755, %v3765
        %v3780 = vsub.f32 %v3756, %v3767
        %v3781 = vsub.f32 %v3757, %v3769
        %v3782 = vsub.f32 %v3758, %v3771
        %v3783 = vsub.f32 %v3759, %v3773
        %v3784 = vsub.f32 %v3760, %v3775
        %v3785 = vsub.f32 %v3761, %v3777
        %v3786 = vmul.f32 %v3778, 1.442695
        %v3787 = vpow.pop %v3786
        %v3788 = vmul.f32 %v3779, 1.442695
        %v3789 = vpow.pop %v3788
        %v3790 = vmul.f32 %v3780, 1.442695
        %v3791 = vpow.pop %v3790
        %v3792 = vmul.f32 %v3781, 1.442695
        %v3793 = vpow.pop %v3792
        %v3794 = vmul.f32 %v3782, 1.442695
        %v3795 = vpow.pop %v3794
        %v3796 = vmul.f32 %v3783, 1.442695
        %v3797 = vpow.pop %v3796
        %v3798 = vmul.f32 %v3784, 1.442695
        %v3799 = vpow.pop %v3798
        %v3800 = vmul.f32 %v3785, 1.442695
        %v3801 = vpow.pop %v3800
        %3802 = vadd.xlane.f32.xlu0 %v3787
        %v3803 = vpop.xlane.xlu0 %3802
        %3804 = vadd.xlane.f32.xlu0 %v3789
        %v3805 = vpop.xlane.xlu0 %3804
        %3806 = vadd.xlane.f32.xlu0 %v3791
        %v3807 = vpop.xlane.xlu0 %3806
        %3808 = vadd.xlane.f32.xlu0 %v3793
        %v3809 = vpop.xlane.xlu0 %3808
        %3810 = vadd.xlane.f32.xlu0 %v3795
        %v3811 = vpop.xlane.xlu0 %3810
        %3812 = vadd.xlane.f32.xlu0 %v3797
        %v3813 = vpop.xlane.xlu0 %3812
        %3814 = vadd.xlane.f32.xlu0 %v3799
        %v3815 = vpop.xlane.xlu0 %3814
        %3816 = vadd.xlane.f32.xlu0 %v3801
        %v3817 = vpop.xlane.xlu0 %3816
        %v3818 = vpack.c.bf16 %v3789, %v3787
        %v3819 = vpack.c.bf16 %v3793, %v3791
        %v3820 = vpack.c.bf16 %v3797, %v3795
        %v3821 = vpack.c.bf16 %v3801, %v3799
        %3822 = vmatprep.subr.bf16.mxu0 0
        %3823 = vmatpush1.bf16.msra.mxu0 %v2843
        %3824 = vmatprep.subr.bf16.mxu0 0
        %3825 = vmatpush1.bf16.msra.mxu0 %v2844
        %3826 = vmatprep.subr.bf16.mxu0 0
        %3827 = vmatpush1.bf16.msra.mxu0 %v2845
        %3828 = vmatprep.subr.bf16.mxu0 0
        %3829 = vmatpush1.bf16.msra.mxu0 %v2846
        %3830 = vmatprep.subr.bf16.mxu0 0
        %3831 = vmatpush1.bf16.msra.mxu0 %v2847
        %3832 = vmatprep.subr.bf16.mxu0 0
        %3833 = vmatpush1.bf16.msra.mxu0 %v2848
        %3834 = vmatprep.subr.bf16.mxu0 0
        %3835 = vmatpush1.bf16.msra.mxu0 %v2849
        %3836 = vmatprep.subr.bf16.mxu0 0
        %3837 = vmatpush1.bf16.msra.mxu0 %v2850
        %3838 = vmatprep.subr.bf16.mxu0 0
        %3839 = vmatpush1.bf16.msra.mxu0 0
        %3840 = vmatprep.subr.bf16.mxu0 0
        %3841 = vmatpush1.bf16.msra.mxu0 0
        %3842 = vmatprep.subr.bf16.mxu0 0
        %3843 = vmatpush1.bf16.msra.mxu0 0
        %3844 = vmatprep.subr.bf16.mxu0 0
        %3845 = vmatpush1.bf16.msra.mxu0 0
        %3846 = vmatprep.subr.bf16.mxu0 0
        %3847 = vmatpush1.bf16.msra.mxu0 0
        %3848 = vmatprep.subr.bf16.mxu0 0
        %3849 = vmatpush1.bf16.msra.mxu0 0
        %3850 = vmatprep.subr.bf16.mxu0 0
        %3851 = vmatpush1.bf16.msra.mxu0 0
        %3852 = vmatprep.subr.bf16.mxu0 0
        %3853 = vmatpush1.bf16.msra.mxu0 0
        %3854 = vmatprep.mubr.bf16.mxu0 0
        %3855 = vmatmul.mubr.bf16.gmra.mrb[0].mxu0 %v3818
        %v3856 = vpop.f32.mrb[0].mxu0
        %v3857 = vadd.f32 0.0, %v3856
        %v3858 = vpop.f32.mrb[0].mxu0
        %v3859 = vpop.f32.mrb[0].mxu0
        %v3860 = vadd.f32 0.0, %v3859
        %v3861 = vpop.f32.mrb[0].mxu0
        %3862 = vmatprep.mubr.bf16.mxu0 0
        %3863 = vmatmul.mubr.bf16.gmra.mrb[0].mxu0 %v3819
        %v3864 = vpop.f32.mrb[0].mxu0
        %v3865 = vadd.f32 0.0, %v3864
        %v3866 = vpop.f32.mrb[0].mxu0
        %v3867 = vpop.f32.mrb[0].mxu0
        %v3868 = vadd.f32 0.0, %v3867
        %v3869 = vpop.f32.mrb[0].mxu0
        %3870 = vmatprep.mubr.bf16.mxu0 0
        %3871 = vmatmul.mubr.bf16.gmra.mrb[0].mxu0 %v3820
        %v3872 = vpop.f32.mrb[0].mxu0
        %v3873 = vadd.f32 0.0, %v3872
        %v3874 = vpop.f32.mrb[0].mxu0
        %v3875 = vpop.f32.mrb[0].mxu0
        %v3876 = vadd.f32 0.0, %v3875
        %v3877 = vpop.f32.mrb[0].mxu0
        %3878 = vmatprep.mubr.bf16.mxu0 0
        %3879 = vmatmul.mubr.bf16.gmra.mrb[0].mxu0 %v3821
        %v3880 = vpop.f32.mrb[0].mxu0
        %v3881 = vadd.f32 0.0, %v3880
        %v3882 = vpop.f32.mrb[0].mxu0
        %v3883 = vpop.f32.mrb[0].mxu0
        %v3884 = vadd.f32 0.0, %v3883
        %v3885 = vpop.f32.mrb[0].mxu0
        %3886 = vdwg.mxu0
        %v3887 = vrcp.pop %v3803
        %v3888 = vrcp.pop %v3805
        %v3889 = vrcp.pop %v3807
        %v3890 = vrcp.pop %v3809
        %v3891 = vrcp.pop %v3811
        %v3892 = vrcp.pop %v3813
        %v3893 = vrcp.pop %v3815
        %v3894 = vrcp.pop %v3817
        %v3895 = vmul.f32 %v3857, %v3887
        %v3896 = vmul.f32 %v3860, %v3888
        %v3897 = vmul.f32 %v3865, %v3889
        %v3898 = vmul.f32 %v3868, %v3890
        %v3899 = vmul.f32 %v3873, %v3891
        %v3900 = vmul.f32 %v3876, %v3892
        %v3901 = vmul.f32 %v3881, %v3893
        %v3902 = vmul.f32 %v3884, %v3894
        %v3903 = vpack.c.bf16 %v3896, %v3895
        %v3904 = vpack.c.bf16 %v3898, %v3897
        %v3905 = vpack.c.bf16 %v3900, %v3899
        %v3906 = vpack.c.bf16 %v3902, %v3901
        %3907 = vst [vmem:[%s2158 + $0x8] sm:$0xff] %v3903
        %3908 = vst [vmem:[%s2158 + $0x18] sm:$0xff] %v3904
        %3909 = vst [vmem:[%s2158 + $0x28] sm:$0xff] %v3905
        %3910 = vst [vmem:[%s2158 + $0x38] sm:$0xff] %v3906
        %v3911 = vld [vmem:[#allocation2] sm:$0xff]
        %v3912 = vld [vmem:[#allocation2 + $0x8] sm:$0xff]
        %v3913 = vld [vmem:[#allocation2 + $0x10] sm:$0xff]
        %v3914 = vld [vmem:[#allocation2 + $0x18] sm:$0xff]
        %v3915 = vld [vmem:[#allocation2 + $0x20] sm:$0xff]
        %v3916 = vld [vmem:[#allocation2 + $0x28] sm:$0xff]
        %v3917 = vld [vmem:[#allocation2 + $0x30] sm:$0xff]
        %v3918 = vld [vmem:[#allocation2 + $0x38] sm:$0xff]
        %v3919 = vld [vmem:[#allocation2 + $0x40] sm:$0xff]
        %v3920 = vld [vmem:[#allocation2 + $0x48] sm:$0xff]
        %v3921 = vld [vmem:[#allocation2 + $0x50] sm:$0xff]
        %v3922 = vld [vmem:[#allocation2 + $0x58] sm:$0xff]
        %v3923 = vld [vmem:[#allocation2 + $0x60] sm:$0xff]
        %v3924 = vld [vmem:[#allocation2 + $0x68] sm:$0xff]
        %v3925 = vld [vmem:[#allocation2 + $0x70] sm:$0xff]
        %v3926 = vld [vmem:[#allocation2 + $0x78] sm:$0xff]
        %v3927 = vld [vmem:[#allocation8] sm:$0xff]
        %v3928 = vld [vmem:[#allocation8 + $0x8] sm:$0xff]
        %v3929 = vld [vmem:[#allocation8 + $0x10] sm:$0xff]
        %v3930 = vld [vmem:[#allocation8 + $0x18] sm:$0xff]
        %v3931 = vld [vmem:[#allocation8 + $0x20] sm:$0xff]
        %v3932 = vld [vmem:[#allocation8 + $0x28] sm:$0xff]
        %v3933 = vld [vmem:[#allocation8 + $0x30] sm:$0xff]
        %v3934 = vld [vmem:[#allocation8 + $0x38] sm:$0xff]
        %v3935 = vld [vmem:[#allocation8 + $0x40] sm:$0xff]
        %v3936 = vld [vmem:[#allocation8 + $0x48] sm:$0xff]
        %v3937 = vld [vmem:[#allocation8 + $0x50] sm:$0xff]
        %v3938 = vld [vmem:[#allocation8 + $0x58] sm:$0xff]
        %v3939 = vld [vmem:[#allocation8 + $0x60] sm:$0xff]
        %v3940 = vld [vmem:[#allocation8 + $0x68] sm:$0xff]
        %v3941 = vld [vmem:[#allocation8 + $0x70] sm:$0xff]
        %v3942 = vld [vmem:[#allocation8 + $0x78] sm:$0xff]
        %v3943 = vld [vmem:[#allocation8 + $0x80] sm:$0xff]
        %v3944 = vld [vmem:[#allocation8 + $0x88] sm:$0xff]
        %v3945 = vld [vmem:[#allocation8 + $0x90] sm:$0xff]
        %v3946 = vld [vmem:[#allocation8 + $0x98] sm:$0xff]
        %v3947 = vld [vmem:[#allocation8 + $0xa0] sm:$0xff]
        %v3948 = vld [vmem:[#allocation8 + $0xa8] sm:$0xff]
        %v3949 = vld [vmem:[#allocation8 + $0xb0] sm:$0xff]
        %v3950 = vld [vmem:[#allocation8 + $0xb8] sm:$0xff]
        %v3951 = vld [vmem:[#allocation8 + $0xc0] sm:$0xff]
        %v3952 = vld [vmem:[#allocation8 + $0xc8] sm:$0xff]
        %v3953 = vld [vmem:[#allocation8 + $0xd0] sm:$0xff]
        %v3954 = vld [vmem:[#allocation8 + $0xd8] sm:$0xff]
        %v3955 = vld [vmem:[#allocation8 + $0xe0] sm:$0xff]
        %v3956 = vld [vmem:[#allocation8 + $0xe8] sm:$0xff]
        %v3957 = vld [vmem:[#allocation8 + $0xf0] sm:$0xff]
        %v3958 = vld [vmem:[#allocation8 + $0xf8] sm:$0xff]
        %v3959 = vld [vmem:[%s4] sm:$0x3]
        %v3961 = vlaneseq
        %v3962 = vshrl.u32 %v3961, 7
        %v3963 = vsub.s32 0, %v3962
        %v3964 = vrot.slane %v3959, %v3963
        %v3965 = vlaneseq
        %v3966 = vshrl.u32 %v3965, 7
        %v3967 = vsub.s32 1, %v3966
        %v3968 = vrot.slane %v3959, %v3967
        %v4003 = vunpack.c.l.b16 %v3927
        %v4004 = vunpack.c.h.b16 %v3927
        %v4005 = vunpack.c.l.b16 %v3928
        %v4006 = vunpack.c.h.b16 %v3928
        %v4007 = vunpack.c.l.b16 %v3929
        %v4008 = vunpack.c.h.b16 %v3929
        %v4009 = vunpack.c.l.b16 %v3930
        %v4010 = vunpack.c.h.b16 %v3930
        %v4011 = vunpack.c.l.b16 %v3931
        %v4012 = vunpack.c.h.b16 %v3931
        %v4013 = vunpack.c.l.b16 %v3932
        %v4014 = vunpack.c.h.b16 %v3932
        %v4015 = vunpack.c.l.b16 %v3933
        %v4016 = vunpack.c.h.b16 %v3933
        %v4017 = vunpack.c.l.b16 %v3934
        %v4018 = vunpack.c.h.b16 %v3934
        %v4019 = vunpack.c.l.b16 %v3935
        %v4020 = vunpack.c.h.b16 %v3935
        %v4021 = vunpack.c.l.b16 %v3936
        %v4022 = vunpack.c.h.b16 %v3936
        %v4023 = vunpack.c.l.b16 %v3937
        %v4024 = vunpack.c.h.b16 %v3937
        %v4025 = vunpack.c.l.b16 %v3938
        %v4026 = vunpack.c.h.b16 %v3938
        %v4027 = vunpack.c.l.b16 %v3939
        %v4028 = vunpack.c.h.b16 %v3939
        %v4029 = vunpack.c.l.b16 %v3940
        %v4030 = vunpack.c.h.b16 %v3940
        %v4031 = vunpack.c.l.b16 %v3941
        %v4032 = vunpack.c.h.b16 %v3941
        %v4033 = vunpack.c.l.b16 %v3942
        %v4034 = vunpack.c.h.b16 %v3942
        %v4035 = vunpack.c.l.b16 %v3943
        %v4036 = vunpack.c.h.b16 %v3943
        %v4037 = vunpack.c.l.b16 %v3944
        %v4038 = vunpack.c.h.b16 %v3944
        %v4039 = vunpack.c.l.b16 %v3945
        %v4040 = vunpack.c.h.b16 %v3945
        %v4041 = vunpack.c.l.b16 %v3946
        %v4042 = vunpack.c.h.b16 %v3946
        %v4043 = vunpack.c.l.b16 %v3947
        %v4044 = vunpack.c.h.b16 %v3947
        %v4045 = vunpack.c.l.b16 %v3948
        %v4046 = vunpack.c.h.b16 %v3948
        %v4047 = vunpack.c.l.b16 %v3949
        %v4048 = vunpack.c.h.b16 %v3949
        %v4049 = vunpack.c.l.b16 %v3950
        %v4050 = vunpack.c.h.b16 %v3950
        %v4051 = vunpack.c.l.b16 %v3951
        %v4052 = vunpack.c.h.b16 %v3951
        %v4053 = vunpack.c.l.b16 %v3952
        %v4054 = vunpack.c.h.b16 %v3952
        %v4055 = vunpack.c.l.b16 %v3953
        %v4056 = vunpack.c.h.b16 %v3953
        %v4057 = vunpack.c.l.b16 %v3954
        %v4058 = vunpack.c.h.b16 %v3954
        %v4059 = vunpack.c.l.b16 %v3955
        %v4060 = vunpack.c.h.b16 %v3955
        %v4061 = vunpack.c.l.b16 %v3956
        %v4062 = vunpack.c.h.b16 %v3956
        %v4063 = vunpack.c.l.b16 %v3957
        %v4064 = vunpack.c.h.b16 %v3957
        %v4065 = vunpack.c.l.b16 %v3958
        %v4066 = vunpack.c.h.b16 %v3958
        %v4067 = vpack.c.b16 %v4005, %v4003
        %v4068 = vpack.c.b16 %v4006, %v4004
        %v4069 = vpack.c.b16 %v4009, %v4007
        %v4070 = vpack.c.b16 %v4010, %v4008
        %v4071 = vpack.c.b16 %v4013, %v4011
        %v4072 = vpack.c.b16 %v4014, %v4012
        %v4073 = vpack.c.b16 %v4017, %v4015
        %v4074 = vpack.c.b16 %v4018, %v4016
        %v4075 = vpack.c.b16 %v4021, %v4019
        %v4076 = vpack.c.b16 %v4022, %v4020
        %v4077 = vpack.c.b16 %v4025, %v4023
        %v4078 = vpack.c.b16 %v4026, %v4024
        %v4079 = vpack.c.b16 %v4029, %v4027
        %v4080 = vpack.c.b16 %v4030, %v4028
        %v4081 = vpack.c.b16 %v4033, %v4031
        %v4082 = vpack.c.b16 %v4034, %v4032
        %v4083 = vpack.c.b16 %v4037, %v4035
        %v4084 = vpack.c.b16 %v4038, %v4036
        %v4085 = vpack.c.b16 %v4041, %v4039
        %v4086 = vpack.c.b16 %v4042, %v4040
        %v4087 = vpack.c.b16 %v4045, %v4043
        %v4088 = vpack.c.b16 %v4046, %v4044
        %v4089 = vpack.c.b16 %v4049, %v4047
        %v4090 = vpack.c.b16 %v4050, %v4048
        %v4091 = vpack.c.b16 %v4053, %v4051
        %v4092 = vpack.c.b16 %v4054, %v4052
        %v4093 = vpack.c.b16 %v4057, %v4055
        %v4094 = vpack.c.b16 %v4058, %v4056
        %v4095 = vpack.c.b16 %v4061, %v4059
        %v4096 = vpack.c.b16 %v4062, %v4060
        %v4097 = vpack.c.b16 %v4065, %v4063
        %v4098 = vpack.c.b16 %v4066, %v4064
        %4131 = vmatprep.subr.bf16.mxu0 %v4068
        %4132 = vmatpush1.bf16.msra.mxu0 %v4067
        %4133 = vmatprep.subr.bf16.mxu0 %v4070
        %4134 = vmatpush1.bf16.msra.mxu0 %v4069
        %4135 = vmatprep.subr.bf16.mxu0 %v4072
        %4136 = vmatpush1.bf16.msra.mxu0 %v4071
        %4137 = vmatprep.subr.bf16.mxu0 %v4074
        %4138 = vmatpush1.bf16.msra.mxu0 %v4073
        %4139 = vmatprep.subr.bf16.mxu0 %v4076
        %4140 = vmatpush1.bf16.msra.mxu0 %v4075
        %4141 = vmatprep.subr.bf16.mxu0 %v4078
        %4142 = vmatpush1.bf16.msra.mxu0 %v4077
        %4143 = vmatprep.subr.bf16.mxu0 %v4080
        %4144 = vmatpush1.bf16.msra.mxu0 %v4079
        %4145 = vmatprep.subr.bf16.mxu0 %v4082
        %4146 = vmatpush1.bf16.msra.mxu0 %v4081
        %4147 = vmatprep.subr.bf16.mxu0 %v4084
        %4148 = vmatpush1.bf16.msra.mxu0 %v4083
        %4149 = vmatprep.subr.bf16.mxu0 %v4086
        %4150 = vmatpush1.bf16.msra.mxu0 %v4085
        %4151 = vmatprep.subr.bf16.mxu0 %v4088
        %4152 = vmatpush1.bf16.msra.mxu0 %v4087
        %4153 = vmatprep.subr.bf16.mxu0 %v4090
        %4154 = vmatpush1.bf16.msra.mxu0 %v4089
        %4155 = vmatprep.subr.bf16.mxu0 %v4092
        %4156 = vmatpush1.bf16.msra.mxu0 %v4091
        %4157 = vmatprep.subr.bf16.mxu0 %v4094
        %4158 = vmatpush1.bf16.msra.mxu0 %v4093
        %4159 = vmatprep.subr.bf16.mxu0 %v4096
        %4160 = vmatpush1.bf16.msra.mxu0 %v4095
        %4161 = vmatprep.subr.bf16.mxu0 %v4098
        %4162 = vmatpush1.bf16.msra.mxu0 %v4097
        %4163 = vmatprep.mubr.bf16.mxu0 %v3912
        %4164 = vmatmul.mubr.bf16.gmra.mrb[0].mxu0 %v3911
        %v4165 = vpop.f32.mrb[0].mxu0
        %v4166 = vadd.f32 %v3964, %v4165
        %v4167 = vpop.f32.mrb[0].mxu0
        %v4168 = vadd.f32 %v3968, %v4167
        %v4169 = vpop.f32.mrb[0].mxu0
        %v4170 = vadd.f32 %v3964, %v4169
        %v4171 = vpop.f32.mrb[0].mxu0
        %v4172 = vadd.f32 %v3968, %v4171
        %4173 = vmatprep.mubr.bf16.mxu0 %v3914
        %4174 = vmatmul.mubr.bf16.gmra.mrb[0].mxu0 %v3913
        %v4175 = vpop.f32.mrb[0].mxu0
        %v4176 = vadd.f32 %v3964, %v4175
        %v4177 = vpop.f32.mrb[0].mxu0
        %v4178 = vadd.f32 %v3968, %v4177
        %v4179 = vpop.f32.mrb[0].mxu0
        %v4180 = vadd.f32 %v3964, %v4179
        %v4181 = vpop.f32.mrb[0].mxu0
        %v4182 = vadd.f32 %v3968, %v4181
        %4183 = vmatprep.mubr.bf16.mxu0 %v3916
        %4184 = vmatmul.mubr.bf16.gmra.mrb[0].mxu0 %v3915
        %v4185 = vpop.f32.mrb[0].mxu0
        %v4186 = vadd.f32 %v3964, %v4185
        %v4187 = vpop.f32.mrb[0].mxu0
        %v4188 = vadd.f32 %v3968, %v4187
        %v4189 = vpop.f32.mrb[0].mxu0
        %v4190 = vadd.f32 %v3964, %v4189
        %v4191 = vpop.f32.mrb[0].mxu0
        %v4192 = vadd.f32 %v3968, %v4191
        %4193 = vmatprep.mubr.bf16.mxu0 %v3918
        %4194 = vmatmul.mubr.bf16.gmra.mrb[0].mxu0 %v3917
        %v4195 = vpop.f32.mrb[0].mxu0
        %v4196 = vadd.f32 %v3964, %v4195
        %v4197 = vpop.f32.mrb[0].mxu0
        %v4198 = vadd.f32 %v3968, %v4197
        %v4199 = vpop.f32.mrb[0].mxu0
        %v4200 = vadd.f32 %v3964, %v4199
        %v4201 = vpop.f32.mrb[0].mxu0
        %v4202 = vadd.f32 %v3968, %v4201
        %4203 = vmatprep.mubr.bf16.mxu0 %v3920
        %4204 = vmatmul.mubr.bf16.gmra.mrb[0].mxu0 %v3919
        %v4205 = vpop.f32.mrb[0].mxu0
        %v4206 = vadd.f32 %v3964, %v4205
        %v4207 = vpop.f32.mrb[0].mxu0
        %v4208 = vadd.f32 %v3968, %v4207
        %v4209 = vpop.f32.mrb[0].mxu0
        %v4210 = vadd.f32 %v3964, %v4209
        %v4211 = vpop.f32.mrb[0].mxu0
        %v4212 = vadd.f32 %v3968, %v4211
        %4213 = vmatprep.mubr.bf16.mxu0 %v3922
        %4214 = vmatmul.mubr.bf16.gmra.mrb[0].mxu0 %v3921
        %v4215 = vpop.f32.mrb[0].mxu0
        %v4216 = vadd.f32 %v3964, %v4215
        %v4217 = vpop.f32.mrb[0].mxu0
        %v4218 = vadd.f32 %v3968, %v4217
        %v4219 = vpop.f32.mrb[0].mxu0
        %v4220 = vadd.f32 %v3964, %v4219
        %v4221 = vpop.f32.mrb[0].mxu0
        %v4222 = vadd.f32 %v3968, %v4221
        %4223 = vmatprep.mubr.bf16.mxu0 %v3924
        %4224 = vmatmul.mubr.bf16.gmra.mrb[0].mxu0 %v3923
        %v4225 = vpop.f32.mrb[0].mxu0
        %v4226 = vadd.f32 %v3964, %v4225
        %v4227 = vpop.f32.mrb[0].mxu0
        %v4228 = vadd.f32 %v3968, %v4227
        %v4229 = vpop.f32.mrb[0].mxu0
        %v4230 = vadd.f32 %v3964, %v4229
        %v4231 = vpop.f32.mrb[0].mxu0
        %v4232 = vadd.f32 %v3968, %v4231
        %4233 = vmatprep.mubr.bf16.mxu0 %v3926
        %4234 = vmatmul.mubr.bf16.gmra.mrb[0].mxu0 %v3925
        %v4235 = vpop.f32.mrb[0].mxu0
        %v4236 = vadd.f32 %v3964, %v4235
        %v4237 = vpop.f32.mrb[0].mxu0
        %v4238 = vadd.f32 %v3968, %v4237
        %v4239 = vpop.f32.mrb[0].mxu0
        %v4240 = vadd.f32 %v3964, %v4239
        %v4241 = vpop.f32.mrb[0].mxu0
        %v4242 = vadd.f32 %v3968, %v4241
        %4243 = vdwg.mxu0
        %4244 = vst [vmem:[%s354] sm:$0xff] %v4166
        %4245 = vst [vmem:[%s354 + $0x8] sm:$0xff] %v4168
        %4246 = vst [vmem:[%s354 + $0x10] sm:$0xff] %v4170
        %4247 = vst [vmem:[%s354 + $0x18] sm:$0xff] %v4172
        %4248 = vst [vmem:[%s354 + $0x20] sm:$0xff] %v4176
        %4249 = vst [vmem:[%s354 + $0x28] sm:$0xff] %v4178
        %4250 = vst [vmem:[%s354 + $0x30] sm:$0xff] %v4180
        %4251 = vst [vmem:[%s354 + $0x38] sm:$0xff] %v4182
        %4252 = vst [vmem:[%s354 + $0x40] sm:$0xff] %v4186
        %4253 = vst [vmem:[%s354 + $0x48] sm:$0xff] %v4188
        %4254 = vst [vmem:[%s354 + $0x50] sm:$0xff] %v4190
        %4255 = vst [vmem:[%s354 + $0x58] sm:$0xff] %v4192
        %4256 = vst [vmem:[%s354 + $0x60] sm:$0xff] %v4196
        %4257 = vst [vmem:[%s354 + $0x68] sm:$0xff] %v4198
        %4258 = vst [vmem:[%s354 + $0x70] sm:$0xff] %v4200
        %4259 = vst [vmem:[%s354 + $0x78] sm:$0xff] %v4202
        %4260 = vst [vmem:[%s354 + $0x80] sm:$0xff] %v4206
        %4261 = vst [vmem:[%s354 + $0x88] sm:$0xff] %v4208
        %4262 = vst [vmem:[%s354 + $0x90] sm:$0xff] %v4210
        %4263 = vst [vmem:[%s354 + $0x98] sm:$0xff] %v4212
        %4264 = vst [vmem:[%s354 + $0xa0] sm:$0xff] %v4216
        %4265 = vst [vmem:[%s354 + $0xa8] sm:$0xff] %v4218
        %4266 = vst [vmem:[%s354 + $0xb0] sm:$0xff] %v4220
        %4267 = vst [vmem:[%s354 + $0xb8] sm:$0xff] %v4222
        %4268 = vst [vmem:[%s354 + $0xc0] sm:$0xff] %v4226
        %4269 = vst [vmem:[%s354 + $0xc8] sm:$0xff] %v4228
        %4270 = vst [vmem:[%s354 + $0xd0] sm:$0xff] %v4230
        %4271 = vst [vmem:[%s354 + $0xd8] sm:$0xff] %v4232
        %4272 = vst [vmem:[%s354 + $0xe0] sm:$0xff] %v4236
        %4273 = vst [vmem:[%s354 + $0xe8] sm:$0xff] %v4238
        %4274 = vst [vmem:[%s354 + $0xf0] sm:$0xff] %v4240
        %4275 = vst [vmem:[%s354 + $0xf8] sm:$0xff] %v4242
        %s4276 = sand.u32 %s186, 1
        %s4277 = scalar_lea.sflag [#allocation5], %s4276
        %s4278 = sand.u32 %s186, 1
        %s4279 = smul.addr %s4278, 256
        %s4280 = scalar_lea.vmem [#allocation12], %s4279
        // Predicated region
        $region69: #{tpu_custom_call.1} parent=47 // pred_check
          %p4281 = pneg %p196
        $region70: #{tpu_custom_call.1} parent=47 // pred_check_branch
          %4283 = sbr.rel (%p4281) target = $region72
        $region71: #{tpu_custom_call.1} parent=47 // pred_region
          %s4285 = ssub.s32 4096, 4096
          %4286 = vsyncadd %s4277, %s4285
          %s4287 = smul.addr %s26, 32
          %s4288 = smul.addr %s4287, 128
          %s4289 = scalar_lea.hbm %s7, %s4288
          %s4290 = sshll.u32 %s4280, 4
          %s4291 = int_to_ptr.vmem [resolvable:$true] %s4290
          %4296 = dma.vmem_to_hbm [thread:$0]  %s4291, 4096, %s4289, %s4277, 256, 256, 16
        $region72: #{tpu_custom_call.1} parent=47 // pred_fallthru
          _
      $region48: #{tpu_custom_call.1} parent=5 // pred_fallthru
        _
      %p4297 = scmp.le.s32.totalorder 2, %s21
      // Predicated region
      $region73: #{tpu_custom_call.1} parent=5 // pred_check
        %p4298 = pneg %p4297
      $region74: #{tpu_custom_call.1} parent=5 // pred_check_branch
        %4300 = sbr.rel (%p4298) target = $region76
      $region75: #{tpu_custom_call.1} parent=5 // pred_region
        %s4301 = ssub.s32 %s21, 2
        // Predicated region
        $region77: #{tpu_custom_call.1} parent=75 // pred_check
          %p4302 = pneg %p202
        $region78: #{tpu_custom_call.1} parent=75 // pred_check_branch
          %4304 = sbr.rel (%p4302) target = $region80
        $region79: #{tpu_custom_call.1} parent=75 // pred_region
          %s4305 = sand.u32 %s187, 1
          %s4306 = scalar_lea.sflag [#allocation5], %s4305
          %s4307 = sand.u32 %s187, 1
          %s4308 = smul.addr %s4307, 256
          %s4309 = scalar_lea.vmem [#allocation12], %s4308
          %4310 = dma.done %s4306, 4096
        $region80: #{tpu_custom_call.1} parent=75 // pred_fallthru
          _
      $region76: #{tpu_custom_call.1} parent=5 // pred_fallthru
        _
    $region6: #{tpu_custom_call.1} parent=1 // loop_footer
      %s25 = sadd.s32 1, %s21
    $region7: #{tpu_custom_call.1} parent=1 // loop_footer_branch
      %20 = sbr.rel target = $region3
    $region8: #{tpu_custom_call.1} parent=1 // loop_exit
      _
    %4311 = vsyncpa [#allocation4], 1
    %s4312 = scalar_lea.sflag [#allocation4], 1
    %4313 = vsyncpa %s4312, 1
    %4314 = vsyncpa [#allocation7], 1
    %4315 = vsyncpa [#allocation10], 1
    %4316 = vsyncpa [#allocation5], 1
    %s4317 = scalar_lea.sflag [#allocation5], 1
    %4318 = vsyncpa %s4317, 1

</llo_original>
